<compile_context>
chip_gen: v6e
topology: v6e:2x2x1
jax: 0.10.0
libtpu: 0.0.40
codegen_flags: <defaults>
</compile_context>

<pallas_src>
import jax
import jax.numpy as jnp
from jax.experimental import pallas as pl
from jax.experimental.pallas import tpu as pltpu

NUM_LAYERS = 2
BN_EPS = 1e-5
LEAKY_SLOPE = 0.01  # nn.LeakyReLU default


def _round_up(v, m):
    return (v + m - 1) // m * m


def _softplus(x):
    # matches torch.nn.functional.softplus (threshold=20)
    return jnp.where(x > 20.0, x, jnp.log1p(jnp.exp(jnp.minimum(x, 20.0))))


def simclr_kernel(src_sub_ref, dst_sub_ref, dst_lane_ref, batch_ref, x_ref, ea_ref,
                  wnode_ref, wedge_ref, bfs_ref, gamma_ref, beta_ref,
                  w1_ref, b1_ref, w2_ref, b2_ref,
                  out_ref,
                  x_scr, agg_scr, p_scr):
    layer = pl.program_id(0)
    eblk = pl.program_id(1)
    n_layer = pl.num_programs(0)
    n_eblk = pl.num_programs(1)

    n_nodes, f_pad = x_scr.shape
    tile_e = ea_ref.shape[0]

    # --- one-time init: load x into the f32 carry scratch ---
    @pl.when(jnp.logical_and(layer == 0, eblk == 0))
    def _():
        x_scr[...] = x_ref[...].astype(jnp.float32)

    # --- per-layer precompute (reassociated gather), one fused 512-wide matmul:
    #     p = x @ [Wf_i | Ws_i | Wf_j | Ws_j]   (N, 4*Fp) ---
    @pl.when(eblk == 0)
    def _():
        xb = x_scr[...].astype(jnp.bfloat16)
        p_scr[...] = jnp.dot(xb, wnode_ref[0],
                             preferred_element_type=jnp.float32).astype(jnp.bfloat16)
        agg_scr[...] = jnp.zeros_like(agg_scr)

    # --- slice the resident index strips for this edge block (no per-step DMA) ---
    eoff = pl.multiple_of(eblk * tile_e, tile_e)
    dst_s = dst_sub_ref[pl.ds(eoff, tile_e), :]          # (Te, 1) sublane-major
    src_s = src_sub_ref[pl.ds(eoff, tile_e), :]          # (Te, 1)
    dst_l = dst_lane_ref[:, pl.ds(eoff, tile_e)]         # (1, Te) lane-major

    # --- 0/1 gather / scatter masks built in-kernel (VPU filler under the MXU) ---
    e_iota = jax.lax.broadcasted_iota(jnp.int32, (tile_e, n_nodes), 1)
    gdst = (e_iota == dst_s).astype(jnp.bfloat16)        # (Te, N) gather x_i
    gsrc = (e_iota == src_s).astype(jnp.bfloat16)        # (Te, N) gather x_j
    n_iota = jax.lax.broadcasted_iota(jnp.int32, (n_nodes, tile_e), 0)
    scat = (n_iota == dst_l).astype(jnp.bfloat16)        # (N, Te) direct scatter mask

    # --- fused message MLP: z = [f | s] in one 256-wide accumulation ---
    pi = p_scr[:, :2 * f_pad]                            # (N, 2Fp) = x @ [Wf_i|Ws_i]
    pj = p_scr[:, 2 * f_pad:]                            # (N, 2Fp) = x @ [Wf_j|Ws_j]
    z = (jnp.dot(gdst, pi, preferred_element_type=jnp.float32)
         + jnp.dot(gsrc, pj, preferred_element_type=jnp.float32)
         + jnp.dot(ea_ref[...], wedge_ref[0], preferred_element_type=jnp.float32)
         + bfs_ref[0])                                   # (Te, 2Fp) f32
    f = z[:, :f_pad]
    s = z[:, f_pad:]
    m = jax.nn.sigmoid(f) * _softplus(s)                 # (Te, Fp) f32

    # --- scatter-add: plain jnp.dot with the (N, Te) mask (padded edges: dst=-1
    #     -> all-zero column -> inert) ---
    agg_scr[...] += jnp.dot(scat, m.astype(jnp.bfloat16),
                            preferred_element_type=jnp.float32)

    # --- finalize layer: residual + BatchNorm (training stats, biased var) ---
    @pl.when(eblk == n_eblk - 1)
    def _():
        x_new = agg_scr[...] + x_scr[...]
        mean = jnp.mean(x_new, axis=0, keepdims=True)
        var = jnp.mean((x_new - mean) ** 2, axis=0, keepdims=True)
        x_bn = (x_new - mean) * jax.lax.rsqrt(var + BN_EPS)
        x_bn = x_bn * gamma_ref[0] + beta_ref[0]         # padded cols * 0 -> 0
        x_scr[...] = x_bn

        # --- last layer: global_mean_pool + projection head ---
        @pl.when(layer == n_layer - 1)
        def _():
            n_graphs = out_ref.shape[0]
            g_iota = jax.lax.broadcasted_iota(jnp.int32, (n_graphs, n_nodes), 0)
            pmask = (g_iota == batch_ref[...])           # (G, N) bool
            counts = jnp.maximum(
                jnp.sum(pmask.astype(jnp.float32), axis=1, keepdims=True), 1.0)
            g_sum = jnp.dot(pmask.astype(jnp.bfloat16), x_bn.astype(jnp.bfloat16),
                            preferred_element_type=jnp.float32)   # (G, Fp)
            g = g_sum / counts                            # mean pool, f32

            h = jnp.dot(g.astype(jnp.bfloat16), w1_ref[...],
                        preferred_element_type=jnp.float32) + b1_ref[...]
            h = jnp.where(h > 0, h, LEAKY_SLOPE * h)      # LeakyReLU, f32
            o = jnp.dot(h.astype(jnp.bfloat16), w2_ref[...],
                        preferred_element_type=jnp.float32) + b2_ref[...]
            out_ref[...] = o.astype(out_ref.dtype)


def xavier_uniform(key, fan_in, fan_out):
    bound = (6.0 / (fan_in + fan_out)) ** 0.5
    return jax.random.uniform(key, (fan_in, fan_out), jnp.float32, -bound, bound)


def make_params(key, feat_dim, edge_dim):
    z_dim = 2 * feat_dim + edge_dim
    keys = jax.random.split(key, 2 * NUM_LAYERS + 2)
    wf = jnp.stack([xavier_uniform(keys[l], z_dim, feat_dim) for l in range(NUM_LAYERS)])
    ws = jnp.stack([xavier_uniform(keys[NUM_LAYERS + l], z_dim, feat_dim)
                    for l in range(NUM_LAYERS)])
    bf = jnp.zeros((NUM_LAYERS, 1, feat_dim), jnp.float32)   # init_emb: bias -> 0
    bs = jnp.zeros((NUM_LAYERS, 1, feat_dim), jnp.float32)
    gamma = jnp.ones((NUM_LAYERS, 1, feat_dim), jnp.float32)  # BatchNorm default
    beta = jnp.zeros((NUM_LAYERS, 1, feat_dim), jnp.float32)
    w1 = xavier_uniform(keys[-2], feat_dim, feat_dim)
    w2 = xavier_uniform(keys[-1], feat_dim, feat_dim)
    b1 = jnp.zeros((1, feat_dim), jnp.float32)
    b2 = jnp.zeros((1, feat_dim), jnp.float32)
    return dict(wf=wf, bf=bf, ws=ws, bs=bs, gamma=gamma, beta=beta,
                w1=w1, b1=b1, w2=w2, b2=b2)


def simclr_forward(x, edge_index, edge_attr, batch, num_graphs, params, *, tile_e=256):
    """x: (N, F) float; edge_index: (2, E) int32 (row0 = src j, row1 = dst i);
    edge_attr: (E, D); batch: (N,) int32 graph id per node."""
    n_nodes, feat_dim = x.shape
    n_edges, edge_dim = edge_attr.shape

    # tile_e must be a lane multiple so in-kernel pl.ds offsets stay 128-aligned.
    tile_e = max(128, _round_up(tile_e, 128))

    f_pad = _round_up(feat_dim, 128)
    d_pad = _round_up(edge_dim, 128)
    e_pad = _round_up(n_edges, tile_e)
    n_eblk = e_pad // tile_e
    F, D, L = feat_dim, edge_dim, NUM_LAYERS

    # --- index strips, resident in VMEM (padded edges get -1 => inert) ---
    src = edge_index[0].astype(jnp.int32)
    dst = edge_index[1].astype(jnp.int32)
    src_pad = jnp.full((e_pad,), -1, jnp.int32).at[:n_edges].set(src)
    dst_pad = jnp.full((e_pad,), -1, jnp.int32).at[:n_edges].set(dst)
    src_sub = src_pad.reshape(e_pad, 1)       # sublane-major, for (Te,N) gather masks
    dst_sub = dst_pad.reshape(e_pad, 1)
    dst_lane = dst_pad.reshape(1, e_pad)      # lane-major, for the (N,Te) scatter mask
    batch_p = batch.astype(jnp.int32).reshape(1, n_nodes)

    # --- bf16, lane-padded activations ---
    x_p = jnp.zeros((n_nodes, f_pad), jnp.bfloat16).at[:, :F].set(x.astype(jnp.bfloat16))
    ea_p = jnp.zeros((e_pad, d_pad), jnp.bfloat16).at[:n_edges, :D].set(
        edge_attr.astype(jnp.bfloat16))

    # --- fused, zero-padded weights:
    #     wnode = [Wf_i | Ws_i | Wf_j | Ws_j]  (L, Fp, 4*Fp)
    #     wedge = [Wf_e | Ws_e]                (L, Dp, 2*Fp)
    #     bfs   = [bf   | bs]                  (L, 1,  2*Fp)
    wf, ws = params["wf"], params["ws"]        # (L, 2F+D, F)
    wnode = jnp.zeros((L, f_pad, 4 * f_pad), jnp.bfloat16)
    wnode = wnode.at[:, :F, 0 * f_pad:0 * f_pad + F].set(wf[:, :F, :].astype(jnp.bfloat16))
    wnode = wnode.at[:, :F, 1 * f_pad:1 * f_pad + F].set(ws[:, :F, :].astype(jnp.bfloat16))
    wnode = wnode.at[:, :F, 2 * f_pad:2 * f_pad + F].set(wf[:, F:2 * F, :].astype(jnp.bfloat16))
    wnode = wnode.at[:, :F, 3 * f_pad:3 * f_pad + F].set(ws[:, F:2 * F, :].astype(jnp.bfloat16))
    wedge = jnp.zeros((L, d_pad, 2 * f_pad), jnp.bfloat16)
    wedge = wedge.at[:, :D, :F].set(wf[:, 2 * F:, :].astype(jnp.bfloat16))
    wedge = wedge.at[:, :D, f_pad:f_pad + F].set(ws[:, 2 * F:, :].astype(jnp.bfloat16))

    bfs = jnp.zeros((L, 1, 2 * f_pad), jnp.float32)
    bfs = bfs.at[:, :, :F].set(params["bf"].astype(jnp.float32))
    bfs = bfs.at[:, :, f_pad:f_pad + F].set(params["bs"].astype(jnp.float32))
    gamma = jnp.zeros((L, 1, f_pad), jnp.float32).at[:, :, :F].set(
        params["gamma"].astype(jnp.float32))   # padded cols = 0 -> kills padded features
    beta = jnp.zeros((L, 1, f_pad), jnp.float32).at[:, :, :F].set(
        params["beta"].astype(jnp.float32))

    w1 = jnp.zeros((f_pad, f_pad), jnp.bfloat16).at[:F, :F].set(
        params["w1"].astype(jnp.bfloat16))
    w2 = jnp.zeros((f_pad, f_pad), jnp.bfloat16).at[:F, :F].set(
        params["w2"].astype(jnp.bfloat16))
    b1 = jnp.zeros((1, f_pad), jnp.float32).at[:, :F].set(params["b1"].astype(jnp.float32))
    b2 = jnp.zeros((1, f_pad), jnp.float32).at[:, :F].set(params["b2"].astype(jnp.float32))

    grid = (NUM_LAYERS, n_eblk)

    grid_spec = pltpu.PrefetchScalarGridSpec(
        num_scalar_prefetch=0,
        grid=grid,
        in_specs=[
            pl.BlockSpec((e_pad, 1), lambda l, e: (0, 0)),               # src (resident)
            pl.BlockSpec((e_pad, 1), lambda l, e: (0, 0)),               # dst (resident)
            pl.BlockSpec((1, e_pad), lambda l, e: (0, 0)),               # dst lane-major
            pl.BlockSpec((1, n_nodes), lambda l, e: (0, 0)),             # batch
            pl.BlockSpec((n_nodes, f_pad), lambda l, e: (0, 0)),         # x
            pl.BlockSpec((tile_e, d_pad), lambda l, e: (e, 0)),          # edge_attr
            pl.BlockSpec((1, f_pad, 4 * f_pad), lambda l, e: (l, 0, 0)),  # wnode
            pl.BlockSpec((1, d_pad, 2 * f_pad), lambda l, e: (l, 0, 0)),  # wedge
            pl.BlockSpec((1, 1, 2 * f_pad), lambda l, e: (l, 0, 0)),      # [bf|bs]
            pl.BlockSpec((1, 1, f_pad), lambda l, e: (l, 0, 0)),          # gamma
            pl.BlockSpec((1, 1, f_pad), lambda l, e: (l, 0, 0)),          # beta
            pl.BlockSpec((f_pad, f_pad), lambda l, e: (0, 0)),            # w1
            pl.BlockSpec((1, f_pad), lambda l, e: (0, 0)),                # b1
            pl.BlockSpec((f_pad, f_pad), lambda l, e: (0, 0)),            # w2
            pl.BlockSpec((1, f_pad), lambda l, e: (0, 0)),                # b2
        ],
        out_specs=pl.BlockSpec((num_graphs, f_pad), lambda l, e: (0, 0)),
        scratch_shapes=[
            pltpu.VMEM((n_nodes, f_pad), jnp.float32),        # x carry (f32)
            pltpu.VMEM((n_nodes, f_pad), jnp.float32),        # agg accumulator (f32)
            pltpu.VMEM((n_nodes, 4 * f_pad), jnp.bfloat16),   # merged x@W precompute
        ],
    )

    out_padded = pl.pallas_call(
        simclr_kernel,
        out_shape=jax.ShapeDtypeStruct((num_graphs, f_pad), jnp.float32),
        grid_spec=grid_spec,
        compiler_params=pltpu.CompilerParams(
            dimension_semantics=("arbitrary", "arbitrary"),   # both axes carry state
            vmem_limit_bytes=32 * 1024 * 1024),               # explicit v7x-safe budget
    )(src_sub, dst_sub, dst_lane, batch_p, x_p, ea_p,
      wnode, wedge, bfs, gamma, beta, w1, b1, w2, b2)

    return out_padded[:, :feat_dim]


if __name__ == "__main__":
    key = jax.random.PRNGKey(0)
    k_x, k_ea, k_src, k_dst, k_w = jax.random.split(key, 5)

    F = 20   # input_dim = output_dim
    D = 25   # num_edge_attr
    N = 12   # total nodes
    E = 24   # total edges
    G = 3    # graphs in the batch

    x = jax.random.normal(k_x, (N, F), jnp.float32)
    edge_attr = jax.random.normal(k_ea, (E, D), jnp.float32)

    # keep edges within graphs: 4 nodes per graph
    batch = jnp.repeat(jnp.arange(G, dtype=jnp.int32), N // G)            # (N,)
    base = jnp.repeat(jnp.arange(G, dtype=jnp.int32) * (N // G), E // G)  # (E,)
    src = base + jax.random.randint(k_src, (E,), 0, N // G, jnp.int32)
    dst = base + jax.random.randint(k_dst, (E,), 0, N // G, jnp.int32)
    edge_index = jnp.stack([src, dst])                                    # (2, E)

    params = make_params(k_w, F, D)

    y = simclr_forward(x, edge_index, edge_attr, batch, G, params)
    jax.block_until_ready(y)
    assert y.shape == (G, F)
    print("KERNEL_OK")
</pallas_src>

<mosaic_0001>
module attributes {stable_mosaic.version = 11 : i64} {
  func.func @simclr_kernel(%arg0: i32, %arg1: i32, %arg2: memref<256x1xi32, #tpu.memory_space<vmem>>, %arg3: memref<256x1xi32, #tpu.memory_space<vmem>>, %arg4: memref<1x256xi32, #tpu.memory_space<vmem>>, %arg5: memref<1x12xi32, #tpu.memory_space<vmem>>, %arg6: memref<12x128xbf16, #tpu.memory_space<vmem>>, %arg7: memref<256x128xbf16, #tpu.memory_space<vmem>>, %arg8: memref<1x128x512xbf16, #tpu.memory_space<vmem>>, %arg9: memref<1x128x256xbf16, #tpu.memory_space<vmem>>, %arg10: memref<1x1x256xf32, #tpu.memory_space<vmem>>, %arg11: memref<1x1x128xf32, #tpu.memory_space<vmem>>, %arg12: memref<1x1x128xf32, #tpu.memory_space<vmem>>, %arg13: memref<128x128xbf16, #tpu.memory_space<vmem>>, %arg14: memref<1x128xf32, #tpu.memory_space<vmem>>, %arg15: memref<128x128xbf16, #tpu.memory_space<vmem>>, %arg16: memref<1x128xf32, #tpu.memory_space<vmem>>, %arg17: memref<3x128xf32, #tpu.memory_space<vmem>>, %arg18: memref<12x128xf32, #tpu.memory_space<vmem>>, %arg19: memref<12x128xf32, #tpu.memory_space<vmem>>, %arg20: memref<12x512xbf16, #tpu.memory_space<vmem>>) attributes {dimension_semantics = [#tpu.dimension_semantics<arbitrary>, #tpu.dimension_semantics<arbitrary>], iteration_bounds = array<i64: 2, 1>, scalar_prefetch = 0 : i64, scratch_operands = 3 : i64, tpu.core_type = #tpu.core_type<tc>, window_params = [{pipeline_mode = #tpu.pipeline_mode<synchronous>, transform_indices = @transform_0, window_bounds = array<i64: 256, 1>}, {pipeline_mode = #tpu.pipeline_mode<synchronous>, transform_indices = @transform_1, window_bounds = array<i64: 256, 1>}, {pipeline_mode = #tpu.pipeline_mode<synchronous>, transform_indices = @transform_2, window_bounds = array<i64: 1, 256>}, {pipeline_mode = #tpu.pipeline_mode<synchronous>, transform_indices = @transform_3, window_bounds = array<i64: 1, 12>}, {pipeline_mode = #tpu.pipeline_mode<synchronous>, transform_indices = @transform_4, window_bounds = array<i64: 12, 128>}, {transform_indices = @transform_5, window_bounds = array<i64: 256, 128>}, {transform_indices = @transform_6, window_bounds = array<i64: 1, 128, 512>}, {transform_indices = @transform_7, window_bounds = array<i64: 1, 128, 256>}, {transform_indices = @transform_8, window_bounds = array<i64: 1, 1, 256>}, {transform_indices = @transform_9, window_bounds = array<i64: 1, 1, 128>}, {transform_indices = @transform_10, window_bounds = array<i64: 1, 1, 128>}, {pipeline_mode = #tpu.pipeline_mode<synchronous>, transform_indices = @transform_11, window_bounds = array<i64: 128, 128>}, {pipeline_mode = #tpu.pipeline_mode<synchronous>, transform_indices = @transform_12, window_bounds = array<i64: 1, 128>}, {pipeline_mode = #tpu.pipeline_mode<synchronous>, transform_indices = @transform_13, window_bounds = array<i64: 128, 128>}, {pipeline_mode = #tpu.pipeline_mode<synchronous>, transform_indices = @transform_14, window_bounds = array<i64: 1, 128>}, {pipeline_mode = #tpu.pipeline_mode<synchronous>, transform_indices = @transform_15, window_bounds = array<i64: 3, 128>}]} {
    %c0_i32 = arith.constant 0 : i32
    %0 = arith.cmpi eq, %arg0, %c0_i32 : i32
    %c0_i32_0 = arith.constant 0 : i32
    %1 = arith.cmpi eq, %arg1, %c0_i32_0 : i32
    %2 = arith.andi %0, %1 : i1
    %3 = arith.extui %2 : i1 to i32
    %c0_i32_1 = arith.constant 0 : i32
    %4 = arith.cmpi ne, %3, %c0_i32_1 : i32
    scf.if %4 {
      %c0_29 = arith.constant 0 : index
      %c0_30 = arith.constant 0 : index
      %70 = vector.load %arg6[%c0_29, %c0_30] : memref<12x128xbf16, #tpu.memory_space<vmem>>, vector<12x128xbf16>
      %71 = arith.extf %70 : vector<12x128xbf16> to vector<12x128xf32>
      %c0_31 = arith.constant 0 : index
      %c0_32 = arith.constant 0 : index
      %72 = vector.load %arg18[%c0_31, %c0_32] : memref<12x128xf32, #tpu.memory_space<vmem>>, vector<12x128xf32>
      tpu.vector_store %arg18[%c0_31, %c0_32], %71 {strides = array<i32>} : memref<12x128xf32, #tpu.memory_space<vmem>>, vector<12x128xf32>,
    } else {
    }
    %c0_i32_2 = arith.constant 0 : i32
    %5 = arith.cmpi eq, %arg1, %c0_i32_2 : i32
    %6 = arith.extui %5 : i1 to i32
    %c0_i32_3 = arith.constant 0 : i32
    %7 = arith.cmpi ne, %6, %c0_i32_3 : i32
    scf.if %7 {
      %c0_29 = arith.constant 0 : index
      %c0_30 = arith.constant 0 : index
      %70 = vector.load %arg18[%c0_29, %c0_30] : memref<12x128xf32, #tpu.memory_space<vmem>>, vector<12x128xf32>
      %71 = arith.truncf %70 : vector<12x128xf32> to vector<12x128xbf16>
      %c0_31 = arith.constant 0 : index
      %c0_32 = arith.constant 0 : index
      %c0_33 = arith.constant 0 : index
      %72 = vector.load %arg8[%c0_31, %c0_32, %c0_33] : memref<1x128x512xbf16, #tpu.memory_space<vmem>>, vector<1x128x512xbf16>
      %73 = vector.shape_cast %72 : vector<1x128x512xbf16> to vector<128x512xbf16>
      %cst_34 = arith.constant dense<0.000000e+00> : vector<12x512xf32>
      %74 = tpu.matmul %71, %73, %cst_34 {dimension_numbers = #tpu.dot_dimension_numbers<[1], [0], [0], [1], [0, 0, 1, 1], [], []>} : vector<12x128xbf16>, vector<128x512xbf16>, vector<12x512xf32> -> vector<12x512xf32>
      %75 = arith.truncf %74 : vector<12x512xf32> to vector<12x512xbf16>
      %c0_35 = arith.constant 0 : index
      %c0_36 = arith.constant 0 : index
      %76 = vector.load %arg20[%c0_35, %c0_36] : memref<12x512xbf16, #tpu.memory_space<vmem>>, vector<12x512xbf16>
      tpu.vector_store %arg20[%c0_35, %c0_36], %75 {strides = array<i32>} : memref<12x512xbf16, #tpu.memory_space<vmem>>, vector<12x512xbf16>,
      %cst_37 = arith.constant 0.000000e+00 : f32
      %77 = vector.broadcast %cst_37 : f32 to vector<12x128xf32>
      %c0_38 = arith.constant 0 : index
      %c0_39 = arith.constant 0 : index
      %78 = vector.load %arg19[%c0_38, %c0_39] : memref<12x128xf32, #tpu.memory_space<vmem>>, vector<12x128xf32>
      tpu.vector_store %arg19[%c0_38, %c0_39], %77 {strides = array<i32>} : memref<12x128xf32, #tpu.memory_space<vmem>>, vector<12x128xf32>,
    } else {
    }
    %c256_i32 = arith.constant 256 : i32
    %8 = arith.muli %arg1, %c256_i32 : i32
    %9 = tpu.assume_multiple %8, 256 : i32
    %10 = arith.index_cast %9 : i32 to index
    %c0 = arith.constant 0 : index
    %11 = vector.load %arg3[%10, %c0] : memref<256x1xi32, #tpu.memory_space<vmem>>, vector<256x1xi32>
    %12 = arith.index_cast %9 : i32 to index
    %c0_4 = arith.constant 0 : index
    %13 = vector.load %arg2[%12, %c0_4] : memref<256x1xi32, #tpu.memory_space<vmem>>, vector<256x1xi32>
    %c0_5 = arith.constant 0 : index
    %14 = arith.index_cast %9 : i32 to index
    %15 = vector.load %arg4[%c0_5, %14] : memref<1x256xi32, #tpu.memory_space<vmem>>, vector<1x256xi32>
    %16 = tpu.iota {dimensions = array<i32: 1>} : vector<256x12xi32>
    %17 = vector.broadcast %11 : vector<256x1xi32> to vector<256x12xi32>
    %18 = arith.cmpi eq, %16, %17 : vector<256x12xi32>
    %19 = arith.extui %18 : vector<256x12xi1> to vector<256x12xi32>
    %20 = arith.sitofp %19 : vector<256x12xi32> to vector<256x12xf32>
    %21 = arith.truncf %20 : vector<256x12xf32> to vector<256x12xbf16>
    %22 = vector.broadcast %13 : vector<256x1xi32> to vector<256x12xi32>
    %23 = arith.cmpi eq, %16, %22 : vector<256x12xi32>
    %24 = arith.extui %23 : vector<256x12xi1> to vector<256x12xi32>
    %25 = arith.sitofp %24 : vector<256x12xi32> to vector<256x12xf32>
    %26 = arith.truncf %25 : vector<256x12xf32> to vector<256x12xbf16>
    %27 = tpu.iota {dimensions = array<i32: 0>} : vector<12x256xi32>
    %28 = vector.broadcast %15 : vector<1x256xi32> to vector<12x256xi32>
    %29 = arith.cmpi eq, %27, %28 : vector<12x256xi32>
    %30 = arith.extui %29 : vector<12x256xi1> to vector<12x256xi32>
    %31 = arith.sitofp %30 : vector<12x256xi32> to vector<12x256xf32>
    %32 = arith.truncf %31 : vector<12x256xf32> to vector<12x256xbf16>
    %c0_6 = arith.constant 0 : index
    %c0_7 = arith.constant 0 : index
    %33 = vector.load %arg20[%c0_6, %c0_7] : memref<12x512xbf16, #tpu.memory_space<vmem>>, vector<12x256xbf16>
    %c0_8 = arith.constant 0 : index
    %c256 = arith.constant 256 : index
    %34 = vector.load %arg20[%c0_8, %c256] : memref<12x512xbf16, #tpu.memory_space<vmem>>, vector<12x256xbf16>
    %cst = arith.constant dense<0.000000e+00> : vector<256x256xf32>
    %35 = tpu.matmul %21, %33, %cst {dimension_numbers = #tpu.dot_dimension_numbers<[1], [0], [0], [1], [0, 0, 1, 1], [], []>} : vector<256x12xbf16>, vector<12x256xbf16>, vector<256x256xf32> -> vector<256x256xf32>
    %cst_9 = arith.constant dense<0.000000e+00> : vector<256x256xf32>
    %36 = tpu.matmul %26, %34, %cst_9 {dimension_numbers = #tpu.dot_dimension_numbers<[1], [0], [0], [1], [0, 0, 1, 1], [], []>} : vector<256x12xbf16>, vector<12x256xbf16>, vector<256x256xf32> -> vector<256x256xf32>
    %37 = arith.addf %35, %36 : vector<256x256xf32>
    %c0_10 = arith.constant 0 : index
    %c0_11 = arith.constant 0 : index
    %38 = vector.load %arg7[%c0_10, %c0_11] : memref<256x128xbf16, #tpu.memory_space<vmem>>, vector<256x128xbf16>
    %c0_12 = arith.constant 0 : index
    %c0_13 = arith.constant 0 : index
    %c0_14 = arith.constant 0 : index
    %39 = vector.load %arg9[%c0_12, %c0_13, %c0_14] : memref<1x128x256xbf16, #tpu.memory_space<vmem>>, vector<1x128x256xbf16>
    %40 = vector.shape_cast %39 : vector<1x128x256xbf16> to vector<128x256xbf16>
    %cst_15 = arith.constant dense<0.000000e+00> : vector<256x256xf32>
    %41 = tpu.matmul %38, %40, %cst_15 {dimension_numbers = #tpu.dot_dimension_numbers<[1], [0], [0], [1], [0, 0, 1, 1], [], []>} : vector<256x128xbf16>, vector<128x256xbf16>, vector<256x256xf32> -> vector<256x256xf32>
    %42 = arith.addf %37, %41 : vector<256x256xf32>
    %c0_16 = arith.constant 0 : index
    %c0_17 = arith.constant 0 : index
    %c0_18 = arith.constant 0 : index
    %43 = vector.load %arg10[%c0_16, %c0_17, %c0_18] : memref<1x1x256xf32, #tpu.memory_space<vmem>>, vector<1x1x256xf32>
    %44 = vector.shape_cast %43 : vector<1x1x256xf32> to vector<1x256xf32>
    %45 = vector.broadcast %44 : vector<1x256xf32> to vector<256x256xf32>
    %46 = arith.addf %42, %45 : vector<256x256xf32>
    %47 = vector.extract_strided_slice %46 {offsets = [0, 0], sizes = [256, 128], strides = [1, 1]} : vector<256x256xf32> to vector<256x128xf32>
    %48 = vector.extract_strided_slice %46 {offsets = [0, 128], sizes = [256, 128], strides = [1, 1]} : vector<256x256xf32> to vector<256x128xf32>
    %49 = arith.negf %47 : vector<256x128xf32>
    %50 = math.exp %49 : vector<256x128xf32>
    %cst_19 = arith.constant 1.000000e+00 : f32
    %51 = vector.broadcast %cst_19 : f32 to vector<256x128xf32>
    %52 = arith.addf %51, %50 : vector<256x128xf32>
    %53 = arith.divf %51, %52 : vector<256x128xf32>
    %cst_20 = arith.constant 2.000000e+01 : f32
    %54 = vector.broadcast %cst_20 : f32 to vector<256x128xf32>
    %55 = arith.cmpf ogt, %48, %54 : vector<256x128xf32>
    %cst_21 = arith.constant 2.000000e+01 : f32
    %56 = vector.broadcast %cst_21 : f32 to vector<256x128xf32>
    %57 = arith.minimumf %48, %56 : vector<256x128xf32>
    %58 = math.exp %57 : vector<256x128xf32>
    %59 = math.log1p %58 : vector<256x128xf32>
    %60 = arith.select %55, %48, %59 : vector<256x128xi1>, vector<256x128xf32>
    %61 = arith.mulf %53, %60 : vector<256x128xf32>
    %c0_22 = arith.constant 0 : index
    %c0_23 = arith.constant 0 : index
    %62 = vector.load %arg19[%c0_22, %c0_23] : memref<12x128xf32, #tpu.memory_space<vmem>>, vector<12x128xf32>
    %63 = arith.truncf %61 : vector<256x128xf32> to vector<256x128xbf16>
    %cst_24 = arith.constant dense<0.000000e+00> : vector<12x128xf32>
    %64 = tpu.matmul %32, %63, %cst_24 {dimension_numbers = #tpu.dot_dimension_numbers<[1], [0], [0], [1], [0, 0, 1, 1], [], []>} : vector<12x256xbf16>, vector<256x128xbf16>, vector<12x128xf32> -> vector<12x128xf32>
    %65 = arith.addf %62, %64 : vector<12x128xf32>
    %c0_25 = arith.constant 0 : index
    %c0_26 = arith.constant 0 : index
    %66 = vector.load %arg19[%c0_25, %c0_26] : memref<12x128xf32, #tpu.memory_space<vmem>>, vector<12x128xf32>
    tpu.vector_store %arg19[%c0_25, %c0_26], %65 {strides = array<i32>} : memref<12x128xf32, #tpu.memory_space<vmem>>, vector<12x128xf32>,
    %c0_i32_27 = arith.constant 0 : i32
    %67 = arith.cmpi eq, %arg1, %c0_i32_27 : i32
    %68 = arith.extui %67 : i1 to i32
    %c0_i32_28 = arith.constant 0 : i32
    %69 = arith.cmpi ne, %68, %c0_i32_28 : i32
    scf.if %69 {
      %c0_29 = arith.constant 0 : index
      %c0_30 = arith.constant 0 : index
      %70 = vector.load %arg19[%c0_29, %c0_30] : memref<12x128xf32, #tpu.memory_space<vmem>>, vector<12x128xf32>
      %c0_31 = arith.constant 0 : index
      %c0_32 = arith.constant 0 : index
      %71 = vector.load %arg18[%c0_31, %c0_32] : memref<12x128xf32, #tpu.memory_space<vmem>>, vector<12x128xf32>
      %72 = arith.addf %70, %71 : vector<12x128xf32>
      %cst_33 = arith.constant dense<0.000000e+00> : vector<128xf32>
      %73 = vector.multi_reduction <add>, %72, %cst_33 [0] : vector<12x128xf32> to vector<128xf32>
      %74 = vector.shape_cast %73 : vector<128xf32> to vector<1x128xf32>
      %cst_34 = arith.constant 1.200000e+01 : f32
      %75 = vector.broadcast %cst_34 : f32 to vector<1x128xf32>
      %76 = arith.divf %74, %75 : vector<1x128xf32>
      %77 = vector.broadcast %76 : vector<1x128xf32> to vector<12x128xf32>
      %78 = arith.subf %72, %77 : vector<12x128xf32>
      %79 = arith.mulf %78, %78 : vector<12x128xf32>
      %cst_35 = arith.constant dense<0.000000e+00> : vector<128xf32>
      %80 = vector.multi_reduction <add>, %79, %cst_35 [0] : vector<12x128xf32> to vector<128xf32>
      %81 = vector.shape_cast %80 : vector<128xf32> to vector<1x128xf32>
      %cst_36 = arith.constant 1.200000e+01 : f32
      %82 = vector.broadcast %cst_36 : f32 to vector<1x128xf32>
      %83 = arith.divf %81, %82 : vector<1x128xf32>
      %84 = vector.broadcast %76 : vector<1x128xf32> to vector<12x128xf32>
      %85 = arith.subf %72, %84 : vector<12x128xf32>
      %cst_37 = arith.constant 9.99999974E-6 : f32
      %86 = vector.broadcast %cst_37 : f32 to vector<1x128xf32>
      %87 = arith.addf %83, %86 : vector<1x128xf32>
      %88 = math.rsqrt %87 : vector<1x128xf32>
      %89 = vector.broadcast %88 : vector<1x128xf32> to vector<12x128xf32>
      %90 = arith.mulf %85, %89 : vector<12x128xf32>
      %c0_38 = arith.constant 0 : index
      %c0_39 = arith.constant 0 : index
      %c0_40 = arith.constant 0 : index
      %91 = vector.load %arg11[%c0_38, %c0_39, %c0_40] : memref<1x1x128xf32, #tpu.memory_space<vmem>>, vector<1x1x128xf32>
      %92 = vector.shape_cast %91 : vector<1x1x128xf32> to vector<1x128xf32>
      %93 = vector.broadcast %92 : vector<1x128xf32> to vector<12x128xf32>
      %94 = arith.mulf %90, %93 : vector<12x128xf32>
      %c0_41 = arith.constant 0 : index
      %c0_42 = arith.constant 0 : index
      %c0_43 = arith.constant 0 : index
      %95 = vector.load %arg12[%c0_41, %c0_42, %c0_43] : memref<1x1x128xf32, #tpu.memory_space<vmem>>, vector<1x1x128xf32>
      %96 = vector.shape_cast %95 : vector<1x1x128xf32> to vector<1x128xf32>
      %97 = vector.broadcast %96 : vector<1x128xf32> to vector<12x128xf32>
      %98 = arith.addf %94, %97 : vector<12x128xf32>
      %c0_44 = arith.constant 0 : index
      %c0_45 = arith.constant 0 : index
      %99 = vector.load %arg18[%c0_44, %c0_45] : memref<12x128xf32, #tpu.memory_space<vmem>>, vector<12x128xf32>
      tpu.vector_store %arg18[%c0_44, %c0_45], %98 {strides = array<i32>} : memref<12x128xf32, #tpu.memory_space<vmem>>, vector<12x128xf32>,
      %c1_i32 = arith.constant 1 : i32
      %100 = arith.cmpi eq, %arg0, %c1_i32 : i32
      %101 = arith.extui %100 : i1 to i32
      %c0_i32_46 = arith.constant 0 : i32
      %102 = arith.cmpi ne, %101, %c0_i32_46 : i32
      scf.if %102 {
        %103 = tpu.iota {dimensions = array<i32: 0>} : vector<3x12xi32>
        %c0_47 = arith.constant 0 : index
        %c0_48 = arith.constant 0 : index
        %104 = vector.load %arg5[%c0_47, %c0_48] : memref<1x12xi32, #tpu.memory_space<vmem>>, vector<1x12xi32>
        %105 = vector.broadcast %104 : vector<1x12xi32> to vector<3x12xi32>
        %106 = arith.cmpi eq, %103, %105 : vector<3x12xi32>
        %107 = arith.extui %106 : vector<3x12xi1> to vector<3x12xi32>
        %108 = arith.sitofp %107 : vector<3x12xi32> to vector<3x12xf32>
        %cst_49 = arith.constant dense<0.000000e+00> : vector<3xf32>
        %109 = vector.multi_reduction <add>, %108, %cst_49 [1] : vector<3x12xf32> to vector<3xf32>
        %110 = vector.shape_cast %109 : vector<3xf32> to vector<3x1xf32>
        %cst_50 = arith.constant 1.000000e+00 : f32
        %111 = vector.broadcast %cst_50 : f32 to vector<3x1xf32>
        %112 = arith.maximumf %110, %111 : vector<3x1xf32>
        %113 = arith.extui %106 : vector<3x12xi1> to vector<3x12xi32>
        %114 = arith.sitofp %113 : vector<3x12xi32> to vector<3x12xf32>
        %115 = arith.truncf %114 : vector<3x12xf32> to vector<3x12xbf16>
        %116 = arith.truncf %98 : vector<12x128xf32> to vector<12x128xbf16>
        %cst_51 = arith.constant dense<0.000000e+00> : vector<3x128xf32>
        %117 = tpu.matmul %115, %116, %cst_51 {dimension_numbers = #tpu.dot_dimension_numbers<[1], [0], [0], [1], [0, 0, 1, 1], [], []>} : vector<3x12xbf16>, vector<12x128xbf16>, vector<3x128xf32> -> vector<3x128xf32>
        %118 = vector.broadcast %112 : vector<3x1xf32> to vector<3x128xf32>
        %119 = arith.divf %117, %118 : vector<3x128xf32>
        %120 = arith.truncf %119 : vector<3x128xf32> to vector<3x128xbf16>
        %c0_52 = arith.constant 0 : index
        %c0_53 = arith.constant 0 : index
        %121 = vector.load %arg13[%c0_52, %c0_53] : memref<128x128xbf16, #tpu.memory_space<vmem>>, vector<128x128xbf16>
        %cst_54 = arith.constant dense<0.000000e+00> : vector<3x128xf32>
        %122 = tpu.matmul %120, %121, %cst_54 {dimension_numbers = #tpu.dot_dimension_numbers<[1], [0], [0], [1], [0, 0, 1, 1], [], []>} : vector<3x128xbf16>, vector<128x128xbf16>, vector<3x128xf32> -> vector<3x128xf32>
        %c0_55 = arith.constant 0 : index
        %c0_56 = arith.constant 0 : index
        %123 = vector.load %arg14[%c0_55, %c0_56] : memref<1x128xf32, #tpu.memory_space<vmem>>, vector<1x128xf32>
        %124 = vector.broadcast %123 : vector<1x128xf32> to vector<3x128xf32>
        %125 = arith.addf %122, %124 : vector<3x128xf32>
        %cst_57 = arith.constant 0.000000e+00 : f32
        %126 = vector.broadcast %cst_57 : f32 to vector<3x128xf32>
        %127 = arith.cmpf ogt, %125, %126 : vector<3x128xf32>
        %cst_58 = arith.constant 0.00999999977 : f32
        %128 = vector.broadcast %cst_58 : f32 to vector<3x128xf32>
        %129 = arith.mulf %128, %125 : vector<3x128xf32>
        %130 = arith.select %127, %125, %129 : vector<3x128xi1>, vector<3x128xf32>
        %131 = arith.truncf %130 : vector<3x128xf32> to vector<3x128xbf16>
        %c0_59 = arith.constant 0 : index
        %c0_60 = arith.constant 0 : index
        %132 = vector.load %arg15[%c0_59, %c0_60] : memref<128x128xbf16, #tpu.memory_space<vmem>>, vector<128x128xbf16>
        %cst_61 = arith.constant dense<0.000000e+00> : vector<3x128xf32>
        %133 = tpu.matmul %131, %132, %cst_61 {dimension_numbers = #tpu.dot_dimension_numbers<[1], [0], [0], [1], [0, 0, 1, 1], [], []>} : vector<3x128xbf16>, vector<128x128xbf16>, vector<3x128xf32> -> vector<3x128xf32>
        %c0_62 = arith.constant 0 : index
        %c0_63 = arith.constant 0 : index
        %134 = vector.load %arg16[%c0_62, %c0_63] : memref<1x128xf32, #tpu.memory_space<vmem>>, vector<1x128xf32>
        %135 = vector.broadcast %134 : vector<1x128xf32> to vector<3x128xf32>
        %136 = arith.addf %133, %135 : vector<3x128xf32>
        %c0_64 = arith.constant 0 : index
        %c0_65 = arith.constant 0 : index
        %137 = vector.load %arg17[%c0_64, %c0_65] : memref<3x128xf32, #tpu.memory_space<vmem>>, vector<3x128xf32>
        tpu.vector_store %arg17[%c0_64, %c0_65], %136 {strides = array<i32>} : memref<3x128xf32, #tpu.memory_space<vmem>>, vector<3x128xf32>,
      } else {
      }
    } else {
    }
    return
  }
  func.func @transform_0(%arg0: i32, %arg1: i32) -> (i32, i32) {
    %c0_i32 = arith.constant 0 : i32
    %c0_i32_0 = arith.constant 0 : i32
    %c0_i32_1 = arith.constant 0 : i32
    return %c0_i32, %c0_i32_0 : i32, i32
  }
  func.func @transform_1(%arg0: i32, %arg1: i32) -> (i32, i32) {
    %c0_i32 = arith.constant 0 : i32
    %c0_i32_0 = arith.constant 0 : i32
    %c0_i32_1 = arith.constant 0 : i32
    return %c0_i32, %c0_i32_0 : i32, i32
  }
  func.func @transform_2(%arg0: i32, %arg1: i32) -> (i32, i32) {
    %c0_i32 = arith.constant 0 : i32
    %c0_i32_0 = arith.constant 0 : i32
    %c0_i32_1 = arith.constant 0 : i32
    return %c0_i32, %c0_i32_0 : i32, i32
  }
  func.func @transform_3(%arg0: i32, %arg1: i32) -> (i32, i32) {
    %c0_i32 = arith.constant 0 : i32
    %c0_i32_0 = arith.constant 0 : i32
    %c0_i32_1 = arith.constant 0 : i32
    return %c0_i32, %c0_i32_0 : i32, i32
  }
  func.func @transform_4(%arg0: i32, %arg1: i32) -> (i32, i32) {
    %c0_i32 = arith.constant 0 : i32
    %c0_i32_0 = arith.constant 0 : i32
    %c0_i32_1 = arith.constant 0 : i32
    return %c0_i32, %c0_i32_0 : i32, i32
  }
  func.func @transform_5(%arg0: i32, %arg1: i32) -> (i32, i32) {
    %c0_i32 = arith.constant 0 : i32
    %c0_i32_0 = arith.constant 0 : i32
    return %arg1, %c0_i32 : i32, i32
  }
  func.func @transform_6(%arg0: i32, %arg1: i32) -> (i32, i32, i32) {
    %c0_i32 = arith.constant 0 : i32
    %c0_i32_0 = arith.constant 0 : i32
    %c0_i32_1 = arith.constant 0 : i32
    return %arg0, %c0_i32, %c0_i32_0 : i32, i32, i32
  }
  func.func @transform_7(%arg0: i32, %arg1: i32) -> (i32, i32, i32) {
    %c0_i32 = arith.constant 0 : i32
    %c0_i32_0 = arith.constant 0 : i32
    %c0_i32_1 = arith.constant 0 : i32
    return %arg0, %c0_i32, %c0_i32_0 : i32, i32, i32
  }
  func.func @transform_8(%arg0: i32, %arg1: i32) -> (i32, i32, i32) {
    %c0_i32 = arith.constant 0 : i32
    %c0_i32_0 = arith.constant 0 : i32
    %c0_i32_1 = arith.constant 0 : i32
    return %arg0, %c0_i32, %c0_i32_0 : i32, i32, i32
  }
  func.func @transform_9(%arg0: i32, %arg1: i32) -> (i32, i32, i32) {
    %c0_i32 = arith.constant 0 : i32
    %c0_i32_0 = arith.constant 0 : i32
    %c0_i32_1 = arith.constant 0 : i32
    return %arg0, %c0_i32, %c0_i32_0 : i32, i32, i32
  }
  func.func @transform_10(%arg0: i32, %arg1: i32) -> (i32, i32, i32) {
    %c0_i32 = arith.constant 0 : i32
    %c0_i32_0 = arith.constant 0 : i32
    %c0_i32_1 = arith.constant 0 : i32
    return %arg0, %c0_i32, %c0_i32_0 : i32, i32, i32
  }
  func.func @transform_11(%arg0: i32, %arg1: i32) -> (i32, i32) {
    %c0_i32 = arith.constant 0 : i32
    %c0_i32_0 = arith.constant 0 : i32
    %c0_i32_1 = arith.constant 0 : i32
    return %c0_i32, %c0_i32_0 : i32, i32
  }
  func.func @transform_12(%arg0: i32, %arg1: i32) -> (i32, i32) {
    %c0_i32 = arith.constant 0 : i32
    %c0_i32_0 = arith.constant 0 : i32
    %c0_i32_1 = arith.constant 0 : i32
    return %c0_i32, %c0_i32_0 : i32, i32
  }
  func.func @transform_13(%arg0: i32, %arg1: i32) -> (i32, i32) {
    %c0_i32 = arith.constant 0 : i32
    %c0_i32_0 = arith.constant 0 : i32
    %c0_i32_1 = arith.constant 0 : i32
    return %c0_i32, %c0_i32_0 : i32, i32
  }
  func.func @transform_14(%arg0: i32, %arg1: i32) -> (i32, i32) {
    %c0_i32 = arith.constant 0 : i32
    %c0_i32_0 = arith.constant 0 : i32
    %c0_i32_1 = arith.constant 0 : i32
    return %c0_i32, %c0_i32_0 : i32, i32
  }
  func.func @transform_15(%arg0: i32, %arg1: i32) -> (i32, i32) {
    %c0_i32 = arith.constant 0 : i32
    %c0_i32_0 = arith.constant 0 : i32
    %c0_i32_1 = arith.constant 0 : i32
    return %c0_i32, %c0_i32_0 : i32, i32
  }
}

</mosaic_0001>

<llo_original>
// kernel: tpu_custom_call.1
$region0: #{tpu_custom_call.1}
  #allocation0 [shape = 'u32[]', space=smem, size = 0x4, offset = 0x4, fixed_abs, tag = 'smem constant byte address 0x4 - core index']
  #allocation1 [shape = 'u32[144,128]{1,0:T(1,128)}', space=vmem, size = 0x12000, scoped, tag = 'internal scratch']
  #allocation2 [shape = 'f32[12,128]{1,0:T(8,128)}', space=vmem, size = 0x2000, scoped, tag = 'scratch operand']
  #allocation3 [shape = 'f32[12,128]{1,0:T(8,128)}', space=vmem, size = 0x2000, scoped, tag = 'scratch operand']
  #allocation4 [shape = 'bf16[12,512]{1,0:T(8,128)(2,1)}', space=vmem, size = 0x4000, scoped, tag = 'scratch operand']
  %s0 = inlined_call_operand.vmem [shape: s32[256,1], index: 0, kind: input, shape index: {}]
  %s1 = inlined_call_operand.vmem [shape: s32[256,1], index: 1, kind: input, shape index: {}]
  %s2 = inlined_call_operand.vmem [shape: s32[1,256], index: 2, kind: input, shape index: {}]
  %s3 = inlined_call_operand.hbm [shape: s32[1,12], index: 3, kind: input, shape index: {}]
  %s4 = inlined_call_operand.vmem [shape: bf16[12,128], index: 4, kind: input, shape index: {}]
  %s5 = inlined_call_operand.hbm [shape: bf16[256,128], index: 5, kind: input, shape index: {}]
  %s6 = inlined_call_operand.vmem [shape: bf16[2,128,512], index: 6, kind: input, shape index: {}]
  %s7 = inlined_call_operand.hbm [shape: bf16[2,128,256], index: 7, kind: input, shape index: {}]
  %s8 = inlined_call_operand.vmem [shape: f32[2,1,256], index: 8, kind: input, shape index: {}]
  %s9 = inlined_call_operand.vmem [shape: f32[2,1,128], index: 9, kind: input, shape index: {}]
  %s10 = inlined_call_operand.vmem [shape: f32[2,1,128], index: 10, kind: input, shape index: {}]
  %s11 = inlined_call_operand.hbm [shape: bf16[128,128], index: 11, kind: input, shape index: {}]
  %s12 = inlined_call_operand.vmem [shape: f32[1,128], index: 12, kind: input, shape index: {}]
  %s13 = inlined_call_operand.hbm [shape: bf16[128,128], index: 13, kind: input, shape index: {}]
  %s14 = inlined_call_operand.vmem [shape: f32[1,128], index: 14, kind: input, shape index: {}]
  %s15 = inlined_call_operand.hbm [shape: f32[3,128], index: 15, kind: output, shape index: {}]
  %s16 = sld [smem:[#allocation0]]
  $region129: #{tpu_custom_call.1} parent=0
    _
  %s18 = ssub.s32 1, %s16
  %s19 = scalar_select 0, %s18, %s16
  $region1: #{tpu_custom_call.1} parent=0
    #allocation5 [shape = 'u8[512]{0}', space=vmem, size = 0x400, scoped, tag = 'input window, operand 3, single buffered']
    #allocation6 [shape = 's32[2]{0}', space=sflag, size = 0x8, scoped, tag = 'scoped memory for tpu_custom_call.1']
    #allocation7 [shape = 's32[2]{0}', space=sflag, size = 0x8, scoped, tag = 'scoped memory for tpu_custom_call.1']
    #allocation8 [shape = 'u8[65536]{0}', space=vmem, size = 0x10000, scoped, tag = 'input window, operand 5, single buffered']
    #allocation9 [shape = 's32[1]{0}', space=sflag, size = 0x4, scoped, tag = 'scoped memory for tpu_custom_call.1']
    #allocation10 [shape = 'u8[131072]{0}', space=vmem, size = 0x20000, scoped, tag = 'input window, operand 7']
    #allocation11 [shape = 'u8[32768]{0}', space=vmem, size = 0x8000, scoped, tag = 'input window, operand 11, single buffered']
    #allocation12 [shape = 'u8[32768]{0}', space=vmem, size = 0x8000, scoped, tag = 'input window, operand 13, single buffered']
    #allocation13 [shape = 's32[1]{0}', space=sflag, size = 0x4, scoped, tag = 'scoped memory for tpu_custom_call.1']
    #allocation14 [shape = 'u8[2048]{0}', space=vmem, size = 0x800, scoped, tag = 'output window, operand 0, single buffered']
    %20 = vsyncpa [#allocation6], 0
    %21 = vsyncpa [#allocation9], 0
    %22 = vsyncpa [#allocation13], 0
    %23 = vsyncpa [#allocation7], 0
    loop: start=0, step=1, limit=4
    $region2: #{tpu_custom_call.1} parent=1 // loop_pre_header
      _
    $region3: #{tpu_custom_call.1} parent=1 // loop_header
      %s25 = sphi 0, %s29
      %p26 = scmp.ge.s32.totalorder %s25, 4
      %s32 = sphi 0, %s44
      %s33 = sphi 0, %s40
      %s34 = sphi 0, %s32
      %s35 = sphi 0, %s33
      %s36 = sphi 0, %s34
      %s37 = sphi 0, %s35
      %s45 = sphi 0, %s45
      %s47 = sphi 0, %s45
      %s48 = sphi 0, %s47
      %s62 = sphi 0, %s48
      %s66 = sphi 0, %s66
      %s68 = sphi 0, %s66
      %s69 = sphi 0, %s68
      %s83 = sphi 0, %s69
      %s87 = sphi 0, %s87
      %s89 = sphi 0, %s87
      %s90 = sphi 0, %s89
      %s104 = sphi 0, %s90
      %s108 = sphi 0, %s108
      %s110 = sphi 0, %s108
      %s111 = sphi 0, %s110
      %s125 = sphi 0, %s111
      %s129 = sphi 0, %s129
      %s131 = sphi 0, %s129
      %s132 = sphi 0, %s131
      %s146 = sphi 0, %s132
      %s152 = sphi 0, %s154
      %s155 = sphi 0, %s152
      %s156 = sphi 0, %s155
      %s172 = sphi 0, %s156
      %s178 = sphi 0, %s180
      %s181 = sphi 0, %s178
      %s182 = sphi 0, %s181
      %s198 = sphi 0, %s182
      %s204 = sphi 0, %s206
      %s207 = sphi 0, %s204
      %s208 = sphi 0, %s207
      %s224 = sphi 0, %s208
      %s230 = sphi 0, %s232
      %s233 = sphi 0, %s230
      %s234 = sphi 0, %s233
      %s250 = sphi 0, %s234
      %s256 = sphi 0, %s258
      %s259 = sphi 0, %s256
      %s260 = sphi 0, %s259
      %s276 = sphi 0, %s260
      %s282 = sphi 0, %s284
      %s285 = sphi 0, %s282
      %s286 = sphi 0, %s285
      %s302 = sphi 0, %s286
      %s306 = sphi 0, %s306
      %s308 = sphi 0, %s306
      %s309 = sphi 0, %s308
      %s323 = sphi 0, %s309
      %s327 = sphi 0, %s327
      %s329 = sphi 0, %s327
      %s330 = sphi 0, %s329
      %s344 = sphi 0, %s330
      %s348 = sphi 0, %s348
      %s350 = sphi 0, %s348
      %s351 = sphi 0, %s350
      %s365 = sphi 0, %s351
      %s369 = sphi 0, %s369
      %s371 = sphi 0, %s369
      %s372 = sphi 0, %s371
      %s386 = sphi 0, %s372
      %s390 = sphi 0, %s390
      %s392 = sphi 0, %s390
      %s393 = sphi 0, %s392
      %s407 = sphi 0, %s393
    $region4: #{tpu_custom_call.1} parent=1 // loop_header_branch
      %28 = sbr.rel (%p26) target = $region8
    $region5: #{tpu_custom_call.1} parent=1 // loop_body
      %s30 = ssub.s32 %s25, 1
      %s31 = ssub.s32 %s25, 2
      %s38 = sadd.s32 1, %s33
      %p39 = scmp.ge.s32.totalorder %s38, 1
      %s40 = scalar_select %p39, 0, %s38
      %s41 = sadd.s32 1, %s32
      %s42 = scalar_select %p39, %s41, %s32
      %p43 = scmp.ge.s32.totalorder %s42, 2
      %s44 = scalar_select %p43, 0, %s42
      %s46 = sadd.s32 %s45, 1
      %p49 = scmp.eq.s32.totalorder %s25, 1
      %p50 = scmp.ne.s32.totalorder %s45, %s47
      %p51 = scmp.eq.s32.totalorder %s25, 0
      %p52 = por %p50, %p51
      %p53 = scmp.ne.s32.totalorder %s45, %s47
      %p54 = scmp.eq.s32.totalorder %s30, 1
      %p55 = por %p53, %p54
      %p56 = scmp.ne.s32.totalorder %s47, %s48
      %p57 = scmp.eq.s32.totalorder %s30, 0
      %p58 = por %p56, %p57
      %p59 = scmp.ne.s32.totalorder %s47, %s48
      %p60 = scmp.eq.s32.totalorder %s31, 1
      %p61 = por %p59, %p60
      %p63 = scmp.ne.s32.totalorder %s48, %s62
      %p64 = scmp.eq.s32.totalorder %s31, 0
      %p65 = por %p63, %p64
      %s67 = sadd.s32 %s66, 1
      %p70 = scmp.eq.s32.totalorder %s25, 1
      %p71 = scmp.ne.s32.totalorder %s66, %s68
      %p72 = scmp.eq.s32.totalorder %s25, 0
      %p73 = por %p71, %p72
      %p74 = scmp.ne.s32.totalorder %s66, %s68
      %p75 = scmp.eq.s32.totalorder %s30, 1
      %p76 = por %p74, %p75
      %p77 = scmp.ne.s32.totalorder %s68, %s69
      %p78 = scmp.eq.s32.totalorder %s30, 0
      %p79 = por %p77, %p78
      %p80 = scmp.ne.s32.totalorder %s68, %s69
      %p81 = scmp.eq.s32.totalorder %s31, 1
      %p82 = por %p80, %p81
      %p84 = scmp.ne.s32.totalorder %s69, %s83
      %p85 = scmp.eq.s32.totalorder %s31, 0
      %p86 = por %p84, %p85
      %s88 = sadd.s32 %s87, 1
      %p91 = scmp.eq.s32.totalorder %s25, 1
      %p92 = scmp.ne.s32.totalorder %s87, %s89
      %p93 = scmp.eq.s32.totalorder %s25, 0
      %p94 = por %p92, %p93
      %p95 = scmp.ne.s32.totalorder %s87, %s89
      %p96 = scmp.eq.s32.totalorder %s30, 1
      %p97 = por %p95, %p96
      %p98 = scmp.ne.s32.totalorder %s89, %s90
      %p99 = scmp.eq.s32.totalorder %s30, 0
      %p100 = por %p98, %p99
      %p101 = scmp.ne.s32.totalorder %s89, %s90
      %p102 = scmp.eq.s32.totalorder %s31, 1
      %p103 = por %p101, %p102
      %p105 = scmp.ne.s32.totalorder %s90, %s104
      %p106 = scmp.eq.s32.totalorder %s31, 0
      %p107 = por %p105, %p106
      %s109 = sadd.s32 %s108, 1
      %p112 = scmp.eq.s32.totalorder %s25, 1
      %p113 = scmp.ne.s32.totalorder %s108, %s110
      %p114 = scmp.eq.s32.totalorder %s25, 0
      %p115 = por %p113, %p114
      %p116 = scmp.ne.s32.totalorder %s108, %s110
      %p117 = scmp.eq.s32.totalorder %s30, 1
      %p118 = por %p116, %p117
      %p119 = scmp.ne.s32.totalorder %s110, %s111
      %p120 = scmp.eq.s32.totalorder %s30, 0
      %p121 = por %p119, %p120
      %p122 = scmp.ne.s32.totalorder %s110, %s111
      %p123 = scmp.eq.s32.totalorder %s31, 1
      %p124 = por %p122, %p123
      %p126 = scmp.ne.s32.totalorder %s111, %s125
      %p127 = scmp.eq.s32.totalorder %s31, 0
      %p128 = por %p126, %p127
      %s130 = sadd.s32 %s129, 1
      %p133 = scmp.eq.s32.totalorder %s25, 1
      %p134 = scmp.ne.s32.totalorder %s129, %s131
      %p135 = scmp.eq.s32.totalorder %s25, 0
      %p136 = por %p134, %p135
      %p137 = scmp.ne.s32.totalorder %s129, %s131
      %p138 = scmp.eq.s32.totalorder %s30, 1
      %p139 = por %p137, %p138
      %p140 = scmp.ne.s32.totalorder %s131, %s132
      %p141 = scmp.eq.s32.totalorder %s30, 0
      %p142 = por %p140, %p141
      %p143 = scmp.ne.s32.totalorder %s131, %s132
      %p144 = scmp.eq.s32.totalorder %s31, 1
      %p145 = por %p143, %p144
      %p147 = scmp.ne.s32.totalorder %s132, %s146
      %p148 = scmp.eq.s32.totalorder %s31, 0
      %p149 = por %p147, %p148
      %s150 = ssub.s32 %s33, %s40
      %p151 = scmp.eq.s32.totalorder %s150, 0
      %s153 = sadd.s32 %s152, 1
      %s154 = scalar_select %p151, %s152, %s153
      %p157 = pneg %p151
      %p158 = scmp.eq.s32.totalorder %s25, 1
      %p159 = por %p157, %p158
      %p160 = scmp.ne.s32.totalorder %s152, %s155
      %p161 = scmp.eq.s32.totalorder %s25, 0
      %p162 = por %p160, %p161
      %p163 = scmp.ne.s32.totalorder %s152, %s155
      %p164 = scmp.eq.s32.totalorder %s30, 1
      %p165 = por %p163, %p164
      %p166 = scmp.ne.s32.totalorder %s155, %s156
      %p167 = scmp.eq.s32.totalorder %s30, 0
      %p168 = por %p166, %p167
      %p169 = scmp.ne.s32.totalorder %s155, %s156
      %p170 = scmp.eq.s32.totalorder %s31, 1
      %p171 = por %p169, %p170
      %p173 = scmp.ne.s32.totalorder %s156, %s172
      %p174 = scmp.eq.s32.totalorder %s31, 0
      %p175 = por %p173, %p174
      %s176 = ssub.s32 %s32, %s44
      %p177 = scmp.eq.s32.totalorder %s176, 0
      %s179 = sadd.s32 %s178, 1
      %s180 = scalar_select %p177, %s178, %s179
      %p183 = pneg %p177
      %p184 = scmp.eq.s32.totalorder %s25, 1
      %p185 = por %p183, %p184
      %p186 = scmp.ne.s32.totalorder %s178, %s181
      %p187 = scmp.eq.s32.totalorder %s25, 0
      %p188 = por %p186, %p187
      %p189 = scmp.ne.s32.totalorder %s178, %s181
      %p190 = scmp.eq.s32.totalorder %s30, 1
      %p191 = por %p189, %p190
      %p192 = scmp.ne.s32.totalorder %s181, %s182
      %p193 = scmp.eq.s32.totalorder %s30, 0
      %p194 = por %p192, %p193
      %p195 = scmp.ne.s32.totalorder %s181, %s182
      %p196 = scmp.eq.s32.totalorder %s31, 1
      %p197 = por %p195, %p196
      %p199 = scmp.ne.s32.totalorder %s182, %s198
      %p200 = scmp.eq.s32.totalorder %s31, 0
      %p201 = por %p199, %p200
      %s202 = ssub.s32 %s32, %s44
      %p203 = scmp.eq.s32.totalorder %s202, 0
      %s205 = sadd.s32 %s204, 1
      %s206 = scalar_select %p203, %s204, %s205
      %p209 = pneg %p203
      %p210 = scmp.eq.s32.totalorder %s25, 1
      %p211 = por %p209, %p210
      %p212 = scmp.ne.s32.totalorder %s204, %s207
      %p213 = scmp.eq.s32.totalorder %s25, 0
      %p214 = por %p212, %p213
      %p215 = scmp.ne.s32.totalorder %s204, %s207
      %p216 = scmp.eq.s32.totalorder %s30, 1
      %p217 = por %p215, %p216
      %p218 = scmp.ne.s32.totalorder %s207, %s208
      %p219 = scmp.eq.s32.totalorder %s30, 0
      %p220 = por %p218, %p219
      %p221 = scmp.ne.s32.totalorder %s207, %s208
      %p222 = scmp.eq.s32.totalorder %s31, 1
      %p223 = por %p221, %p222
      %p225 = scmp.ne.s32.totalorder %s208, %s224
      %p226 = scmp.eq.s32.totalorder %s31, 0
      %p227 = por %p225, %p226
      %s228 = ssub.s32 %s32, %s44
      %p229 = scmp.eq.s32.totalorder %s228, 0
      %s231 = sadd.s32 %s230, 1
      %s232 = scalar_select %p229, %s230, %s231
      %p235 = pneg %p229
      %p236 = scmp.eq.s32.totalorder %s25, 1
      %p237 = por %p235, %p236
      %p238 = scmp.ne.s32.totalorder %s230, %s233
      %p239 = scmp.eq.s32.totalorder %s25, 0
      %p240 = por %p238, %p239
      %p241 = scmp.ne.s32.totalorder %s230, %s233
      %p242 = scmp.eq.s32.totalorder %s30, 1
      %p243 = por %p241, %p242
      %p244 = scmp.ne.s32.totalorder %s233, %s234
      %p245 = scmp.eq.s32.totalorder %s30, 0
      %p246 = por %p244, %p245
      %p247 = scmp.ne.s32.totalorder %s233, %s234
      %p248 = scmp.eq.s32.totalorder %s31, 1
      %p249 = por %p247, %p248
      %p251 = scmp.ne.s32.totalorder %s234, %s250
      %p252 = scmp.eq.s32.totalorder %s31, 0
      %p253 = por %p251, %p252
      %s254 = ssub.s32 %s32, %s44
      %p255 = scmp.eq.s32.totalorder %s254, 0
      %s257 = sadd.s32 %s256, 1
      %s258 = scalar_select %p255, %s256, %s257
      %p261 = pneg %p255
      %p262 = scmp.eq.s32.totalorder %s25, 1
      %p263 = por %p261, %p262
      %p264 = scmp.ne.s32.totalorder %s256, %s259
      %p265 = scmp.eq.s32.totalorder %s25, 0
      %p266 = por %p264, %p265
      %p267 = scmp.ne.s32.totalorder %s256, %s259
      %p268 = scmp.eq.s32.totalorder %s30, 1
      %p269 = por %p267, %p268
      %p270 = scmp.ne.s32.totalorder %s259, %s260
      %p271 = scmp.eq.s32.totalorder %s30, 0
      %p272 = por %p270, %p271
      %p273 = scmp.ne.s32.totalorder %s259, %s260
      %p274 = scmp.eq.s32.totalorder %s31, 1
      %p275 = por %p273, %p274
      %p277 = scmp.ne.s32.totalorder %s260, %s276
      %p278 = scmp.eq.s32.totalorder %s31, 0
      %p279 = por %p277, %p278
      %s280 = ssub.s32 %s32, %s44
      %p281 = scmp.eq.s32.totalorder %s280, 0
      %s283 = sadd.s32 %s282, 1
      %s284 = scalar_select %p281, %s282, %s283
      %p287 = pneg %p281
      %p288 = scmp.eq.s32.totalorder %s25, 1
      %p289 = por %p287, %p288
      %p290 = scmp.ne.s32.totalorder %s282, %s285
      %p291 = scmp.eq.s32.totalorder %s25, 0
      %p292 = por %p290, %p291
      %p293 = scmp.ne.s32.totalorder %s282, %s285
      %p294 = scmp.eq.s32.totalorder %s30, 1
      %p295 = por %p293, %p294
      %p296 = scmp.ne.s32.totalorder %s285, %s286
      %p297 = scmp.eq.s32.totalorder %s30, 0
      %p298 = por %p296, %p297
      %p299 = scmp.ne.s32.totalorder %s285, %s286
      %p300 = scmp.eq.s32.totalorder %s31, 1
      %p301 = por %p299, %p300
      %p303 = scmp.ne.s32.totalorder %s286, %s302
      %p304 = scmp.eq.s32.totalorder %s31, 0
      %p305 = por %p303, %p304
      %s307 = sadd.s32 %s306, 1
      %p310 = scmp.eq.s32.totalorder %s25, 1
      %p311 = scmp.ne.s32.totalorder %s306, %s308
      %p312 = scmp.eq.s32.totalorder %s25, 0
      %p313 = por %p311, %p312
      %p314 = scmp.ne.s32.totalorder %s306, %s308
      %p315 = scmp.eq.s32.totalorder %s30, 1
      %p316 = por %p314, %p315
      %p317 = scmp.ne.s32.totalorder %s308, %s309
      %p318 = scmp.eq.s32.totalorder %s30, 0
      %p319 = por %p317, %p318
      %p320 = scmp.ne.s32.totalorder %s308, %s309
      %p321 = scmp.eq.s32.totalorder %s31, 1
      %p322 = por %p320, %p321
      %p324 = scmp.ne.s32.totalorder %s309, %s323
      %p325 = scmp.eq.s32.totalorder %s31, 0
      %p326 = por %p324, %p325
      %s328 = sadd.s32 %s327, 1
      %p331 = scmp.eq.s32.totalorder %s25, 1
      %p332 = scmp.ne.s32.totalorder %s327, %s329
      %p333 = scmp.eq.s32.totalorder %s25, 0
      %p334 = por %p332, %p333
      %p335 = scmp.ne.s32.totalorder %s327, %s329
      %p336 = scmp.eq.s32.totalorder %s30, 1
      %p337 = por %p335, %p336
      %p338 = scmp.ne.s32.totalorder %s329, %s330
      %p339 = scmp.eq.s32.totalorder %s30, 0
      %p340 = por %p338, %p339
      %p341 = scmp.ne.s32.totalorder %s329, %s330
      %p342 = scmp.eq.s32.totalorder %s31, 1
      %p343 = por %p341, %p342
      %p345 = scmp.ne.s32.totalorder %s330, %s344
      %p346 = scmp.eq.s32.totalorder %s31, 0
      %p347 = por %p345, %p346
      %s349 = sadd.s32 %s348, 1
      %p352 = scmp.eq.s32.totalorder %s25, 1
      %p353 = scmp.ne.s32.totalorder %s348, %s350
      %p354 = scmp.eq.s32.totalorder %s25, 0
      %p355 = por %p353, %p354
      %p356 = scmp.ne.s32.totalorder %s348, %s350
      %p357 = scmp.eq.s32.totalorder %s30, 1
      %p358 = por %p356, %p357
      %p359 = scmp.ne.s32.totalorder %s350, %s351
      %p360 = scmp.eq.s32.totalorder %s30, 0
      %p361 = por %p359, %p360
      %p362 = scmp.ne.s32.totalorder %s350, %s351
      %p363 = scmp.eq.s32.totalorder %s31, 1
      %p364 = por %p362, %p363
      %p366 = scmp.ne.s32.totalorder %s351, %s365
      %p367 = scmp.eq.s32.totalorder %s31, 0
      %p368 = por %p366, %p367
      %s370 = sadd.s32 %s369, 1
      %p373 = scmp.eq.s32.totalorder %s25, 1
      %p374 = scmp.ne.s32.totalorder %s369, %s371
      %p375 = scmp.eq.s32.totalorder %s25, 0
      %p376 = por %p374, %p375
      %p377 = scmp.ne.s32.totalorder %s369, %s371
      %p378 = scmp.eq.s32.totalorder %s30, 1
      %p379 = por %p377, %p378
      %p380 = scmp.ne.s32.totalorder %s371, %s372
      %p381 = scmp.eq.s32.totalorder %s30, 0
      %p382 = por %p380, %p381
      %p383 = scmp.ne.s32.totalorder %s371, %s372
      %p384 = scmp.eq.s32.totalorder %s31, 1
      %p385 = por %p383, %p384
      %p387 = scmp.ne.s32.totalorder %s372, %s386
      %p388 = scmp.eq.s32.totalorder %s31, 0
      %p389 = por %p387, %p388
      %s391 = sadd.s32 %s390, 1
      %p394 = scmp.eq.s32.totalorder %s25, 1
      %p395 = scmp.ne.s32.totalorder %s390, %s392
      %p396 = scmp.eq.s32.totalorder %s25, 0
      %p397 = por %p395, %p396
      %p398 = scmp.ne.s32.totalorder %s390, %s392
      %p399 = scmp.eq.s32.totalorder %s30, 1
      %p400 = por %p398, %p399
      %p401 = scmp.ne.s32.totalorder %s392, %s393
      %p402 = scmp.eq.s32.totalorder %s30, 0
      %p403 = por %p401, %p402
      %p404 = scmp.ne.s32.totalorder %s392, %s393
      %p405 = scmp.eq.s32.totalorder %s31, 1
      %p406 = por %p404, %p405
      %p408 = scmp.ne.s32.totalorder %s393, %s407
      %p409 = scmp.eq.s32.totalorder %s31, 0
      %p410 = por %p408, %p409
      %p411 = scmp.le.s32.totalorder 1, %s25
      %p412 = scmp.lt.s32.totalorder %s25, 3
      %p413 = pnand %p411, %p412
      %p414 = pneg %p413
      // Predicated region
      $region9: #{tpu_custom_call.1} parent=5 // pred_check
        _
      $region10: #{tpu_custom_call.1} parent=5 // pred_check_branch
        %416 = sbr.rel (%p413) target = $region12
      $region11: #{tpu_custom_call.1} parent=5 // pred_region
        %s417 = ssub.s32 %s25, 1
        // Predicated region
        $region13: #{tpu_custom_call.1} parent=11 // pred_check
          %p418 = pneg %p58
        $region14: #{tpu_custom_call.1} parent=11 // pred_check_branch
          %420 = sbr.rel (%p418) target = $region16
        $region15: #{tpu_custom_call.1} parent=11 // pred_region
          _
        $region16: #{tpu_custom_call.1} parent=11 // pred_fallthru
          _
        // Predicated region
        $region17: #{tpu_custom_call.1} parent=11 // pred_check
          %p421 = pneg %p79
        $region18: #{tpu_custom_call.1} parent=11 // pred_check_branch
          %423 = sbr.rel (%p421) target = $region20
        $region19: #{tpu_custom_call.1} parent=11 // pred_region
          _
        $region20: #{tpu_custom_call.1} parent=11 // pred_fallthru
          _
        // Predicated region
        $region21: #{tpu_custom_call.1} parent=11 // pred_check
          %p424 = pneg %p100
        $region22: #{tpu_custom_call.1} parent=11 // pred_check_branch
          %426 = sbr.rel (%p424) target = $region24
        $region23: #{tpu_custom_call.1} parent=11 // pred_region
          _
        $region24: #{tpu_custom_call.1} parent=11 // pred_fallthru
          _
        // Predicated region
        $region25: #{tpu_custom_call.1} parent=11 // pred_check
          %p427 = pneg %p121
        $region26: #{tpu_custom_call.1} parent=11 // pred_check_branch
          %429 = sbr.rel (%p427) target = $region28
        $region27: #{tpu_custom_call.1} parent=11 // pred_region
          %s431 = ssub.s32 16, 16
          %432 = vsyncadd [#allocation6], %s431
          %s434 = sshll.u32 [#allocation5], 4
          %s435 = int_to_ptr.vmem [resolvable:$true] %s434
          %437 = dma.hbm_to_vmem [thread:$0]  %s3, 16, %s435, [#allocation6]
        $region28: #{tpu_custom_call.1} parent=11 // pred_fallthru
          _
        // Predicated region
        $region29: #{tpu_custom_call.1} parent=11 // pred_check
          %p438 = pneg %p142
        $region30: #{tpu_custom_call.1} parent=11 // pred_check_branch
          %440 = sbr.rel (%p438) target = $region32
        $region31: #{tpu_custom_call.1} parent=11 // pred_region
          _
        $region32: #{tpu_custom_call.1} parent=11 // pred_fallthru
          _
        // Predicated region
        $region33: #{tpu_custom_call.1} parent=11 // pred_check
          %p441 = pneg %p168
        $region34: #{tpu_custom_call.1} parent=11 // pred_check_branch
          %443 = sbr.rel (%p441) target = $region36
        $region35: #{tpu_custom_call.1} parent=11 // pred_region
          %s444 = smul.u32 32, %s35
          %s446 = ssub.s32 2048, 2048
          %447 = vsyncadd [#allocation9], %s446
          %s448 = smul.addr %s444, 64
          %s449 = scalar_lea.hbm %s5, %s448
          %s450 = sshll.u32 [#allocation8], 4
          %s451 = int_to_ptr.vmem [resolvable:$true] %s450
          %456 = dma.hbm_to_vmem [thread:$0]  %s449, 2048, %s451, [#allocation9], 64, 64, 4
        $region36: #{tpu_custom_call.1} parent=11 // pred_fallthru
          _
        // Predicated region
        $region37: #{tpu_custom_call.1} parent=11 // pred_check
          %p457 = pneg %p319
        $region38: #{tpu_custom_call.1} parent=11 // pred_check_branch
          %459 = sbr.rel (%p457) target = $region40
        $region39: #{tpu_custom_call.1} parent=11 // pred_region
          %s461 = ssub.s32 1024, 1024
          %462 = vsyncadd [#allocation9], %s461
          %s463 = sshll.u32 [#allocation11], 4
          %s464 = int_to_ptr.vmem [resolvable:$true] %s463
          %469 = dma.hbm_to_vmem [thread:$0]  %s11, 1024, %s464, [#allocation9], 64, 64, 4
        $region40: #{tpu_custom_call.1} parent=11 // pred_fallthru
          _
        // Predicated region
        $region41: #{tpu_custom_call.1} parent=11 // pred_check
          %p470 = pneg %p340
        $region42: #{tpu_custom_call.1} parent=11 // pred_check_branch
          %472 = sbr.rel (%p470) target = $region44
        $region43: #{tpu_custom_call.1} parent=11 // pred_region
          _
        $region44: #{tpu_custom_call.1} parent=11 // pred_fallthru
          _
        // Predicated region
        $region45: #{tpu_custom_call.1} parent=11 // pred_check
          %p473 = pneg %p361
        $region46: #{tpu_custom_call.1} parent=11 // pred_check_branch
          %475 = sbr.rel (%p473) target = $region48
        $region47: #{tpu_custom_call.1} parent=11 // pred_region
          %s477 = ssub.s32 1024, 1024
          %478 = vsyncadd [#allocation13], %s477
          %s479 = sshll.u32 [#allocation12], 4
          %s480 = int_to_ptr.vmem [resolvable:$true] %s479
          %485 = dma.hbm_to_vmem [thread:$0]  %s13, 1024, %s480, [#allocation13], 64, 64, 4
        $region48: #{tpu_custom_call.1} parent=11 // pred_fallthru
          _
        // Predicated region
        $region49: #{tpu_custom_call.1} parent=11 // pred_check
          %p486 = pneg %p382
        $region50: #{tpu_custom_call.1} parent=11 // pred_check_branch
          %488 = sbr.rel (%p486) target = $region52
        $region51: #{tpu_custom_call.1} parent=11 // pred_region
          _
        $region52: #{tpu_custom_call.1} parent=11 // pred_fallthru
          _
      $region12: #{tpu_custom_call.1} parent=5 // pred_fallthru
        _
      %p489 = scmp.lt.s32.totalorder %s25, 2
      // Predicated region
      $region53: #{tpu_custom_call.1} parent=5 // pred_check
        %p490 = pneg %p489
      $region54: #{tpu_custom_call.1} parent=5 // pred_check_branch
        %492 = sbr.rel (%p490) target = $region56
      $region55: #{tpu_custom_call.1} parent=5 // pred_region
        // Predicated region
        $region57: #{tpu_custom_call.1} parent=55 // pred_check
          %p493 = pneg %p188
        $region58: #{tpu_custom_call.1} parent=55 // pred_check_branch
          %495 = sbr.rel (%p493) target = $region60
        $region59: #{tpu_custom_call.1} parent=55 // pred_region
          %p496 = scmp.lt.s32.totalorder %s32, 1
          %s497 = scalar_select %p496, %s32, 1
          %s498 = smul.addr %s497, 64
          %s499 = smul.addr %s498, 4
          %s500 = scalar_lea.vmem %s6, %s499
        $region60: #{tpu_custom_call.1} parent=55 // pred_fallthru
          _
        // Predicated region
        $region61: #{tpu_custom_call.1} parent=55 // pred_check
          %p501 = pneg %p214
        $region62: #{tpu_custom_call.1} parent=55 // pred_check_branch
          %503 = sbr.rel (%p501) target = $region64
        $region63: #{tpu_custom_call.1} parent=55 // pred_region
          %s504 = sand.u32 %s25, 1
          %s505 = scalar_lea.sflag [#allocation6], %s504
          %s506 = sand.u32 %s204, 1
          %s507 = smul.addr %s506, 128
          %s508 = scalar_lea.vmem [#allocation10], %s507
          %s510 = ssub.s32 2048, 2048
          %511 = vsyncadd %s505, %s510
          %s512 = smul.addr %s32, 32
          %s513 = smul.addr %s512, 64
          %s514 = scalar_lea.hbm %s7, %s513
          %s515 = sshll.u32 %s508, 4
          %s516 = int_to_ptr.vmem [resolvable:$true] %s515
          %521 = dma.hbm_to_vmem [thread:$0]  %s514, 2048, %s516, %s505, 128, 128, 8
        $region64: #{tpu_custom_call.1} parent=55 // pred_fallthru
          _
        // Predicated region
        $region65: #{tpu_custom_call.1} parent=55 // pred_check
          %p522 = pneg %p240
        $region66: #{tpu_custom_call.1} parent=55 // pred_check_branch
          %524 = sbr.rel (%p522) target = $region68
        $region67: #{tpu_custom_call.1} parent=55 // pred_region
          %p525 = scmp.lt.s32.totalorder %s32, 1
          %s526 = scalar_select %p525, %s32, 1
          %s527 = smul.addr %s526, 2
          %s528 = scalar_lea.vmem %s8, %s527
        $region68: #{tpu_custom_call.1} parent=55 // pred_fallthru
          _
        // Predicated region
        $region69: #{tpu_custom_call.1} parent=55 // pred_check
          %p529 = pneg %p266
        $region70: #{tpu_custom_call.1} parent=55 // pred_check_branch
          %531 = sbr.rel (%p529) target = $region72
        $region71: #{tpu_custom_call.1} parent=55 // pred_region
          %p532 = scmp.lt.s32.totalorder %s32, 1
          %s533 = scalar_select %p532, %s32, 1
          %s534 = scalar_lea.vmem %s9, %s533
        $region72: #{tpu_custom_call.1} parent=55 // pred_fallthru
          _
        // Predicated region
        $region73: #{tpu_custom_call.1} parent=55 // pred_check
          %p535 = pneg %p292
        $region74: #{tpu_custom_call.1} parent=55 // pred_check_branch
          %537 = sbr.rel (%p535) target = $region76
        $region75: #{tpu_custom_call.1} parent=55 // pred_region
          %p538 = scmp.lt.s32.totalorder %s32, 1
          %s539 = scalar_select %p538, %s32, 1
          %s540 = scalar_lea.vmem %s10, %s539
        $region76: #{tpu_custom_call.1} parent=55 // pred_fallthru
          _
      $region56: #{tpu_custom_call.1} parent=5 // pred_fallthru
        _
      %p541 = scmp.le.s32.totalorder 1, %s25
      %p542 = scmp.lt.s32.totalorder %s25, 3
      %p543 = pnand %p541, %p542
      %p544 = pneg %p543
      // Predicated region
      $region77: #{tpu_custom_call.1} parent=5 // pred_check
        _
      $region78: #{tpu_custom_call.1} parent=5 // pred_check_branch
        %546 = sbr.rel (%p543) target = $region80
      $region79: #{tpu_custom_call.1} parent=5 // pred_region
        %s547 = ssub.s32 %s25, 1
        // Predicated region
        $region81: #{tpu_custom_call.1} parent=79 // pred_check
          %p548 = pneg %p121
        $region82: #{tpu_custom_call.1} parent=79 // pred_check_branch
          %550 = sbr.rel (%p548) target = $region84
        $region83: #{tpu_custom_call.1} parent=79 // pred_region
          %551 = dma.done [#allocation6], 16
        $region84: #{tpu_custom_call.1} parent=79 // pred_fallthru
          _
        // Predicated region
        $region85: #{tpu_custom_call.1} parent=79 // pred_check
          %p552 = pneg %p168
        $region86: #{tpu_custom_call.1} parent=79 // pred_check_branch
          %554 = sbr.rel (%p552) target = $region88
        $region87: #{tpu_custom_call.1} parent=79 // pred_region
          %555 = dma.done [#allocation9], 2048
        $region88: #{tpu_custom_call.1} parent=79 // pred_fallthru
          _
        %s556 = sand.u32 %s30, 1
        %s557 = scalar_lea.sflag [#allocation6], %s556
        %s558 = sand.u32 %s207, 1
        %s559 = smul.addr %s558, 128
        %s560 = scalar_lea.vmem [#allocation10], %s559
        // Predicated region
        $region89: #{tpu_custom_call.1} parent=79 // pred_check
          %p561 = pneg %p220
        $region90: #{tpu_custom_call.1} parent=79 // pred_check_branch
          %563 = sbr.rel (%p561) target = $region92
        $region91: #{tpu_custom_call.1} parent=79 // pred_region
          %564 = dma.done %s557, 2048
        $region92: #{tpu_custom_call.1} parent=79 // pred_fallthru
          _
        // Predicated region
        $region93: #{tpu_custom_call.1} parent=79 // pred_check
          %p565 = pneg %p319
        $region94: #{tpu_custom_call.1} parent=79 // pred_check_branch
          %567 = sbr.rel (%p565) target = $region96
        $region95: #{tpu_custom_call.1} parent=79 // pred_region
          %568 = dma.done [#allocation9], 1024
        $region96: #{tpu_custom_call.1} parent=79 // pred_fallthru
          _
        // Predicated region
        $region97: #{tpu_custom_call.1} parent=79 // pred_check
          %p569 = pneg %p361
        $region98: #{tpu_custom_call.1} parent=79 // pred_check_branch
          %571 = sbr.rel (%p569) target = $region100
        $region99: #{tpu_custom_call.1} parent=79 // pred_region
          %572 = dma.done [#allocation13], 1024
        $region100: #{tpu_custom_call.1} parent=79 // pred_fallthru
          _
        %p573 = pneg %p58
        %p574 = pneg %p55
        %p575 = pneg %p79
        %p576 = pneg %p76
        %p577 = pneg %p100
        %p578 = pneg %p97
        %p579 = pneg %p121
        %p580 = pneg %p118
        %p581 = pneg %p142
        %p582 = pneg %p139
        %p583 = pneg %p168
        %p584 = pneg %p165
        %p585 = scmp.lt.s32.totalorder %s34, 1
        %s586 = scalar_select %p585, %s34, 1
        %s587 = smul.addr %s586, 64
        %s588 = smul.addr %s587, 4
        %s589 = scalar_lea.vmem %s6, %s588
        %p590 = pneg %p194
        %p591 = pneg %p191
        %s592 = sand.u32 %s30, 1
        %s593 = scalar_lea.sflag [#allocation6], %s592
        %s594 = sand.u32 %s207, 1
        %s595 = smul.addr %s594, 128
        %s596 = scalar_lea.vmem [#allocation10], %s595
        %p597 = pneg %p220
        %p598 = pneg %p217
        %p599 = scmp.lt.s32.totalorder %s34, 1
        %s600 = scalar_select %p599, %s34, 1
        %s601 = smul.addr %s600, 2
        %s602 = scalar_lea.vmem %s8, %s601
        %p603 = pneg %p246
        %p604 = pneg %p243
        %p605 = scmp.lt.s32.totalorder %s34, 1
        %s606 = scalar_select %p605, %s34, 1
        %s607 = scalar_lea.vmem %s9, %s606
        %p608 = pneg %p272
        %p609 = pneg %p269
        %p610 = scmp.lt.s32.totalorder %s34, 1
        %s611 = scalar_select %p610, %s34, 1
        %s612 = scalar_lea.vmem %s10, %s611
        %p613 = pneg %p298
        %p614 = pneg %p295
        %p615 = pneg %p319
        %p616 = pneg %p316
        %p617 = pneg %p340
        %p618 = pneg %p337
        %p619 = pneg %p361
        %p620 = pneg %p358
        %p621 = pneg %p382
        %p622 = pneg %p379
        %p623 = pneg %p403
        %p624 = pneg %p400
        %s625 = smul.u32 32, %s35
        %p626 = scmp.lt.s32.totalorder %s34, 1
        %s627 = scalar_select %p626, %s34, 1
        %s628 = smul.addr %s627, 64
        %s629 = smul.addr %s628, 4
        %s630 = scalar_lea.vmem %s6, %s629
        %p631 = scmp.lt.s32.totalorder %s34, 1
        %s632 = scalar_select %p631, %s34, 1
        %s633 = smul.addr %s632, 2
        %s634 = scalar_lea.vmem %s8, %s633
        %p635 = scmp.lt.s32.totalorder %s34, 1
        %s636 = scalar_select %p635, %s34, 1
        %s637 = scalar_lea.vmem %s9, %s636
        %p638 = scmp.lt.s32.totalorder %s34, 1
        %s639 = scalar_select %p638, %s34, 1
        %s640 = scalar_lea.vmem %s10, %s639
        %p642 = scmp.eq.s32.totalorder %s34, 0
        %p643 = scmp.eq.s32.totalorder %s35, 0
        %p644 = pnand %p642, %p643
        %p645 = pneg %p644
        // Predicated region
        $region101: #{tpu_custom_call.1} parent=79 // pred_check
          _
        $region102: #{tpu_custom_call.1} parent=79 // pred_check_branch
          %647 = sbr.rel (%p644) target = $region104
        $region103: #{tpu_custom_call.1} parent=79 // pred_region
          %v648 = vld [vmem:[%s4] sm:$0xf]
          %v649 = vld [vmem:[%s4 + $0x4] sm:$0x3]
          %v650 = vunpack.c.l.bf16 %v648
          %v651 = vunpack.c.l.bf16 %v649
          %652 = vst [vmem:[#allocation2] sm:$0xff] %v650
          %653 = vst [vmem:[#allocation2 + $0x8] sm:$0xf] %v651
        $region104: #{tpu_custom_call.1} parent=79 // pred_fallthru
          _
        // Predicated region
        $region105: #{tpu_custom_call.1} parent=79 // pred_check
          %p654 = pneg %p643
        $region106: #{tpu_custom_call.1} parent=79 // pred_check_branch
          %656 = sbr.rel (%p654) target = $region108
        $region107: #{tpu_custom_call.1} parent=79 // pred_region
          %v657 = vld [vmem:[#allocation2] sm:$0xff]
          %v658 = vld [vmem:[#allocation2 + $0x8] sm:$0xf]
          %v659 = vpack.c.bf16 %v658, %v657
          %v660 = vld [vmem:[%s630] sm:$0xff]
          %v661 = vld [vmem:[%s630 + $0x8] sm:$0xff]
          %v662 = vld [vmem:[%s630 + $0x10] sm:$0xff]
          %v663 = vld [vmem:[%s630 + $0x18] sm:$0xff]
          %v664 = vld [vmem:[%s630 + $0x20] sm:$0xff]
          %v665 = vld [vmem:[%s630 + $0x28] sm:$0xff]
          %v666 = vld [vmem:[%s630 + $0x30] sm:$0xff]
          %v667 = vld [vmem:[%s630 + $0x38] sm:$0xff]
          %v668 = vld [vmem:[%s630 + $0x40] sm:$0xff]
          %v669 = vld [vmem:[%s630 + $0x48] sm:$0xff]
          %v670 = vld [vmem:[%s630 + $0x50] sm:$0xff]
          %v671 = vld [vmem:[%s630 + $0x58] sm:$0xff]
          %v672 = vld [vmem:[%s630 + $0x60] sm:$0xff]
          %v673 = vld [vmem:[%s630 + $0x68] sm:$0xff]
          %v674 = vld [vmem:[%s630 + $0x70] sm:$0xff]
          %v675 = vld [vmem:[%s630 + $0x78] sm:$0xff]
          %v676 = vld [vmem:[%s630 + $0x80] sm:$0xff]
          %v677 = vld [vmem:[%s630 + $0x88] sm:$0xff]
          %v678 = vld [vmem:[%s630 + $0x90] sm:$0xff]
          %v679 = vld [vmem:[%s630 + $0x98] sm:$0xff]
          %v680 = vld [vmem:[%s630 + $0xa0] sm:$0xff]
          %v681 = vld [vmem:[%s630 + $0xa8] sm:$0xff]
          %v682 = vld [vmem:[%s630 + $0xb0] sm:$0xff]
          %v683 = vld [vmem:[%s630 + $0xb8] sm:$0xff]
          %v684 = vld [vmem:[%s630 + $0xc0] sm:$0xff]
          %v685 = vld [vmem:[%s630 + $0xc8] sm:$0xff]
          %v686 = vld [vmem:[%s630 + $0xd0] sm:$0xff]
          %v687 = vld [vmem:[%s630 + $0xd8] sm:$0xff]
          %v688 = vld [vmem:[%s630 + $0xe0] sm:$0xff]
          %v689 = vld [vmem:[%s630 + $0xe8] sm:$0xff]
          %v690 = vld [vmem:[%s630 + $0xf0] sm:$0xff]
          %v691 = vld [vmem:[%s630 + $0xf8] sm:$0xff]
          %v724 = vunpack.c.l.b16 %v660
          %v725 = vunpack.c.h.b16 %v660
          %v726 = vunpack.c.l.b16 %v661
          %v727 = vunpack.c.h.b16 %v661
          %v728 = vunpack.c.l.b16 %v662
          %v729 = vunpack.c.h.b16 %v662
          %v730 = vunpack.c.l.b16 %v663
          %v731 = vunpack.c.h.b16 %v663
          %v732 = vunpack.c.l.b16 %v664
          %v733 = vunpack.c.h.b16 %v664
          %v734 = vunpack.c.l.b16 %v665
          %v735 = vunpack.c.h.b16 %v665
          %v736 = vunpack.c.l.b16 %v666
          %v737 = vunpack.c.h.b16 %v666
          %v738 = vunpack.c.l.b16 %v667
          %v739 = vunpack.c.h.b16 %v667
          %v740 = vunpack.c.l.b16 %v668
          %v741 = vunpack.c.h.b16 %v668
          %v742 = vunpack.c.l.b16 %v669
          %v743 = vunpack.c.h.b16 %v669
          %v744 = vunpack.c.l.b16 %v670
          %v745 = vunpack.c.h.b16 %v670
          %v746 = vunpack.c.l.b16 %v671
          %v747 = vunpack.c.h.b16 %v671
          %v748 = vunpack.c.l.b16 %v672
          %v749 = vunpack.c.h.b16 %v672
          %v750 = vunpack.c.l.b16 %v673
          %v751 = vunpack.c.h.b16 %v673
          %v752 = vunpack.c.l.b16 %v674
          %v753 = vunpack.c.h.b16 %v674
          %v754 = vunpack.c.l.b16 %v675
          %v755 = vunpack.c.h.b16 %v675
          %v756 = vunpack.c.l.b16 %v676
          %v757 = vunpack.c.h.b16 %v676
          %v758 = vunpack.c.l.b16 %v677
          %v759 = vunpack.c.h.b16 %v677
          %v760 = vunpack.c.l.b16 %v678
          %v761 = vunpack.c.h.b16 %v678
          %v762 = vunpack.c.l.b16 %v679
          %v763 = vunpack.c.h.b16 %v679
          %v764 = vunpack.c.l.b16 %v680
          %v765 = vunpack.c.h.b16 %v680
          %v766 = vunpack.c.l.b16 %v681
          %v767 = vunpack.c.h.b16 %v681
          %v768 = vunpack.c.l.b16 %v682
          %v769 = vunpack.c.h.b16 %v682
          %v770 = vunpack.c.l.b16 %v683
          %v771 = vunpack.c.h.b16 %v683
          %v772 = vunpack.c.l.b16 %v684
          %v773 = vunpack.c.h.b16 %v684
          %v774 = vunpack.c.l.b16 %v685
          %v775 = vunpack.c.h.b16 %v685
          %v776 = vunpack.c.l.b16 %v686
          %v777 = vunpack.c.h.b16 %v686
          %v778 = vunpack.c.l.b16 %v687
          %v779 = vunpack.c.h.b16 %v687
          %v780 = vunpack.c.l.b16 %v688
          %v781 = vunpack.c.h.b16 %v688
          %v782 = vunpack.c.l.b16 %v689
          %v783 = vunpack.c.h.b16 %v689
          %v784 = vunpack.c.l.b16 %v690
          %v785 = vunpack.c.h.b16 %v690
          %v786 = vunpack.c.l.b16 %v691
          %v787 = vunpack.c.h.b16 %v691
          %v788 = vpack.c.b16 %v728, %v724
          %v789 = vpack.c.b16 %v729, %v725
          %v790 = vpack.c.b16 %v730, %v726
          %v791 = vpack.c.b16 %v731, %v727
          %v792 = vpack.c.b16 %v736, %v732
          %v793 = vpack.c.b16 %v737, %v733
          %v794 = vpack.c.b16 %v738, %v734
          %v795 = vpack.c.b16 %v739, %v735
          %v796 = vpack.c.b16 %v744, %v740
          %v797 = vpack.c.b16 %v745, %v741
          %v798 = vpack.c.b16 %v746, %v742
          %v799 = vpack.c.b16 %v747, %v743
          %v800 = vpack.c.b16 %v752, %v748
          %v801 = vpack.c.b16 %v753, %v749
          %v802 = vpack.c.b16 %v754, %v750
          %v803 = vpack.c.b16 %v755, %v751
          %v804 = vpack.c.b16 %v760, %v756
          %v805 = vpack.c.b16 %v761, %v757
          %v806 = vpack.c.b16 %v762, %v758
          %v807 = vpack.c.b16 %v763, %v759
          %v808 = vpack.c.b16 %v768, %v764
          %v809 = vpack.c.b16 %v769, %v765
          %v810 = vpack.c.b16 %v770, %v766
          %v811 = vpack.c.b16 %v771, %v767
          %v812 = vpack.c.b16 %v776, %v772
          %v813 = vpack.c.b16 %v777, %v773
          %v814 = vpack.c.b16 %v778, %v774
          %v815 = vpack.c.b16 %v779, %v775
          %v816 = vpack.c.b16 %v784, %v780
          %v817 = vpack.c.b16 %v785, %v781
          %v818 = vpack.c.b16 %v786, %v782
          %v819 = vpack.c.b16 %v787, %v783
          %852 = vmatprep.subr.bf16.mxu0 %v817
          %853 = vmatpush1.bf16.msra.mxu0 %v816
          %854 = vmatprep.subr.bf16.mxu0 %v813
          %855 = vmatpush1.bf16.msra.mxu0 %v812
          %856 = vmatprep.subr.bf16.mxu0 %v809
          %857 = vmatpush1.bf16.msra.mxu0 %v808
          %858 = vmatprep.subr.bf16.mxu0 %v805
          %859 = vmatpush1.bf16.msra.mxu0 %v804
          %860 = vmatprep.subr.bf16.mxu0 %v801
          %861 = vmatpush1.bf16.msra.mxu0 %v800
          %862 = vmatprep.subr.bf16.mxu0 %v797
          %863 = vmatpush1.bf16.msra.mxu0 %v796
          %864 = vmatprep.subr.bf16.mxu0 %v793
          %865 = vmatpush1.bf16.msra.mxu0 %v792
          %866 = vmatprep.subr.bf16.mxu0 %v789
          %867 = vmatpush1.bf16.msra.mxu0 %v788
          %868 = vmatprep.subr.bf16.mxu0 0
          %869 = vmatpush2.bf16.msra.mxu0 0
          %870 = vmatprep.subr.bf16.mxu0 0
          %871 = vmatpush2.bf16.msra.mxu0 0
          %872 = vmatprep.subr.bf16.mxu0 0
          %873 = vmatpush2.bf16.msra.mxu0 0
          %874 = vmatprep.subr.bf16.mxu0 0
          %875 = vmatpush2.bf16.msra.mxu0 0
          %876 = vmatprep.subr.bf16.mxu0 0
          %877 = vmatpush2.bf16.msra.mxu0 0
          %878 = vmatprep.subr.bf16.mxu0 0
          %879 = vmatpush2.bf16.msra.mxu0 0
          %880 = vmatprep.subr.bf16.mxu0 0
          %881 = vmatpush2.bf16.msra.mxu0 0
          %882 = vmatprep.subr.bf16.mxu0 0
          %883 = vmatpush2.bf16.msra.mxu0 0
          %884 = vmatprep.mubr.bf16.mxu0 0
          %885 = vmatmul.mubr.bf16.gmra.mxu0 %v659
          %v886 = vpop.f32.mrf.mxu0
          %v887 = vadd.f32 0.0, %v886
          %v888 = vpop.f32.mrf.mxu0
          %v889 = vadd.f32 0.0, %v888
          %v890 = vpop.f32.mrf.mxu0
          %v891 = vadd.f32 0.0, %v890
          %v892 = vpop.f32.mrf.mxu0
          %v893 = vadd.f32 0.0, %v892
          %894 = vdwg.mxu0
          %895 = vmatprep.subr.bf16.mxu0 %v819
          %896 = vmatpush1.bf16.msra.mxu0 %v818
          %897 = vmatprep.subr.bf16.mxu0 %v815
          %898 = vmatpush1.bf16.msra.mxu0 %v814
          %899 = vmatprep.subr.bf16.mxu0 %v811
          %900 = vmatpush1.bf16.msra.mxu0 %v810
          %901 = vmatprep.subr.bf16.mxu0 %v807
          %902 = vmatpush1.bf16.msra.mxu0 %v806
          %903 = vmatprep.subr.bf16.mxu0 %v803
          %904 = vmatpush1.bf16.msra.mxu0 %v802
          %905 = vmatprep.subr.bf16.mxu0 %v799
          %906 = vmatpush1.bf16.msra.mxu0 %v798
          %907 = vmatprep.subr.bf16.mxu0 %v795
          %908 = vmatpush1.bf16.msra.mxu0 %v794
          %909 = vmatprep.subr.bf16.mxu0 %v791
          %910 = vmatpush1.bf16.msra.mxu0 %v790
          %911 = vmatprep.subr.bf16.mxu0 0
          %912 = vmatpush2.bf16.msra.mxu0 0
          %913 = vmatprep.subr.bf16.mxu0 0
          %914 = vmatpush2.bf16.msra.mxu0 0
          %915 = vmatprep.subr.bf16.mxu0 0
          %916 = vmatpush2.bf16.msra.mxu0 0
          %917 = vmatprep.subr.bf16.mxu0 0
          %918 = vmatpush2.bf16.msra.mxu0 0
          %919 = vmatprep.subr.bf16.mxu0 0
          %920 = vmatpush2.bf16.msra.mxu0 0
          %921 = vmatprep.subr.bf16.mxu0 0
          %922 = vmatpush2.bf16.msra.mxu0 0
          %923 = vmatprep.subr.bf16.mxu0 0
          %924 = vmatpush2.bf16.msra.mxu0 0
          %925 = vmatprep.subr.bf16.mxu0 0
          %926 = vmatpush2.bf16.msra.mxu0 0
          %927 = vmatprep.mubr.bf16.mxu0 0
          %928 = vmatmul.mubr.bf16.gmra.mxu0 %v659
          %v929 = vpop.f32.mrf.mxu0
          %v930 = vadd.f32 0.0, %v929
          %v931 = vpop.f32.mrf.mxu0
          %v932 = vadd.f32 0.0, %v931
          %v933 = vpop.f32.mrf.mxu0
          %v934 = vadd.f32 0.0, %v933
          %v935 = vpop.f32.mrf.mxu0
          %v936 = vadd.f32 0.0, %v935
          %937 = vdwg.mxu0
          %v938 = vpack.c.bf16 %v891, %v887
          %v939 = vpack.c.bf16 %v893, %v889
          %v940 = vpack.c.bf16 %v934, %v930
          %v941 = vpack.c.bf16 %v936, %v932
          %v946 = vunpack.c.l.b16 %v938
          %v947 = vunpack.c.l.b16 %v939
          %v948 = vunpack.c.l.b16 %v940
          %v949 = vunpack.c.l.b16 %v941
          %v950 = vunpack.c.h.b16 %v938
          %v951 = vunpack.c.h.b16 %v939
          %v952 = vunpack.c.h.b16 %v940
          %v953 = vunpack.c.h.b16 %v941
          %v954 = vpack.c.b16 %v947, %v946
          %v955 = vpack.c.b16 %v949, %v948
          %v956 = vpack.c.b16 %v951, %v950
          %v957 = vpack.c.b16 %v953, %v952
          %962 = vst [vmem:[#allocation4] sm:$0xff] %v954
          %963 = vst [vmem:[#allocation4 + $0x8] sm:$0xff] %v955
          %964 = vst [vmem:[#allocation4 + $0x10] sm:$0x33] %v956
          %965 = vst [vmem:[#allocation4 + $0x18] sm:$0x33] %v957
          %966 = vst [vmem:[#allocation3] sm:$0xff] 0.0
          %967 = vst [vmem:[#allocation3 + $0x8] sm:$0xf] 0.0
        $region108: #{tpu_custom_call.1} parent=79 // pred_fallthru
          _
        %s968 = smul.u32 %s35, 256
        %s969 = scalar_lea.vmem %s1, %s968
        %v970 = vld [vmem:[%s969] sm:$0xff]
        %v971 = vld [vmem:[%s969 + $0x8] sm:$0xff]
        %v972 = vld [vmem:[%s969 + $0x10] sm:$0xff]
        %v973 = vld [vmem:[%s969 + $0x18] sm:$0xff]
        %v974 = vld [vmem:[%s969 + $0x20] sm:$0xff]
        %v975 = vld [vmem:[%s969 + $0x28] sm:$0xff]
        %v976 = vld [vmem:[%s969 + $0x30] sm:$0xff]
        %v977 = vld [vmem:[%s969 + $0x38] sm:$0xff]
        %v978 = vld [vmem:[%s969 + $0x40] sm:$0xff]
        %v979 = vld [vmem:[%s969 + $0x48] sm:$0xff]
        %v980 = vld [vmem:[%s969 + $0x50] sm:$0xff]
        %v981 = vld [vmem:[%s969 + $0x58] sm:$0xff]
        %v982 = vld [vmem:[%s969 + $0x60] sm:$0xff]
        %v983 = vld [vmem:[%s969 + $0x68] sm:$0xff]
        %v984 = vld [vmem:[%s969 + $0x70] sm:$0xff]
        %v985 = vld [vmem:[%s969 + $0x78] sm:$0xff]
        %v986 = vld [vmem:[%s969 + $0x80] sm:$0xff]
        %v987 = vld [vmem:[%s969 + $0x88] sm:$0xff]
        %v988 = vld [vmem:[%s969 + $0x90] sm:$0xff]
        %v989 = vld [vmem:[%s969 + $0x98] sm:$0xff]
        %v990 = vld [vmem:[%s969 + $0xa0] sm:$0xff]
        %v991 = vld [vmem:[%s969 + $0xa8] sm:$0xff]
        %v992 = vld [vmem:[%s969 + $0xb0] sm:$0xff]
        %v993 = vld [vmem:[%s969 + $0xb8] sm:$0xff]
        %v994 = vld [vmem:[%s969 + $0xc0] sm:$0xff]
        %v995 = vld [vmem:[%s969 + $0xc8] sm:$0xff]
        %v996 = vld [vmem:[%s969 + $0xd0] sm:$0xff]
        %v997 = vld [vmem:[%s969 + $0xd8] sm:$0xff]
        %v998 = vld [vmem:[%s969 + $0xe0] sm:$0xff]
        %v999 = vld [vmem:[%s969 + $0xe8] sm:$0xff]
        %v1000 = vld [vmem:[%s969 + $0xf0] sm:$0xff]
        %v1001 = vld [vmem:[%s969 + $0xf8] sm:$0xff]
        %s1002 = scalar_lea.vmem %s0, %s968
        %v1003 = vld [vmem:[%s1002] sm:$0xff]
        %v1004 = vld [vmem:[%s1002 + $0x8] sm:$0xff]
        %v1005 = vld [vmem:[%s1002 + $0x10] sm:$0xff]
        %v1006 = vld [vmem:[%s1002 + $0x18] sm:$0xff]
        %v1007 = vld [vmem:[%s1002 + $0x20] sm:$0xff]
        %v1008 = vld [vmem:[%s1002 + $0x28] sm:$0xff]
        %v1009 = vld [vmem:[%s1002 + $0x30] sm:$0xff]
        %v1010 = vld [vmem:[%s1002 + $0x38] sm:$0xff]
        %v1011 = vld [vmem:[%s1002 + $0x40] sm:$0xff]
        %v1012 = vld [vmem:[%s1002 + $0x48] sm:$0xff]
        %v1013 = vld [vmem:[%s1002 + $0x50] sm:$0xff]
        %v1014 = vld [vmem:[%s1002 + $0x58] sm:$0xff]
        %v1015 = vld [vmem:[%s1002 + $0x60] sm:$0xff]
        %v1016 = vld [vmem:[%s1002 + $0x68] sm:$0xff]
        %v1017 = vld [vmem:[%s1002 + $0x70] sm:$0xff]
        %v1018 = vld [vmem:[%s1002 + $0x78] sm:$0xff]
        %v1019 = vld [vmem:[%s1002 + $0x80] sm:$0xff]
        %v1020 = vld [vmem:[%s1002 + $0x88] sm:$0xff]
        %v1021 = vld [vmem:[%s1002 + $0x90] sm:$0xff]
        %v1022 = vld [vmem:[%s1002 + $0x98] sm:$0xff]
        %v1023 = vld [vmem:[%s1002 + $0xa0] sm:$0xff]
        %v1024 = vld [vmem:[%s1002 + $0xa8] sm:$0xff]
        %v1025 = vld [vmem:[%s1002 + $0xb0] sm:$0xff]
        %v1026 = vld [vmem:[%s1002 + $0xb8] sm:$0xff]
        %v1027 = vld [vmem:[%s1002 + $0xc0] sm:$0xff]
        %v1028 = vld [vmem:[%s1002 + $0xc8] sm:$0xff]
        %v1029 = vld [vmem:[%s1002 + $0xd0] sm:$0xff]
        %v1030 = vld [vmem:[%s1002 + $0xd8] sm:$0xff]
        %v1031 = vld [vmem:[%s1002 + $0xe0] sm:$0xff]
        %v1032 = vld [vmem:[%s1002 + $0xe8] sm:$0xff]
        %v1033 = vld [vmem:[%s1002 + $0xf0] sm:$0xff]
        %v1034 = vld [vmem:[%s1002 + $0xf8] sm:$0xff]
        %s1035 = sshra.s32 %s968, 7
        %s1036 = sand.u32 %s968, 127
        %s1037 = scalar_lea.vmem %s2, %s1035
        %v1038 = vld [vmem:[%s1037] sm:$0x3]
        %v1039 = vlaneseq
        %v1040 = vand.u32 %v1039, 127
        %1041 = vset.pattern.permute.xlu0 0
        %1042 = vperm.xlu0 %1041, %v970
        %v1043 = vpop.permute.xlu0 %1042
        %1044 = vset.pattern.permute.xlu0 0
        %1045 = vperm.xlu0 %1044, %v971
        %v1046 = vpop.permute.xlu0 %1045
        %1047 = vset.pattern.permute.xlu0 0
        %1048 = vperm.xlu0 %1047, %v972
        %v1049 = vpop.permute.xlu0 %1048
        %1050 = vset.pattern.permute.xlu0 0
        %1051 = vperm.xlu0 %1050, %v973
        %v1052 = vpop.permute.xlu0 %1051
        %1053 = vset.pattern.permute.xlu0 0
        %1054 = vperm.xlu0 %1053, %v974
        %v1055 = vpop.permute.xlu0 %1054
        %1056 = vset.pattern.permute.xlu0 0
        %1057 = vperm.xlu0 %1056, %v975
        %v1058 = vpop.permute.xlu0 %1057
        %1059 = vset.pattern.permute.xlu0 0
        %1060 = vperm.xlu0 %1059, %v976
        %v1061 = vpop.permute.xlu0 %1060
        %1062 = vset.pattern.permute.xlu0 0
        %1063 = vperm.xlu0 %1062, %v977
        %v1064 = vpop.permute.xlu0 %1063
        %1065 = vset.pattern.permute.xlu0 0
        %1066 = vperm.xlu0 %1065, %v978
        %v1067 = vpop.permute.xlu0 %1066
        %1068 = vset.pattern.permute.xlu0 0
        %1069 = vperm.xlu0 %1068, %v979
        %v1070 = vpop.permute.xlu0 %1069
        %1071 = vset.pattern.permute.xlu0 0
        %1072 = vperm.xlu0 %1071, %v980
        %v1073 = vpop.permute.xlu0 %1072
        %1074 = vset.pattern.permute.xlu0 0
        %1075 = vperm.xlu0 %1074, %v981
        %v1076 = vpop.permute.xlu0 %1075
        %1077 = vset.pattern.permute.xlu0 0
        %1078 = vperm.xlu0 %1077, %v982
        %v1079 = vpop.permute.xlu0 %1078
        %1080 = vset.pattern.permute.xlu0 0
        %1081 = vperm.xlu0 %1080, %v983
        %v1082 = vpop.permute.xlu0 %1081
        %1083 = vset.pattern.permute.xlu0 0
        %1084 = vperm.xlu0 %1083, %v984
        %v1085 = vpop.permute.xlu0 %1084
        %1086 = vset.pattern.permute.xlu0 0
        %1087 = vperm.xlu0 %1086, %v985
        %v1088 = vpop.permute.xlu0 %1087
        %1089 = vset.pattern.permute.xlu0 0
        %1090 = vperm.xlu0 %1089, %v986
        %v1091 = vpop.permute.xlu0 %1090
        %1092 = vset.pattern.permute.xlu0 0
        %1093 = vperm.xlu0 %1092, %v987
        %v1094 = vpop.permute.xlu0 %1093
        %1095 = vset.pattern.permute.xlu0 0
        %1096 = vperm.xlu0 %1095, %v988
        %v1097 = vpop.permute.xlu0 %1096
        %1098 = vset.pattern.permute.xlu0 0
        %1099 = vperm.xlu0 %1098, %v989
        %v1100 = vpop.permute.xlu0 %1099
        %1101 = vset.pattern.permute.xlu0 0
        %1102 = vperm.xlu0 %1101, %v990
        %v1103 = vpop.permute.xlu0 %1102
        %1104 = vset.pattern.permute.xlu0 0
        %1105 = vperm.xlu0 %1104, %v991
        %v1106 = vpop.permute.xlu0 %1105
        %1107 = vset.pattern.permute.xlu0 0
        %1108 = vperm.xlu0 %1107, %v992
        %v1109 = vpop.permute.xlu0 %1108
        %1110 = vset.pattern.permute.xlu0 0
        %1111 = vperm.xlu0 %1110, %v993
        %v1112 = vpop.permute.xlu0 %1111
        %1113 = vset.pattern.permute.xlu0 0
        %1114 = vperm.xlu0 %1113, %v994
        %v1115 = vpop.permute.xlu0 %1114
        %1116 = vset.pattern.permute.xlu0 0
        %1117 = vperm.xlu0 %1116, %v995
        %v1118 = vpop.permute.xlu0 %1117
        %1119 = vset.pattern.permute.xlu0 0
        %1120 = vperm.xlu0 %1119, %v996
        %v1121 = vpop.permute.xlu0 %1120
        %1122 = vset.pattern.permute.xlu0 0
        %1123 = vperm.xlu0 %1122, %v997
        %v1124 = vpop.permute.xlu0 %1123
        %1125 = vset.pattern.permute.xlu0 0
        %1126 = vperm.xlu0 %1125, %v998
        %v1127 = vpop.permute.xlu0 %1126
        %1128 = vset.pattern.permute.xlu0 0
        %1129 = vperm.xlu0 %1128, %v999
        %v1130 = vpop.permute.xlu0 %1129
        %1131 = vset.pattern.permute.xlu0 0
        %1132 = vperm.xlu0 %1131, %v1000
        %v1133 = vpop.permute.xlu0 %1132
        %1134 = vset.pattern.permute.xlu0 0
        %1135 = vperm.xlu0 %1134, %v1001
        %v1136 = vpop.permute.xlu0 %1135
        %vm1137 = vcmp.eq.s32.totalorder %v1040, %v1043
        %vm1138 = vcmp.eq.s32.totalorder %v1040, %v1046
        %vm1139 = vcmp.eq.s32.totalorder %v1040, %v1049
        %vm1140 = vcmp.eq.s32.totalorder %v1040, %v1052
        %vm1141 = vcmp.eq.s32.totalorder %v1040, %v1055
        %vm1142 = vcmp.eq.s32.totalorder %v1040, %v1058
        %vm1143 = vcmp.eq.s32.totalorder %v1040, %v1061
        %vm1144 = vcmp.eq.s32.totalorder %v1040, %v1064
        %vm1145 = vcmp.eq.s32.totalorder %v1040, %v1067
        %vm1146 = vcmp.eq.s32.totalorder %v1040, %v1070
        %vm1147 = vcmp.eq.s32.totalorder %v1040, %v1073
        %vm1148 = vcmp.eq.s32.totalorder %v1040, %v1076
        %vm1149 = vcmp.eq.s32.totalorder %v1040, %v1079
        %vm1150 = vcmp.eq.s32.totalorder %v1040, %v1082
        %vm1151 = vcmp.eq.s32.totalorder %v1040, %v1085
        %vm1152 = vcmp.eq.s32.totalorder %v1040, %v1088
        %vm1153 = vcmp.eq.s32.totalorder %v1040, %v1091
        %vm1154 = vcmp.eq.s32.totalorder %v1040, %v1094
        %vm1155 = vcmp.eq.s32.totalorder %v1040, %v1097
        %vm1156 = vcmp.eq.s32.totalorder %v1040, %v1100
        %vm1157 = vcmp.eq.s32.totalorder %v1040, %v1103
        %vm1158 = vcmp.eq.s32.totalorder %v1040, %v1106
        %vm1159 = vcmp.eq.s32.totalorder %v1040, %v1109
        %vm1160 = vcmp.eq.s32.totalorder %v1040, %v1112
        %vm1161 = vcmp.eq.s32.totalorder %v1040, %v1115
        %vm1162 = vcmp.eq.s32.totalorder %v1040, %v1118
        %vm1163 = vcmp.eq.s32.totalorder %v1040, %v1121
        %vm1164 = vcmp.eq.s32.totalorder %v1040, %v1124
        %vm1165 = vcmp.eq.s32.totalorder %v1040, %v1127
        %vm1166 = vcmp.eq.s32.totalorder %v1040, %v1130
        %vm1167 = vcmp.eq.s32.totalorder %v1040, %v1133
        %vm1168 = vcmp.eq.s32.totalorder %v1040, %v1136
        %v1169 = vsel %vm1137, 1, 0
        %v1170 = vsel %vm1138, 1, 0
        %v1171 = vsel %vm1139, 1, 0
        %v1172 = vsel %vm1140, 1, 0
        %v1173 = vsel %vm1141, 1, 0
        %v1174 = vsel %vm1142, 1, 0
        %v1175 = vsel %vm1143, 1, 0
        %v1176 = vsel %vm1144, 1, 0
        %v1177 = vsel %vm1145, 1, 0
        %v1178 = vsel %vm1146, 1, 0
        %v1179 = vsel %vm1147, 1, 0
        %v1180 = vsel %vm1148, 1, 0
        %v1181 = vsel %vm1149, 1, 0
        %v1182 = vsel %vm1150, 1, 0
        %v1183 = vsel %vm1151, 1, 0
        %v1184 = vsel %vm1152, 1, 0
        %v1185 = vsel %vm1153, 1, 0
        %v1186 = vsel %vm1154, 1, 0
        %v1187 = vsel %vm1155, 1, 0
        %v1188 = vsel %vm1156, 1, 0
        %v1189 = vsel %vm1157, 1, 0
        %v1190 = vsel %vm1158, 1, 0
        %v1191 = vsel %vm1159, 1, 0
        %v1192 = vsel %vm1160, 1, 0
        %v1193 = vsel %vm1161, 1, 0
        %v1194 = vsel %vm1162, 1, 0
        %v1195 = vsel %vm1163, 1, 0
        %v1196 = vsel %vm1164, 1, 0
        %v1197 = vsel %vm1165, 1, 0
        %v1198 = vsel %vm1166, 1, 0
        %v1199 = vsel %vm1167, 1, 0
        %v1200 = vsel %vm1168, 1, 0
        %v1201 = vcvt.s32.f32 %v1169
        %v1202 = vcvt.s32.f32 %v1170
        %v1203 = vcvt.s32.f32 %v1171
        %v1204 = vcvt.s32.f32 %v1172
        %v1205 = vcvt.s32.f32 %v1173
        %v1206 = vcvt.s32.f32 %v1174
        %v1207 = vcvt.s32.f32 %v1175
        %v1208 = vcvt.s32.f32 %v1176
        %v1209 = vcvt.s32.f32 %v1177
        %v1210 = vcvt.s32.f32 %v1178
        %v1211 = vcvt.s32.f32 %v1179
        %v1212 = vcvt.s32.f32 %v1180
        %v1213 = vcvt.s32.f32 %v1181
        %v1214 = vcvt.s32.f32 %v1182
        %v1215 = vcvt.s32.f32 %v1183
        %v1216 = vcvt.s32.f32 %v1184
        %v1217 = vcvt.s32.f32 %v1185
        %v1218 = vcvt.s32.f32 %v1186
        %v1219 = vcvt.s32.f32 %v1187
        %v1220 = vcvt.s32.f32 %v1188
        %v1221 = vcvt.s32.f32 %v1189
        %v1222 = vcvt.s32.f32 %v1190
        %v1223 = vcvt.s32.f32 %v1191
        %v1224 = vcvt.s32.f32 %v1192
        %v1225 = vcvt.s32.f32 %v1193
        %v1226 = vcvt.s32.f32 %v1194
        %v1227 = vcvt.s32.f32 %v1195
        %v1228 = vcvt.s32.f32 %v1196
        %v1229 = vcvt.s32.f32 %v1197
        %v1230 = vcvt.s32.f32 %v1198
        %v1231 = vcvt.s32.f32 %v1199
        %v1232 = vcvt.s32.f32 %v1200
        %v1233 = vpack.c.bf16 %v1202, %v1201
        %v1234 = vpack.c.bf16 %v1204, %v1203
        %v1235 = vpack.c.bf16 %v1206, %v1205
        %v1236 = vpack.c.bf16 %v1208, %v1207
        %v1237 = vpack.c.bf16 %v1210, %v1209
        %v1238 = vpack.c.bf16 %v1212, %v1211
        %v1239 = vpack.c.bf16 %v1214, %v1213
        %v1240 = vpack.c.bf16 %v1216, %v1215
        %v1241 = vpack.c.bf16 %v1218, %v1217
        %v1242 = vpack.c.bf16 %v1220, %v1219
        %v1243 = vpack.c.bf16 %v1222, %v1221
        %v1244 = vpack.c.bf16 %v1224, %v1223
        %v1245 = vpack.c.bf16 %v1226, %v1225
        %v1246 = vpack.c.bf16 %v1228, %v1227
        %v1247 = vpack.c.bf16 %v1230, %v1229
        %v1248 = vpack.c.bf16 %v1232, %v1231
        %1249 = vset.pattern.permute.xlu0 0
        %1250 = vperm.xlu0 %1249, %v1003
        %v1251 = vpop.permute.xlu0 %1250
        %1252 = vset.pattern.permute.xlu0 0
        %1253 = vperm.xlu0 %1252, %v1004
        %v1254 = vpop.permute.xlu0 %1253
        %1255 = vset.pattern.permute.xlu0 0
        %1256 = vperm.xlu0 %1255, %v1005
        %v1257 = vpop.permute.xlu0 %1256
        %1258 = vset.pattern.permute.xlu0 0
        %1259 = vperm.xlu0 %1258, %v1006
        %v1260 = vpop.permute.xlu0 %1259
        %1261 = vset.pattern.permute.xlu0 0
        %1262 = vperm.xlu0 %1261, %v1007
        %v1263 = vpop.permute.xlu0 %1262
        %1264 = vset.pattern.permute.xlu0 0
        %1265 = vperm.xlu0 %1264, %v1008
        %v1266 = vpop.permute.xlu0 %1265
        %1267 = vset.pattern.permute.xlu0 0
        %1268 = vperm.xlu0 %1267, %v1009
        %v1269 = vpop.permute.xlu0 %1268
        %1270 = vset.pattern.permute.xlu0 0
        %1271 = vperm.xlu0 %1270, %v1010
        %v1272 = vpop.permute.xlu0 %1271
        %1273 = vset.pattern.permute.xlu0 0
        %1274 = vperm.xlu0 %1273, %v1011
        %v1275 = vpop.permute.xlu0 %1274
        %1276 = vset.pattern.permute.xlu0 0
        %1277 = vperm.xlu0 %1276, %v1012
        %v1278 = vpop.permute.xlu0 %1277
        %1279 = vset.pattern.permute.xlu0 0
        %1280 = vperm.xlu0 %1279, %v1013
        %v1281 = vpop.permute.xlu0 %1280
        %1282 = vset.pattern.permute.xlu0 0
        %1283 = vperm.xlu0 %1282, %v1014
        %v1284 = vpop.permute.xlu0 %1283
        %1285 = vset.pattern.permute.xlu0 0
        %1286 = vperm.xlu0 %1285, %v1015
        %v1287 = vpop.permute.xlu0 %1286
        %1288 = vset.pattern.permute.xlu0 0
        %1289 = vperm.xlu0 %1288, %v1016
        %v1290 = vpop.permute.xlu0 %1289
        %1291 = vset.pattern.permute.xlu0 0
        %1292 = vperm.xlu0 %1291, %v1017
        %v1293 = vpop.permute.xlu0 %1292
        %1294 = vset.pattern.permute.xlu0 0
        %1295 = vperm.xlu0 %1294, %v1018
        %v1296 = vpop.permute.xlu0 %1295
        %1297 = vset.pattern.permute.xlu0 0
        %1298 = vperm.xlu0 %1297, %v1019
        %v1299 = vpop.permute.xlu0 %1298
        %1300 = vset.pattern.permute.xlu0 0
        %1301 = vperm.xlu0 %1300, %v1020
        %v1302 = vpop.permute.xlu0 %1301
        %1303 = vset.pattern.permute.xlu0 0
        %1304 = vperm.xlu0 %1303, %v1021
        %v1305 = vpop.permute.xlu0 %1304
        %1306 = vset.pattern.permute.xlu0 0
        %1307 = vperm.xlu0 %1306, %v1022
        %v1308 = vpop.permute.xlu0 %1307
        %1309 = vset.pattern.permute.xlu0 0
        %1310 = vperm.xlu0 %1309, %v1023
        %v1311 = vpop.permute.xlu0 %1310
        %1312 = vset.pattern.permute.xlu0 0
        %1313 = vperm.xlu0 %1312, %v1024
        %v1314 = vpop.permute.xlu0 %1313
        %1315 = vset.pattern.permute.xlu0 0
        %1316 = vperm.xlu0 %1315, %v1025
        %v1317 = vpop.permute.xlu0 %1316
        %1318 = vset.pattern.permute.xlu0 0
        %1319 = vperm.xlu0 %1318, %v1026
        %v1320 = vpop.permute.xlu0 %1319
        %1321 = vset.pattern.permute.xlu0 0
        %1322 = vperm.xlu0 %1321, %v1027
        %v1323 = vpop.permute.xlu0 %1322
        %1324 = vset.pattern.permute.xlu0 0
        %1325 = vperm.xlu0 %1324, %v1028
        %v1326 = vpop.permute.xlu0 %1325
        %1327 = vset.pattern.permute.xlu0 0
        %1328 = vperm.xlu0 %1327, %v1029
        %v1329 = vpop.permute.xlu0 %1328
        %1330 = vset.pattern.permute.xlu0 0
        %1331 = vperm.xlu0 %1330, %v1030
        %v1332 = vpop.permute.xlu0 %1331
        %1333 = vset.pattern.permute.xlu0 0
        %1334 = vperm.xlu0 %1333, %v1031
        %v1335 = vpop.permute.xlu0 %1334
        %1336 = vset.pattern.permute.xlu0 0
        %1337 = vperm.xlu0 %1336, %v1032
        %v1338 = vpop.permute.xlu0 %1337
        %1339 = vset.pattern.permute.xlu0 0
        %1340 = vperm.xlu0 %1339, %v1033
        %v1341 = vpop.permute.xlu0 %1340
        %1342 = vset.pattern.permute.xlu0 0
        %1343 = vperm.xlu0 %1342, %v1034
        %v1344 = vpop.permute.xlu0 %1343
        %vm1345 = vcmp.eq.s32.totalorder %v1040, %v1251
        %vm1346 = vcmp.eq.s32.totalorder %v1040, %v1254
        %vm1347 = vcmp.eq.s32.totalorder %v1040, %v1257
        %vm1348 = vcmp.eq.s32.totalorder %v1040, %v1260
        %vm1349 = vcmp.eq.s32.totalorder %v1040, %v1263
        %vm1350 = vcmp.eq.s32.totalorder %v1040, %v1266
        %vm1351 = vcmp.eq.s32.totalorder %v1040, %v1269
        %vm1352 = vcmp.eq.s32.totalorder %v1040, %v1272
        %vm1353 = vcmp.eq.s32.totalorder %v1040, %v1275
        %vm1354 = vcmp.eq.s32.totalorder %v1040, %v1278
        %vm1355 = vcmp.eq.s32.totalorder %v1040, %v1281
        %vm1356 = vcmp.eq.s32.totalorder %v1040, %v1284
        %vm1357 = vcmp.eq.s32.totalorder %v1040, %v1287
        %vm1358 = vcmp.eq.s32.totalorder %v1040, %v1290
        %vm1359 = vcmp.eq.s32.totalorder %v1040, %v1293
        %vm1360 = vcmp.eq.s32.totalorder %v1040, %v1296
        %vm1361 = vcmp.eq.s32.totalorder %v1040, %v1299
        %vm1362 = vcmp.eq.s32.totalorder %v1040, %v1302
        %vm1363 = vcmp.eq.s32.totalorder %v1040, %v1305
        %vm1364 = vcmp.eq.s32.totalorder %v1040, %v1308
        %vm1365 = vcmp.eq.s32.totalorder %v1040, %v1311
        %vm1366 = vcmp.eq.s32.totalorder %v1040, %v1314
        %vm1367 = vcmp.eq.s32.totalorder %v1040, %v1317
        %vm1368 = vcmp.eq.s32.totalorder %v1040, %v1320
        %vm1369 = vcmp.eq.s32.totalorder %v1040, %v1323
        %vm1370 = vcmp.eq.s32.totalorder %v1040, %v1326
        %vm1371 = vcmp.eq.s32.totalorder %v1040, %v1329
        %vm1372 = vcmp.eq.s32.totalorder %v1040, %v1332
        %vm1373 = vcmp.eq.s32.totalorder %v1040, %v1335
        %vm1374 = vcmp.eq.s32.totalorder %v1040, %v1338
        %vm1375 = vcmp.eq.s32.totalorder %v1040, %v1341
        %vm1376 = vcmp.eq.s32.totalorder %v1040, %v1344
        %v1377 = vsel %vm1345, 1, 0
        %v1378 = vsel %vm1346, 1, 0
        %v1379 = vsel %vm1347, 1, 0
        %v1380 = vsel %vm1348, 1, 0
        %v1381 = vsel %vm1349, 1, 0
        %v1382 = vsel %vm1350, 1, 0
        %v1383 = vsel %vm1351, 1, 0
        %v1384 = vsel %vm1352, 1, 0
        %v1385 = vsel %vm1353, 1, 0
        %v1386 = vsel %vm1354, 1, 0
        %v1387 = vsel %vm1355, 1, 0
        %v1388 = vsel %vm1356, 1, 0
        %v1389 = vsel %vm1357, 1, 0
        %v1390 = vsel %vm1358, 1, 0
        %v1391 = vsel %vm1359, 1, 0
        %v1392 = vsel %vm1360, 1, 0
        %v1393 = vsel %vm1361, 1, 0
        %v1394 = vsel %vm1362, 1, 0
        %v1395 = vsel %vm1363, 1, 0
        %v1396 = vsel %vm1364, 1, 0
        %v1397 = vsel %vm1365, 1, 0
        %v1398 = vsel %vm1366, 1, 0
        %v1399 = vsel %vm1367, 1, 0
        %v1400 = vsel %vm1368, 1, 0
        %v1401 = vsel %vm1369, 1, 0
        %v1402 = vsel %vm1370, 1, 0
        %v1403 = vsel %vm1371, 1, 0
        %v1404 = vsel %vm1372, 1, 0
        %v1405 = vsel %vm1373, 1, 0
        %v1406 = vsel %vm1374, 1, 0
        %v1407 = vsel %vm1375, 1, 0
        %v1408 = vsel %vm1376, 1, 0
        %v1409 = vcvt.s32.f32 %v1377
        %v1410 = vcvt.s32.f32 %v1378
        %v1411 = vcvt.s32.f32 %v1379
        %v1412 = vcvt.s32.f32 %v1380
        %v1413 = vcvt.s32.f32 %v1381
        %v1414 = vcvt.s32.f32 %v1382
        %v1415 = vcvt.s32.f32 %v1383
        %v1416 = vcvt.s32.f32 %v1384
        %v1417 = vcvt.s32.f32 %v1385
        %v1418 = vcvt.s32.f32 %v1386
        %v1419 = vcvt.s32.f32 %v1387
        %v1420 = vcvt.s32.f32 %v1388
        %v1421 = vcvt.s32.f32 %v1389
        %v1422 = vcvt.s32.f32 %v1390
        %v1423 = vcvt.s32.f32 %v1391
        %v1424 = vcvt.s32.f32 %v1392
        %v1425 = vcvt.s32.f32 %v1393
        %v1426 = vcvt.s32.f32 %v1394
        %v1427 = vcvt.s32.f32 %v1395
        %v1428 = vcvt.s32.f32 %v1396
        %v1429 = vcvt.s32.f32 %v1397
        %v1430 = vcvt.s32.f32 %v1398
        %v1431 = vcvt.s32.f32 %v1399
        %v1432 = vcvt.s32.f32 %v1400
        %v1433 = vcvt.s32.f32 %v1401
        %v1434 = vcvt.s32.f32 %v1402
        %v1435 = vcvt.s32.f32 %v1403
        %v1436 = vcvt.s32.f32 %v1404
        %v1437 = vcvt.s32.f32 %v1405
        %v1438 = vcvt.s32.f32 %v1406
        %v1439 = vcvt.s32.f32 %v1407
        %v1440 = vcvt.s32.f32 %v1408
        %v1441 = vpack.c.bf16 %v1410, %v1409
        %v1442 = vpack.c.bf16 %v1412, %v1411
        %v1443 = vpack.c.bf16 %v1414, %v1413
        %v1444 = vpack.c.bf16 %v1416, %v1415
        %v1445 = vpack.c.bf16 %v1418, %v1417
        %v1446 = vpack.c.bf16 %v1420, %v1419
        %v1447 = vpack.c.bf16 %v1422, %v1421
        %v1448 = vpack.c.bf16 %v1424, %v1423
        %v1449 = vpack.c.bf16 %v1426, %v1425
        %v1450 = vpack.c.bf16 %v1428, %v1427
        %v1451 = vpack.c.bf16 %v1430, %v1429
        %v1452 = vpack.c.bf16 %v1432, %v1431
        %v1453 = vpack.c.bf16 %v1434, %v1433
        %v1454 = vpack.c.bf16 %v1436, %v1435
        %v1455 = vpack.c.bf16 %v1438, %v1437
        %v1456 = vpack.c.bf16 %v1440, %v1439
        %v1457 = vlaneseq
        %v1458 = vshrl.u32 %v1457, 7
        %v1459 = vadd.s32 %v1458, 8
        %v1460 = vlaneseq
        %v1461 = vshrl.u32 %v1460, 7
        %v1462 = vsub.s32 0, %v1461
        %v1463 = vrot.slane %v1038, %v1462
        %v1464 = vlaneseq
        %v1465 = vshrl.u32 %v1464, 7
        %v1466 = vsub.s32 1, %v1465
        %v1467 = vrot.slane %v1038, %v1466
        %vm1468 = vcmp.eq.s32.totalorder %v1458, %v1463
        %vm1469 = vcmp.eq.s32.totalorder %v1458, %v1467
        %vm1470 = vcmp.eq.s32.totalorder %v1459, %v1463
        %vm1471 = vcmp.eq.s32.totalorder %v1459, %v1467
        %v1472 = vsel %vm1468, 1, 0
        %v1473 = vsel %vm1469, 1, 0
        %v1474 = vsel %vm1470, 1, 0
        %v1475 = vsel %vm1471, 1, 0
        %v1476 = vcvt.s32.f32 %v1472
        %v1477 = vcvt.s32.f32 %v1473
        %v1478 = vcvt.s32.f32 %v1474
        %v1479 = vcvt.s32.f32 %v1475
        %v1480 = vpack.c.bf16 %v1478, %v1476
        %v1481 = vpack.c.bf16 %v1479, %v1477
        %v1482 = vld [vmem:[#allocation4] sm:$0xff]
        %v1483 = vld [vmem:[#allocation4 + $0x10] sm:$0x33]
        %v1484 = vld [vmem:[#allocation4 + $0x8] sm:$0xff]
        %v1485 = vld [vmem:[#allocation4 + $0x18] sm:$0x33]
        %v1488 = vunpack.c.l.b16 %v1484
        %v1489 = vunpack.c.h.b16 %v1484
        %v1490 = vunpack.c.l.b16 %v1485
        %v1491 = vunpack.c.h.b16 %v1485
        %v1492 = vpack.c.b16 %v1490, %v1488
        %v1493 = vpack.c.b16 %v1491, %v1489
        %vm1494 = vcmask 97280
        %v1496 = vsel %vm1494, %v1441, 0
        %v1499 = vsel %vm1494, %v1442, 0
        %v1502 = vsel %vm1494, %v1443, 0
        %v1505 = vsel %vm1494, %v1444, 0
        %v1508 = vsel %vm1494, %v1445, 0
        %v1511 = vsel %vm1494, %v1446, 0
        %v1514 = vsel %vm1494, %v1447, 0
        %v1517 = vsel %vm1494, %v1448, 0
        %v1520 = vsel %vm1494, %v1449, 0
        %v1523 = vsel %vm1494, %v1450, 0
        %v1526 = vsel %vm1494, %v1451, 0
        %v1529 = vsel %vm1494, %v1452, 0
        %v1532 = vsel %vm1494, %v1453, 0
        %v1535 = vsel %vm1494, %v1454, 0
        %v1538 = vsel %vm1494, %v1455, 0
        %v1541 = vsel %vm1494, %v1456, 0
        %vm1543 = vcmask 1045504
        %v1545 = vsel %vm1543, %v1492, 0
        %v1548 = vsel %vm1543, %v1493, 0
        %1550 = vmatprep.subr.bf16.mxu0 0
        %1551 = vmatpush1.bf16.msra.mxu0 0
        %1552 = vmatprep.subr.bf16.mxu0 0
        %1553 = vmatpush1.bf16.msra.mxu0 0
        %1554 = vmatprep.subr.bf16.mxu0 0
        %1555 = vmatpush1.bf16.msra.mxu0 0
        %1556 = vmatprep.subr.bf16.mxu0 0
        %1557 = vmatpush1.bf16.msra.mxu0 0
        %1558 = vmatprep.subr.bf16.mxu0 0
        %1559 = vmatpush1.bf16.msra.mxu0 0
        %1560 = vmatprep.subr.bf16.mxu0 0
        %1561 = vmatpush1.bf16.msra.mxu0 0
        %1562 = vmatprep.subr.bf16.mxu0 0
        %1563 = vmatpush1.bf16.msra.mxu0 0
        %1564 = vmatprep.subr.bf16.mxu0 %v1548
        %1565 = vmatpush1.bf16.msra.mxu0 %v1545
        %1566 = vmatprep.subr.bf16.mxu0 0
        %1567 = vmatpush2.bf16.msra.mxu0 0
        %1568 = vmatprep.subr.bf16.mxu0 0
        %1569 = vmatpush2.bf16.msra.mxu0 0
        %1570 = vmatprep.subr.bf16.mxu0 0
        %1571 = vmatpush2.bf16.msra.mxu0 0
        %1572 = vmatprep.subr.bf16.mxu0 0
        %1573 = vmatpush2.bf16.msra.mxu0 0
        %1574 = vmatprep.subr.bf16.mxu0 0
        %1575 = vmatpush2.bf16.msra.mxu0 0
        %1576 = vmatprep.subr.bf16.mxu0 0
        %1577 = vmatpush2.bf16.msra.mxu0 0
        %1578 = vmatprep.subr.bf16.mxu0 0
        %1579 = vmatpush2.bf16.msra.mxu0 0
        %1580 = vmatprep.subr.bf16.mxu0 0
        %1581 = vmatpush2.bf16.msra.mxu0 0
        %1582 = vmatprep.mubr.bf16.mxu0 0
        %1583 = vmatmul.mubr.bf16.gmra.mxu0 %v1496
        %v1584 = vpop.f32.mrf.mxu0
        %v1585 = vadd.f32 0.0, %v1584
        %v1586 = vpop.f32.mrf.mxu0
        %v1587 = vadd.f32 0.0, %v1586
        %v1588 = vpop.f32.mrf.mxu0
        %v1589 = vadd.f32 0.0, %v1588
        %v1590 = vpop.f32.mrf.mxu0
        %v1591 = vadd.f32 0.0, %v1590
        %1592 = vmatprep.mubr.bf16.mxu0 0
        %1593 = vmatmul.mubr.bf16.gmra.mxu0 %v1499
        %v1594 = vpop.f32.mrf.mxu0
        %v1595 = vadd.f32 0.0, %v1594
        %v1596 = vpop.f32.mrf.mxu0
        %v1597 = vadd.f32 0.0, %v1596
        %v1598 = vpop.f32.mrf.mxu0
        %v1599 = vadd.f32 0.0, %v1598
        %v1600 = vpop.f32.mrf.mxu0
        %v1601 = vadd.f32 0.0, %v1600
        %1602 = vmatprep.mubr.bf16.mxu0 0
        %1603 = vmatmul.mubr.bf16.gmra.mxu0 %v1502
        %v1604 = vpop.f32.mrf.mxu0
        %v1605 = vadd.f32 0.0, %v1604
        %v1606 = vpop.f32.mrf.mxu0
        %v1607 = vadd.f32 0.0, %v1606
        %v1608 = vpop.f32.mrf.mxu0
        %v1609 = vadd.f32 0.0, %v1608
        %v1610 = vpop.f32.mrf.mxu0
        %v1611 = vadd.f32 0.0, %v1610
        %1612 = vmatprep.mubr.bf16.mxu0 0
        %1613 = vmatmul.mubr.bf16.gmra.mxu0 %v1505
        %v1614 = vpop.f32.mrf.mxu0
        %v1615 = vadd.f32 0.0, %v1614
        %v1616 = vpop.f32.mrf.mxu0
        %v1617 = vadd.f32 0.0, %v1616
        %v1618 = vpop.f32.mrf.mxu0
        %v1619 = vadd.f32 0.0, %v1618
        %v1620 = vpop.f32.mrf.mxu0
        %v1621 = vadd.f32 0.0, %v1620
        %1622 = vmatprep.mubr.bf16.mxu0 0
        %1623 = vmatmul.mubr.bf16.gmra.mxu0 %v1508
        %v1624 = vpop.f32.mrf.mxu0
        %v1625 = vadd.f32 0.0, %v1624
        %v1626 = vpop.f32.mrf.mxu0
        %v1627 = vadd.f32 0.0, %v1626
        %v1628 = vpop.f32.mrf.mxu0
        %v1629 = vadd.f32 0.0, %v1628
        %v1630 = vpop.f32.mrf.mxu0
        %v1631 = vadd.f32 0.0, %v1630
        %1632 = vmatprep.mubr.bf16.mxu0 0
        %1633 = vmatmul.mubr.bf16.gmra.mxu0 %v1511
        %v1634 = vpop.f32.mrf.mxu0
        %v1635 = vadd.f32 0.0, %v1634
        %v1636 = vpop.f32.mrf.mxu0
        %v1637 = vadd.f32 0.0, %v1636
        %v1638 = vpop.f32.mrf.mxu0
        %v1639 = vadd.f32 0.0, %v1638
        %v1640 = vpop.f32.mrf.mxu0
        %v1641 = vadd.f32 0.0, %v1640
        %1642 = vmatprep.mubr.bf16.mxu0 0
        %1643 = vmatmul.mubr.bf16.gmra.mxu0 %v1514
        %v1644 = vpop.f32.mrf.mxu0
        %v1645 = vadd.f32 0.0, %v1644
        %v1646 = vpop.f32.mrf.mxu0
        %v1647 = vadd.f32 0.0, %v1646
        %v1648 = vpop.f32.mrf.mxu0
        %v1649 = vadd.f32 0.0, %v1648
        %v1650 = vpop.f32.mrf.mxu0
        %v1651 = vadd.f32 0.0, %v1650
        %1652 = vmatprep.mubr.bf16.mxu0 0
        %1653 = vmatmul.mubr.bf16.gmra.mxu0 %v1517
        %v1654 = vpop.f32.mrf.mxu0
        %v1655 = vadd.f32 0.0, %v1654
        %v1656 = vpop.f32.mrf.mxu0
        %v1657 = vadd.f32 0.0, %v1656
        %v1658 = vpop.f32.mrf.mxu0
        %v1659 = vadd.f32 0.0, %v1658
        %v1660 = vpop.f32.mrf.mxu0
        %v1661 = vadd.f32 0.0, %v1660
        %1662 = vmatprep.mubr.bf16.mxu0 0
        %1663 = vmatmul.mubr.bf16.gmra.mxu0 %v1520
        %v1664 = vpop.f32.mrf.mxu0
        %v1665 = vadd.f32 0.0, %v1664
        %v1666 = vpop.f32.mrf.mxu0
        %v1667 = vadd.f32 0.0, %v1666
        %v1668 = vpop.f32.mrf.mxu0
        %v1669 = vadd.f32 0.0, %v1668
        %v1670 = vpop.f32.mrf.mxu0
        %v1671 = vadd.f32 0.0, %v1670
        %1672 = vmatprep.mubr.bf16.mxu0 0
        %1673 = vmatmul.mubr.bf16.gmra.mxu0 %v1523
        %v1674 = vpop.f32.mrf.mxu0
        %v1675 = vadd.f32 0.0, %v1674
        %v1676 = vpop.f32.mrf.mxu0
        %v1677 = vadd.f32 0.0, %v1676
        %v1678 = vpop.f32.mrf.mxu0
        %v1679 = vadd.f32 0.0, %v1678
        %v1680 = vpop.f32.mrf.mxu0
        %v1681 = vadd.f32 0.0, %v1680
        %1682 = vmatprep.mubr.bf16.mxu0 0
        %1683 = vmatmul.mubr.bf16.gmra.mxu0 %v1526
        %v1684 = vpop.f32.mrf.mxu0
        %v1685 = vadd.f32 0.0, %v1684
        %v1686 = vpop.f32.mrf.mxu0
        %v1687 = vadd.f32 0.0, %v1686
        %v1688 = vpop.f32.mrf.mxu0
        %v1689 = vadd.f32 0.0, %v1688
        %v1690 = vpop.f32.mrf.mxu0
        %v1691 = vadd.f32 0.0, %v1690
        %1692 = vmatprep.mubr.bf16.mxu0 0
        %1693 = vmatmul.mubr.bf16.gmra.mxu0 %v1529
        %v1694 = vpop.f32.mrf.mxu0
        %v1695 = vadd.f32 0.0, %v1694
        %v1696 = vpop.f32.mrf.mxu0
        %v1697 = vadd.f32 0.0, %v1696
        %v1698 = vpop.f32.mrf.mxu0
        %v1699 = vadd.f32 0.0, %v1698
        %v1700 = vpop.f32.mrf.mxu0
        %v1701 = vadd.f32 0.0, %v1700
        %1702 = vmatprep.mubr.bf16.mxu0 0
        %1703 = vmatmul.mubr.bf16.gmra.mxu0 %v1532
        %v1704 = vpop.f32.mrf.mxu0
        %v1705 = vadd.f32 0.0, %v1704
        %v1706 = vpop.f32.mrf.mxu0
        %v1707 = vadd.f32 0.0, %v1706
        %v1708 = vpop.f32.mrf.mxu0
        %v1709 = vadd.f32 0.0, %v1708
        %v1710 = vpop.f32.mrf.mxu0
        %v1711 = vadd.f32 0.0, %v1710
        %1712 = vmatprep.mubr.bf16.mxu0 0
        %1713 = vmatmul.mubr.bf16.gmra.mxu0 %v1535
        %v1714 = vpop.f32.mrf.mxu0
        %v1715 = vadd.f32 0.0, %v1714
        %v1716 = vpop.f32.mrf.mxu0
        %v1717 = vadd.f32 0.0, %v1716
        %v1718 = vpop.f32.mrf.mxu0
        %v1719 = vadd.f32 0.0, %v1718
        %v1720 = vpop.f32.mrf.mxu0
        %v1721 = vadd.f32 0.0, %v1720
        %1722 = vmatprep.mubr.bf16.mxu0 0
        %1723 = vmatmul.mubr.bf16.gmra.mxu0 %v1538
        %v1724 = vpop.f32.mrf.mxu0
        %v1725 = vadd.f32 0.0, %v1724
        %v1726 = vpop.f32.mrf.mxu0
        %v1727 = vadd.f32 0.0, %v1726
        %v1728 = vpop.f32.mrf.mxu0
        %v1729 = vadd.f32 0.0, %v1728
        %v1730 = vpop.f32.mrf.mxu0
        %v1731 = vadd.f32 0.0, %v1730
        %1732 = vmatprep.mubr.bf16.mxu0 0
        %1733 = vmatmul.mubr.bf16.gmra.mxu0 %v1541
        %v1734 = vpop.f32.mrf.mxu0
        %v1735 = vadd.f32 0.0, %v1734
        %v1736 = vpop.f32.mrf.mxu0
        %v1737 = vadd.f32 0.0, %v1736
        %v1738 = vpop.f32.mrf.mxu0
        %v1739 = vadd.f32 0.0, %v1738
        %v1740 = vpop.f32.mrf.mxu0
        %v1741 = vadd.f32 0.0, %v1740
        %1742 = vdwg.mxu0
        %v1745 = vunpack.c.l.b16 %v1482
        %v1746 = vunpack.c.h.b16 %v1482
        %v1747 = vunpack.c.l.b16 %v1483
        %v1748 = vunpack.c.h.b16 %v1483
        %v1749 = vpack.c.b16 %v1747, %v1745
        %v1750 = vpack.c.b16 %v1748, %v1746
        %v1752 = vsel %vm1494, %v1233, 0
        %v1755 = vsel %vm1494, %v1234, 0
        %v1758 = vsel %vm1494, %v1235, 0
        %v1761 = vsel %vm1494, %v1236, 0
        %v1764 = vsel %vm1494, %v1237, 0
        %v1767 = vsel %vm1494, %v1238, 0
        %v1770 = vsel %vm1494, %v1239, 0
        %v1773 = vsel %vm1494, %v1240, 0
        %v1776 = vsel %vm1494, %v1241, 0
        %v1779 = vsel %vm1494, %v1242, 0
        %v1782 = vsel %vm1494, %v1243, 0
        %v1785 = vsel %vm1494, %v1244, 0
        %v1788 = vsel %vm1494, %v1245, 0
        %v1791 = vsel %vm1494, %v1246, 0
        %v1794 = vsel %vm1494, %v1247, 0
        %v1797 = vsel %vm1494, %v1248, 0
        %v1800 = vsel %vm1543, %v1749, 0
        %v1803 = vsel %vm1543, %v1750, 0
        %1805 = vmatprep.subr.bf16.mxu0 0
        %1806 = vmatpush1.bf16.msra.mxu0 0
        %1807 = vmatprep.subr.bf16.mxu0 0
        %1808 = vmatpush1.bf16.msra.mxu0 0
        %1809 = vmatprep.subr.bf16.mxu0 0
        %1810 = vmatpush1.bf16.msra.mxu0 0
        %1811 = vmatprep.subr.bf16.mxu0 0
        %1812 = vmatpush1.bf16.msra.mxu0 0
        %1813 = vmatprep.subr.bf16.mxu0 0
        %1814 = vmatpush1.bf16.msra.mxu0 0
        %1815 = vmatprep.subr.bf16.mxu0 0
        %1816 = vmatpush1.bf16.msra.mxu0 0
        %1817 = vmatprep.subr.bf16.mxu0 0
        %1818 = vmatpush1.bf16.msra.mxu0 0
        %1819 = vmatprep.subr.bf16.mxu0 %v1803
        %1820 = vmatpush1.bf16.msra.mxu0 %v1800
        %1821 = vmatprep.subr.bf16.mxu0 0
        %1822 = vmatpush2.bf16.msra.mxu0 0
        %1823 = vmatprep.subr.bf16.mxu0 0
        %1824 = vmatpush2.bf16.msra.mxu0 0
        %1825 = vmatprep.subr.bf16.mxu0 0
        %1826 = vmatpush2.bf16.msra.mxu0 0
        %1827 = vmatprep.subr.bf16.mxu0 0
        %1828 = vmatpush2.bf16.msra.mxu0 0
        %1829 = vmatprep.subr.bf16.mxu0 0
        %1830 = vmatpush2.bf16.msra.mxu0 0
        %1831 = vmatprep.subr.bf16.mxu0 0
        %1832 = vmatpush2.bf16.msra.mxu0 0
        %1833 = vmatprep.subr.bf16.mxu0 0
        %1834 = vmatpush2.bf16.msra.mxu0 0
        %1835 = vmatprep.subr.bf16.mxu0 0
        %1836 = vmatpush2.bf16.msra.mxu0 0
        %1837 = vmatprep.mubr.bf16.mxu0 0
        %1838 = vmatmul.mubr.bf16.gmra.mxu0 %v1752
        %v1839 = vpop.f32.mrf.mxu0
        %v1840 = vadd.f32 %v1585, %v1839
        %v1841 = vpop.f32.mrf.mxu0
        %v1842 = vadd.f32 %v1587, %v1841
        %v1843 = vpop.f32.mrf.mxu0
        %v1844 = vadd.f32 %v1589, %v1843
        %v1845 = vpop.f32.mrf.mxu0
        %v1846 = vadd.f32 %v1591, %v1845
        %1847 = vmatprep.mubr.bf16.mxu0 0
        %1848 = vmatmul.mubr.bf16.gmra.mxu0 %v1755
        %v1849 = vpop.f32.mrf.mxu0
        %v1850 = vadd.f32 %v1595, %v1849
        %v1851 = vpop.f32.mrf.mxu0
        %v1852 = vadd.f32 %v1597, %v1851
        %v1853 = vpop.f32.mrf.mxu0
        %v1854 = vadd.f32 %v1599, %v1853
        %v1855 = vpop.f32.mrf.mxu0
        %v1856 = vadd.f32 %v1601, %v1855
        %1857 = vmatprep.mubr.bf16.mxu0 0
        %1858 = vmatmul.mubr.bf16.gmra.mxu0 %v1758
        %v1859 = vpop.f32.mrf.mxu0
        %v1860 = vadd.f32 %v1605, %v1859
        %v1861 = vpop.f32.mrf.mxu0
        %v1862 = vadd.f32 %v1607, %v1861
        %v1863 = vpop.f32.mrf.mxu0
        %v1864 = vadd.f32 %v1609, %v1863
        %v1865 = vpop.f32.mrf.mxu0
        %v1866 = vadd.f32 %v1611, %v1865
        %1867 = vmatprep.mubr.bf16.mxu0 0
        %1868 = vmatmul.mubr.bf16.gmra.mxu0 %v1761
        %v1869 = vpop.f32.mrf.mxu0
        %v1870 = vadd.f32 %v1615, %v1869
        %v1871 = vpop.f32.mrf.mxu0
        %v1872 = vadd.f32 %v1617, %v1871
        %v1873 = vpop.f32.mrf.mxu0
        %v1874 = vadd.f32 %v1619, %v1873
        %v1875 = vpop.f32.mrf.mxu0
        %v1876 = vadd.f32 %v1621, %v1875
        %1877 = vmatprep.mubr.bf16.mxu0 0
        %1878 = vmatmul.mubr.bf16.gmra.mxu0 %v1764
        %v1879 = vpop.f32.mrf.mxu0
        %v1880 = vadd.f32 %v1625, %v1879
        %v1881 = vpop.f32.mrf.mxu0
        %v1882 = vadd.f32 %v1627, %v1881
        %v1883 = vpop.f32.mrf.mxu0
        %v1884 = vadd.f32 %v1629, %v1883
        %v1885 = vpop.f32.mrf.mxu0
        %v1886 = vadd.f32 %v1631, %v1885
        %1887 = vmatprep.mubr.bf16.mxu0 0
        %1888 = vmatmul.mubr.bf16.gmra.mxu0 %v1767
        %v1889 = vpop.f32.mrf.mxu0
        %v1890 = vadd.f32 %v1635, %v1889
        %v1891 = vpop.f32.mrf.mxu0
        %v1892 = vadd.f32 %v1637, %v1891
        %v1893 = vpop.f32.mrf.mxu0
        %v1894 = vadd.f32 %v1639, %v1893
        %v1895 = vpop.f32.mrf.mxu0
        %v1896 = vadd.f32 %v1641, %v1895
        %1897 = vmatprep.mubr.bf16.mxu0 0
        %1898 = vmatmul.mubr.bf16.gmra.mxu0 %v1770
        %v1899 = vpop.f32.mrf.mxu0
        %v1900 = vadd.f32 %v1645, %v1899
        %v1901 = vpop.f32.mrf.mxu0
        %v1902 = vadd.f32 %v1647, %v1901
        %v1903 = vpop.f32.mrf.mxu0
        %v1904 = vadd.f32 %v1649, %v1903
        %v1905 = vpop.f32.mrf.mxu0
        %v1906 = vadd.f32 %v1651, %v1905
        %1907 = vmatprep.mubr.bf16.mxu0 0
        %1908 = vmatmul.mubr.bf16.gmra.mxu0 %v1773
        %v1909 = vpop.f32.mrf.mxu0
        %v1910 = vadd.f32 %v1655, %v1909
        %v1911 = vpop.f32.mrf.mxu0
        %v1912 = vadd.f32 %v1657, %v1911
        %v1913 = vpop.f32.mrf.mxu0
        %v1914 = vadd.f32 %v1659, %v1913
        %v1915 = vpop.f32.mrf.mxu0
        %v1916 = vadd.f32 %v1661, %v1915
        %1917 = vmatprep.mubr.bf16.mxu0 0
        %1918 = vmatmul.mubr.bf16.gmra.mxu0 %v1776
        %v1919 = vpop.f32.mrf.mxu0
        %v1920 = vadd.f32 %v1665, %v1919
        %v1921 = vpop.f32.mrf.mxu0
        %v1922 = vadd.f32 %v1667, %v1921
        %v1923 = vpop.f32.mrf.mxu0
        %v1924 = vadd.f32 %v1669, %v1923
        %v1925 = vpop.f32.mrf.mxu0
        %v1926 = vadd.f32 %v1671, %v1925
        %1927 = vmatprep.mubr.bf16.mxu0 0
        %1928 = vmatmul.mubr.bf16.gmra.mxu0 %v1779
        %v1929 = vpop.f32.mrf.mxu0
        %v1930 = vadd.f32 %v1675, %v1929
        %v1931 = vpop.f32.mrf.mxu0
        %v1932 = vadd.f32 %v1677, %v1931
        %v1933 = vpop.f32.mrf.mxu0
        %v1934 = vadd.f32 %v1679, %v1933
        %v1935 = vpop.f32.mrf.mxu0
        %v1936 = vadd.f32 %v1681, %v1935
        %1937 = vmatprep.mubr.bf16.mxu0 0
        %1938 = vmatmul.mubr.bf16.gmra.mxu0 %v1782
        %v1939 = vpop.f32.mrf.mxu0
        %v1940 = vadd.f32 %v1685, %v1939
        %v1941 = vpop.f32.mrf.mxu0
        %v1942 = vadd.f32 %v1687, %v1941
        %v1943 = vpop.f32.mrf.mxu0
        %v1944 = vadd.f32 %v1689, %v1943
        %v1945 = vpop.f32.mrf.mxu0
        %v1946 = vadd.f32 %v1691, %v1945
        %1947 = vmatprep.mubr.bf16.mxu0 0
        %1948 = vmatmul.mubr.bf16.gmra.mxu0 %v1785
        %v1949 = vpop.f32.mrf.mxu0
        %v1950 = vadd.f32 %v1695, %v1949
        %v1951 = vpop.f32.mrf.mxu0
        %v1952 = vadd.f32 %v1697, %v1951
        %v1953 = vpop.f32.mrf.mxu0
        %v1954 = vadd.f32 %v1699, %v1953
        %v1955 = vpop.f32.mrf.mxu0
        %v1956 = vadd.f32 %v1701, %v1955
        %1957 = vmatprep.mubr.bf16.mxu0 0
        %1958 = vmatmul.mubr.bf16.gmra.mxu0 %v1788
        %v1959 = vpop.f32.mrf.mxu0
        %v1960 = vadd.f32 %v1705, %v1959
        %v1961 = vpop.f32.mrf.mxu0
        %v1962 = vadd.f32 %v1707, %v1961
        %v1963 = vpop.f32.mrf.mxu0
        %v1964 = vadd.f32 %v1709, %v1963
        %v1965 = vpop.f32.mrf.mxu0
        %v1966 = vadd.f32 %v1711, %v1965
        %1967 = vmatprep.mubr.bf16.mxu0 0
        %1968 = vmatmul.mubr.bf16.gmra.mxu0 %v1791
        %v1969 = vpop.f32.mrf.mxu0
        %v1970 = vadd.f32 %v1715, %v1969
        %v1971 = vpop.f32.mrf.mxu0
        %v1972 = vadd.f32 %v1717, %v1971
        %v1973 = vpop.f32.mrf.mxu0
        %v1974 = vadd.f32 %v1719, %v1973
        %v1975 = vpop.f32.mrf.mxu0
        %v1976 = vadd.f32 %v1721, %v1975
        %1977 = vmatprep.mubr.bf16.mxu0 0
        %1978 = vmatmul.mubr.bf16.gmra.mxu0 %v1794
        %v1979 = vpop.f32.mrf.mxu0
        %v1980 = vadd.f32 %v1725, %v1979
        %v1981 = vpop.f32.mrf.mxu0
        %v1982 = vadd.f32 %v1727, %v1981
        %v1983 = vpop.f32.mrf.mxu0
        %v1984 = vadd.f32 %v1729, %v1983
        %v1985 = vpop.f32.mrf.mxu0
        %v1986 = vadd.f32 %v1731, %v1985
        %1987 = vmatprep.mubr.bf16.mxu0 0
        %1988 = vmatmul.mubr.bf16.gmra.mxu0 %v1797
        %v1989 = vpop.f32.mrf.mxu0
        %v1990 = vadd.f32 %v1735, %v1989
        %v1991 = vpop.f32.mrf.mxu0
        %v1992 = vadd.f32 %v1737, %v1991
        %v1993 = vpop.f32.mrf.mxu0
        %v1994 = vadd.f32 %v1739, %v1993
        %v1995 = vpop.f32.mrf.mxu0
        %v1996 = vadd.f32 %v1741, %v1995
        %1997 = vdwg.mxu0
        %v1998 = vld [vmem:[#allocation8] sm:$0xf]
        %v1999 = vld [vmem:[#allocation8 + $0x4] sm:$0xf]
        %v2000 = vld [vmem:[#allocation8 + $0x8] sm:$0xf]
        %v2001 = vld [vmem:[#allocation8 + $0xc] sm:$0xf]
        %v2002 = vld [vmem:[#allocation8 + $0x10] sm:$0xf]
        %v2003 = vld [vmem:[#allocation8 + $0x14] sm:$0xf]
        %v2004 = vld [vmem:[#allocation8 + $0x18] sm:$0xf]
        %v2005 = vld [vmem:[#allocation8 + $0x1c] sm:$0xf]
        %v2006 = vld [vmem:[#allocation8 + $0x20] sm:$0xf]
        %v2007 = vld [vmem:[#allocation8 + $0x24] sm:$0xf]
        %v2008 = vld [vmem:[#allocation8 + $0x28] sm:$0xf]
        %v2009 = vld [vmem:[#allocation8 + $0x2c] sm:$0xf]
        %v2010 = vld [vmem:[#allocation8 + $0x30] sm:$0xf]
        %v2011 = vld [vmem:[#allocation8 + $0x34] sm:$0xf]
        %v2012 = vld [vmem:[#allocation8 + $0x38] sm:$0xf]
        %v2013 = vld [vmem:[#allocation8 + $0x3c] sm:$0xf]
        %v2014 = vld [vmem:[#allocation8 + $0x40] sm:$0xf]
        %v2015 = vld [vmem:[#allocation8 + $0x44] sm:$0xf]
        %v2016 = vld [vmem:[#allocation8 + $0x48] sm:$0xf]
        %v2017 = vld [vmem:[#allocation8 + $0x4c] sm:$0xf]
        %v2018 = vld [vmem:[#allocation8 + $0x50] sm:$0xf]
        %v2019 = vld [vmem:[#allocation8 + $0x54] sm:$0xf]
        %v2020 = vld [vmem:[#allocation8 + $0x58] sm:$0xf]
        %v2021 = vld [vmem:[#allocation8 + $0x5c] sm:$0xf]
        %v2022 = vld [vmem:[#allocation8 + $0x60] sm:$0xf]
        %v2023 = vld [vmem:[#allocation8 + $0x64] sm:$0xf]
        %v2024 = vld [vmem:[#allocation8 + $0x68] sm:$0xf]
        %v2025 = vld [vmem:[#allocation8 + $0x6c] sm:$0xf]
        %v2026 = vld [vmem:[#allocation8 + $0x70] sm:$0xf]
        %v2027 = vld [vmem:[#allocation8 + $0x74] sm:$0xf]
        %v2028 = vld [vmem:[#allocation8 + $0x78] sm:$0xf]
        %v2029 = vld [vmem:[#allocation8 + $0x7c] sm:$0xf]
        %v2030 = vld [vmem:[%s560] sm:$0xff]
        %v2031 = vld [vmem:[%s560 + $0x8] sm:$0xff]
        %v2032 = vld [vmem:[%s560 + $0x10] sm:$0xff]
        %v2033 = vld [vmem:[%s560 + $0x18] sm:$0xff]
        %v2034 = vld [vmem:[%s560 + $0x20] sm:$0xff]
        %v2035 = vld [vmem:[%s560 + $0x28] sm:$0xff]
        %v2036 = vld [vmem:[%s560 + $0x30] sm:$0xff]
        %v2037 = vld [vmem:[%s560 + $0x38] sm:$0xff]
        %v2038 = vld [vmem:[%s560 + $0x40] sm:$0xff]
        %v2039 = vld [vmem:[%s560 + $0x48] sm:$0xff]
        %v2040 = vld [vmem:[%s560 + $0x50] sm:$0xff]
        %v2041 = vld [vmem:[%s560 + $0x58] sm:$0xff]
        %v2042 = vld [vmem:[%s560 + $0x60] sm:$0xff]
        %v2043 = vld [vmem:[%s560 + $0x68] sm:$0xff]
        %v2044 = vld [vmem:[%s560 + $0x70] sm:$0xff]
        %v2045 = vld [vmem:[%s560 + $0x78] sm:$0xff]
        %v2078 = vunpack.c.l.b16 %v1998
        %v2079 = vunpack.c.l.b16 %v1999
        %v2080 = vunpack.c.l.b16 %v2000
        %v2081 = vunpack.c.l.b16 %v2001
        %v2082 = vunpack.c.l.b16 %v2002
        %v2083 = vunpack.c.l.b16 %v2003
        %v2084 = vunpack.c.l.b16 %v2004
        %v2085 = vunpack.c.l.b16 %v2005
        %v2086 = vunpack.c.l.b16 %v2006
        %v2087 = vunpack.c.l.b16 %v2007
        %v2088 = vunpack.c.l.b16 %v2008
        %v2089 = vunpack.c.l.b16 %v2009
        %v2090 = vunpack.c.l.b16 %v2010
        %v2091 = vunpack.c.l.b16 %v2011
        %v2092 = vunpack.c.l.b16 %v2012
        %v2093 = vunpack.c.l.b16 %v2013
        %v2094 = vunpack.c.l.b16 %v2014
        %v2095 = vunpack.c.l.b16 %v2015
        %v2096 = vunpack.c.l.b16 %v2016
        %v2097 = vunpack.c.l.b16 %v2017
        %v2098 = vunpack.c.l.b16 %v2018
        %v2099 = vunpack.c.l.b16 %v2019
        %v2100 = vunpack.c.l.b16 %v2020
        %v2101 = vunpack.c.l.b16 %v2021
        %v2102 = vunpack.c.l.b16 %v2022
        %v2103 = vunpack.c.l.b16 %v2023
        %v2104 = vunpack.c.l.b16 %v2024
        %v2105 = vunpack.c.l.b16 %v2025
        %v2106 = vunpack.c.l.b16 %v2026
        %v2107 = vunpack.c.l.b16 %v2027
        %v2108 = vunpack.c.l.b16 %v2028
        %v2109 = vunpack.c.l.b16 %v2029
        %v2110 = vpack.c.b16 %v2079, %v2078
        %v2111 = vpack.c.b16 %v2081, %v2080
        %v2112 = vpack.c.b16 %v2083, %v2082
        %v2113 = vpack.c.b16 %v2085, %v2084
        %v2114 = vpack.c.b16 %v2087, %v2086
        %v2115 = vpack.c.b16 %v2089, %v2088
        %v2116 = vpack.c.b16 %v2091, %v2090
        %v2117 = vpack.c.b16 %v2093, %v2092
        %v2118 = vpack.c.b16 %v2095, %v2094
        %v2119 = vpack.c.b16 %v2097, %v2096
        %v2120 = vpack.c.b16 %v2099, %v2098
        %v2121 = vpack.c.b16 %v2101, %v2100
        %v2122 = vpack.c.b16 %v2103, %v2102
        %v2123 = vpack.c.b16 %v2105, %v2104
        %v2124 = vpack.c.b16 %v2107, %v2106
        %v2125 = vpack.c.b16 %v2109, %v2108
        %v2158 = vunpack.c.l.b16 %v2030
        %v2159 = vunpack.c.h.b16 %v2030
        %v2160 = vunpack.c.l.b16 %v2031
        %v2161 = vunpack.c.h.b16 %v2031
        %v2162 = vunpack.c.l.b16 %v2032
        %v2163 = vunpack.c.h.b16 %v2032
        %v2164 = vunpack.c.l.b16 %v2033
        %v2165 = vunpack.c.h.b16 %v2033
        %v2166 = vunpack.c.l.b16 %v2034
        %v2167 = vunpack.c.h.b16 %v2034
        %v2168 = vunpack.c.l.b16 %v2035
        %v2169 = vunpack.c.h.b16 %v2035
        %v2170 = vunpack.c.l.b16 %v2036
        %v2171 = vunpack.c.h.b16 %v2036
        %v2172 = vunpack.c.l.b16 %v2037
        %v2173 = vunpack.c.h.b16 %v2037
        %v2174 = vunpack.c.l.b16 %v2038
        %v2175 = vunpack.c.h.b16 %v2038
        %v2176 = vunpack.c.l.b16 %v2039
        %v2177 = vunpack.c.h.b16 %v2039
        %v2178 = vunpack.c.l.b16 %v2040
        %v2179 = vunpack.c.h.b16 %v2040
        %v2180 = vunpack.c.l.b16 %v2041
        %v2181 = vunpack.c.h.b16 %v2041
        %v2182 = vunpack.c.l.b16 %v2042
        %v2183 = vunpack.c.h.b16 %v2042
        %v2184 = vunpack.c.l.b16 %v2043
        %v2185 = vunpack.c.h.b16 %v2043
        %v2186 = vunpack.c.l.b16 %v2044
        %v2187 = vunpack.c.h.b16 %v2044
        %v2188 = vunpack.c.l.b16 %v2045
        %v2189 = vunpack.c.h.b16 %v2045
        %v2190 = vpack.c.b16 %v2160, %v2158
        %v2191 = vpack.c.b16 %v2161, %v2159
        %v2192 = vpack.c.b16 %v2164, %v2162
        %v2193 = vpack.c.b16 %v2165, %v2163
        %v2194 = vpack.c.b16 %v2168, %v2166
        %v2195 = vpack.c.b16 %v2169, %v2167
        %v2196 = vpack.c.b16 %v2172, %v2170
        %v2197 = vpack.c.b16 %v2173, %v2171
        %v2198 = vpack.c.b16 %v2176, %v2174
        %v2199 = vpack.c.b16 %v2177, %v2175
        %v2200 = vpack.c.b16 %v2180, %v2178
        %v2201 = vpack.c.b16 %v2181, %v2179
        %v2202 = vpack.c.b16 %v2184, %v2182
        %v2203 = vpack.c.b16 %v2185, %v2183
        %v2204 = vpack.c.b16 %v2188, %v2186
        %v2205 = vpack.c.b16 %v2189, %v2187
        %2222 = vmatprep.subr.bf16.mxu0 %v2205
        %2223 = vmatpush1.bf16.msra.mxu0 %v2204
        %2224 = vmatprep.subr.bf16.mxu0 %v2203
        %2225 = vmatpush1.bf16.msra.mxu0 %v2202
        %2226 = vmatprep.subr.bf16.mxu0 %v2201
        %2227 = vmatpush1.bf16.msra.mxu0 %v2200
        %2228 = vmatprep.subr.bf16.mxu0 %v2199
        %2229 = vmatpush1.bf16.msra.mxu0 %v2198
        %2230 = vmatprep.subr.bf16.mxu0 %v2197
        %2231 = vmatpush1.bf16.msra.mxu0 %v2196
        %2232 = vmatprep.subr.bf16.mxu0 %v2195
        %2233 = vmatpush1.bf16.msra.mxu0 %v2194
        %2234 = vmatprep.subr.bf16.mxu0 %v2193
        %2235 = vmatpush1.bf16.msra.mxu0 %v2192
        %2236 = vmatprep.subr.bf16.mxu0 %v2191
        %2237 = vmatpush1.bf16.msra.mxu0 %v2190
        %2238 = vmatprep.subr.bf16.mxu0 0
        %2239 = vmatpush2.bf16.msra.mxu0 0
        %2240 = vmatprep.subr.bf16.mxu0 0
        %2241 = vmatpush2.bf16.msra.mxu0 0
        %2242 = vmatprep.subr.bf16.mxu0 0
        %2243 = vmatpush2.bf16.msra.mxu0 0
        %2244 = vmatprep.subr.bf16.mxu0 0
        %2245 = vmatpush2.bf16.msra.mxu0 0
        %2246 = vmatprep.subr.bf16.mxu0 0
        %2247 = vmatpush2.bf16.msra.mxu0 0
        %2248 = vmatprep.subr.bf16.mxu0 0
        %2249 = vmatpush2.bf16.msra.mxu0 0
        %2250 = vmatprep.subr.bf16.mxu0 0
        %2251 = vmatpush2.bf16.msra.mxu0 0
        %2252 = vmatprep.subr.bf16.mxu0 0
        %2253 = vmatpush2.bf16.msra.mxu0 0
        %2254 = vmatprep.mubr.bf16.mxu0 0
        %2255 = vmatmul.mubr.bf16.gmra.mxu0 %v2110
        %v2256 = vpop.f32.mrf.mxu0
        %v2257 = vadd.f32 0.0, %v2256
        %v2258 = vpop.f32.mrf.mxu0
        %v2259 = vadd.f32 0.0, %v2258
        %v2260 = vpop.f32.mrf.mxu0
        %v2261 = vadd.f32 0.0, %v2260
        %v2262 = vpop.f32.mrf.mxu0
        %v2263 = vadd.f32 0.0, %v2262
        %2264 = vmatprep.mubr.bf16.mxu0 0
        %2265 = vmatmul.mubr.bf16.gmra.mxu0 %v2111
        %v2266 = vpop.f32.mrf.mxu0
        %v2267 = vadd.f32 0.0, %v2266
        %v2268 = vpop.f32.mrf.mxu0
        %v2269 = vadd.f32 0.0, %v2268
        %v2270 = vpop.f32.mrf.mxu0
        %v2271 = vadd.f32 0.0, %v2270
        %v2272 = vpop.f32.mrf.mxu0
        %v2273 = vadd.f32 0.0, %v2272
        %2274 = vmatprep.mubr.bf16.mxu0 0
        %2275 = vmatmul.mubr.bf16.gmra.mxu0 %v2112
        %v2276 = vpop.f32.mrf.mxu0
        %v2277 = vadd.f32 0.0, %v2276
        %v2278 = vpop.f32.mrf.mxu0
        %v2279 = vadd.f32 0.0, %v2278
        %v2280 = vpop.f32.mrf.mxu0
        %v2281 = vadd.f32 0.0, %v2280
        %v2282 = vpop.f32.mrf.mxu0
        %v2283 = vadd.f32 0.0, %v2282
        %2284 = vmatprep.mubr.bf16.mxu0 0
        %2285 = vmatmul.mubr.bf16.gmra.mxu0 %v2113
        %v2286 = vpop.f32.mrf.mxu0
        %v2287 = vadd.f32 0.0, %v2286
        %v2288 = vpop.f32.mrf.mxu0
        %v2289 = vadd.f32 0.0, %v2288
        %v2290 = vpop.f32.mrf.mxu0
        %v2291 = vadd.f32 0.0, %v2290
        %v2292 = vpop.f32.mrf.mxu0
        %v2293 = vadd.f32 0.0, %v2292
        %2294 = vmatprep.mubr.bf16.mxu0 0
        %2295 = vmatmul.mubr.bf16.gmra.mxu0 %v2114
        %v2296 = vpop.f32.mrf.mxu0
        %v2297 = vadd.f32 0.0, %v2296
        %v2298 = vpop.f32.mrf.mxu0
        %v2299 = vadd.f32 0.0, %v2298
        %v2300 = vpop.f32.mrf.mxu0
        %v2301 = vadd.f32 0.0, %v2300
        %v2302 = vpop.f32.mrf.mxu0
        %v2303 = vadd.f32 0.0, %v2302
        %2304 = vmatprep.mubr.bf16.mxu0 0
        %2305 = vmatmul.mubr.bf16.gmra.mxu0 %v2115
        %v2306 = vpop.f32.mrf.mxu0
        %v2307 = vadd.f32 0.0, %v2306
        %v2308 = vpop.f32.mrf.mxu0
        %v2309 = vadd.f32 0.0, %v2308
        %v2310 = vpop.f32.mrf.mxu0
        %v2311 = vadd.f32 0.0, %v2310
        %v2312 = vpop.f32.mrf.mxu0
        %v2313 = vadd.f32 0.0, %v2312
        %2314 = vmatprep.mubr.bf16.mxu0 0
        %2315 = vmatmul.mubr.bf16.gmra.mxu0 %v2116
        %v2316 = vpop.f32.mrf.mxu0
        %v2317 = vadd.f32 0.0, %v2316
        %v2318 = vpop.f32.mrf.mxu0
        %v2319 = vadd.f32 0.0, %v2318
        %v2320 = vpop.f32.mrf.mxu0
        %v2321 = vadd.f32 0.0, %v2320
        %v2322 = vpop.f32.mrf.mxu0
        %v2323 = vadd.f32 0.0, %v2322
        %2324 = vmatprep.mubr.bf16.mxu0 0
        %2325 = vmatmul.mubr.bf16.gmra.mxu0 %v2117
        %v2326 = vpop.f32.mrf.mxu0
        %v2327 = vadd.f32 0.0, %v2326
        %v2328 = vpop.f32.mrf.mxu0
        %v2329 = vadd.f32 0.0, %v2328
        %v2330 = vpop.f32.mrf.mxu0
        %v2331 = vadd.f32 0.0, %v2330
        %v2332 = vpop.f32.mrf.mxu0
        %v2333 = vadd.f32 0.0, %v2332
        %2334 = vmatprep.mubr.bf16.mxu0 0
        %2335 = vmatmul.mubr.bf16.gmra.mxu0 %v2118
        %v2336 = vpop.f32.mrf.mxu0
        %v2337 = vadd.f32 0.0, %v2336
        %v2338 = vpop.f32.mrf.mxu0
        %v2339 = vadd.f32 0.0, %v2338
        %v2340 = vpop.f32.mrf.mxu0
        %v2341 = vadd.f32 0.0, %v2340
        %v2342 = vpop.f32.mrf.mxu0
        %v2343 = vadd.f32 0.0, %v2342
        %2344 = vmatprep.mubr.bf16.mxu0 0
        %2345 = vmatmul.mubr.bf16.gmra.mxu0 %v2119
        %v2346 = vpop.f32.mrf.mxu0
        %v2347 = vadd.f32 0.0, %v2346
        %v2348 = vpop.f32.mrf.mxu0
        %v2349 = vadd.f32 0.0, %v2348
        %v2350 = vpop.f32.mrf.mxu0
        %v2351 = vadd.f32 0.0, %v2350
        %v2352 = vpop.f32.mrf.mxu0
        %v2353 = vadd.f32 0.0, %v2352
        %2354 = vmatprep.mubr.bf16.mxu0 0
        %2355 = vmatmul.mubr.bf16.gmra.mxu0 %v2120
        %v2356 = vpop.f32.mrf.mxu0
        %v2357 = vadd.f32 0.0, %v2356
        %v2358 = vpop.f32.mrf.mxu0
        %v2359 = vadd.f32 0.0, %v2358
        %v2360 = vpop.f32.mrf.mxu0
        %v2361 = vadd.f32 0.0, %v2360
        %v2362 = vpop.f32.mrf.mxu0
        %v2363 = vadd.f32 0.0, %v2362
        %2364 = vmatprep.mubr.bf16.mxu0 0
        %2365 = vmatmul.mubr.bf16.gmra.mxu0 %v2121
        %v2366 = vpop.f32.mrf.mxu0
        %v2367 = vadd.f32 0.0, %v2366
        %v2368 = vpop.f32.mrf.mxu0
        %v2369 = vadd.f32 0.0, %v2368
        %v2370 = vpop.f32.mrf.mxu0
        %v2371 = vadd.f32 0.0, %v2370
        %v2372 = vpop.f32.mrf.mxu0
        %v2373 = vadd.f32 0.0, %v2372
        %2374 = vmatprep.mubr.bf16.mxu0 0
        %2375 = vmatmul.mubr.bf16.gmra.mxu0 %v2122
        %v2376 = vpop.f32.mrf.mxu0
        %v2377 = vadd.f32 0.0, %v2376
        %v2378 = vpop.f32.mrf.mxu0
        %v2379 = vadd.f32 0.0, %v2378
        %v2380 = vpop.f32.mrf.mxu0
        %v2381 = vadd.f32 0.0, %v2380
        %v2382 = vpop.f32.mrf.mxu0
        %v2383 = vadd.f32 0.0, %v2382
        %2384 = vmatprep.mubr.bf16.mxu0 0
        %2385 = vmatmul.mubr.bf16.gmra.mxu0 %v2123
        %v2386 = vpop.f32.mrf.mxu0
        %v2387 = vadd.f32 0.0, %v2386
        %v2388 = vpop.f32.mrf.mxu0
        %v2389 = vadd.f32 0.0, %v2388
        %v2390 = vpop.f32.mrf.mxu0
        %v2391 = vadd.f32 0.0, %v2390
        %v2392 = vpop.f32.mrf.mxu0
        %v2393 = vadd.f32 0.0, %v2392
        %2394 = vmatprep.mubr.bf16.mxu0 0
        %2395 = vmatmul.mubr.bf16.gmra.mxu0 %v2124
        %v2396 = vpop.f32.mrf.mxu0
        %v2397 = vadd.f32 0.0, %v2396
        %v2398 = vpop.f32.mrf.mxu0
        %v2399 = vadd.f32 0.0, %v2398
        %v2400 = vpop.f32.mrf.mxu0
        %v2401 = vadd.f32 0.0, %v2400
        %v2402 = vpop.f32.mrf.mxu0
        %v2403 = vadd.f32 0.0, %v2402
        %2404 = vmatprep.mubr.bf16.mxu0 0
        %2405 = vmatmul.mubr.bf16.gmra.mxu0 %v2125
        %v2406 = vpop.f32.mrf.mxu0
        %v2407 = vadd.f32 0.0, %v2406
        %v2408 = vpop.f32.mrf.mxu0
        %v2409 = vadd.f32 0.0, %v2408
        %v2410 = vpop.f32.mrf.mxu0
        %v2411 = vadd.f32 0.0, %v2410
        %v2412 = vpop.f32.mrf.mxu0
        %v2413 = vadd.f32 0.0, %v2412
        %2414 = vdwg.mxu0
        %v2415 = vadd.f32 %v1840, %v2257
        %v2416 = vadd.f32 %v1842, %v2259
        %v2417 = vadd.f32 %v1844, %v2261
        %v2418 = vadd.f32 %v1846, %v2263
        %v2419 = vadd.f32 %v1850, %v2267
        %v2420 = vadd.f32 %v1852, %v2269
        %v2421 = vadd.f32 %v1854, %v2271
        %v2422 = vadd.f32 %v1856, %v2273
        %v2423 = vadd.f32 %v1860, %v2277
        %v2424 = vadd.f32 %v1862, %v2279
        %v2425 = vadd.f32 %v1864, %v2281
        %v2426 = vadd.f32 %v1866, %v2283
        %v2427 = vadd.f32 %v1870, %v2287
        %v2428 = vadd.f32 %v1872, %v2289
        %v2429 = vadd.f32 %v1874, %v2291
        %v2430 = vadd.f32 %v1876, %v2293
        %v2431 = vadd.f32 %v1880, %v2297
        %v2432 = vadd.f32 %v1882, %v2299
        %v2433 = vadd.f32 %v1884, %v2301
        %v2434 = vadd.f32 %v1886, %v2303
        %v2435 = vadd.f32 %v1890, %v2307
        %v2436 = vadd.f32 %v1892, %v2309
        %v2437 = vadd.f32 %v1894, %v2311
        %v2438 = vadd.f32 %v1896, %v2313
        %v2439 = vadd.f32 %v1900, %v2317
        %v2440 = vadd.f32 %v1902, %v2319
        %v2441 = vadd.f32 %v1904, %v2321
        %v2442 = vadd.f32 %v1906, %v2323
        %v2443 = vadd.f32 %v1910, %v2327
        %v2444 = vadd.f32 %v1912, %v2329
        %v2445 = vadd.f32 %v1914, %v2331
        %v2446 = vadd.f32 %v1916, %v2333
        %v2447 = vadd.f32 %v1920, %v2337
        %v2448 = vadd.f32 %v1922, %v2339
        %v2449 = vadd.f32 %v1924, %v2341
        %v2450 = vadd.f32 %v1926, %v2343
        %v2451 = vadd.f32 %v1930, %v2347
        %v2452 = vadd.f32 %v1932, %v2349
        %v2453 = vadd.f32 %v1934, %v2351
        %v2454 = vadd.f32 %v1936, %v2353
        %v2455 = vadd.f32 %v1940, %v2357
        %v2456 = vadd.f32 %v1942, %v2359
        %v2457 = vadd.f32 %v1944, %v2361
        %v2458 = vadd.f32 %v1946, %v2363
        %v2459 = vadd.f32 %v1950, %v2367
        %v2460 = vadd.f32 %v1952, %v2369
        %v2461 = vadd.f32 %v1954, %v2371
        %v2462 = vadd.f32 %v1956, %v2373
        %v2463 = vadd.f32 %v1960, %v2377
        %v2464 = vadd.f32 %v1962, %v2379
        %v2465 = vadd.f32 %v1964, %v2381
        %v2466 = vadd.f32 %v1966, %v2383
        %v2467 = vadd.f32 %v1970, %v2387
        %v2468 = vadd.f32 %v1972, %v2389
        %v2469 = vadd.f32 %v1974, %v2391
        %v2470 = vadd.f32 %v1976, %v2393
        %v2471 = vadd.f32 %v1980, %v2397
        %v2472 = vadd.f32 %v1982, %v2399
        %v2473 = vadd.f32 %v1984, %v2401
        %v2474 = vadd.f32 %v1986, %v2403
        %v2475 = vadd.f32 %v1990, %v2407
        %v2476 = vadd.f32 %v1992, %v2409
        %v2477 = vadd.f32 %v1994, %v2411
        %v2478 = vadd.f32 %v1996, %v2413
        %v2479 = vld [vmem:[%s634] sm:$0x3]
        %v2481 = vlaneseq
        %v2482 = vshrl.u32 %v2481, 7
        %v2483 = vsub.s32 0, %v2482
        %v2484 = vrot.slane %v2479, %v2483
        %v2485 = vlaneseq
        %v2486 = vshrl.u32 %v2485, 7
        %v2487 = vsub.s32 1, %v2486
        %v2488 = vrot.slane %v2479, %v2487
        %v2491 = vadd.f32 %v2415, %v2484
        %v2492 = vadd.f32 %v2416, %v2488
        %v2493 = vadd.f32 %v2417, %v2484
        %v2494 = vadd.f32 %v2418, %v2488
        %v2495 = vadd.f32 %v2419, %v2484
        %v2496 = vadd.f32 %v2420, %v2488
        %v2497 = vadd.f32 %v2421, %v2484
        %v2498 = vadd.f32 %v2422, %v2488
        %v2499 = vadd.f32 %v2423, %v2484
        %v2500 = vadd.f32 %v2424, %v2488
        %v2501 = vadd.f32 %v2425, %v2484
        %v2502 = vadd.f32 %v2426, %v2488
        %v2503 = vadd.f32 %v2427, %v2484
        %v2504 = vadd.f32 %v2428, %v2488
        %v2505 = vadd.f32 %v2429, %v2484
        %v2506 = vadd.f32 %v2430, %v2488
        %v2507 = vadd.f32 %v2431, %v2484
        %v2508 = vadd.f32 %v2432, %v2488
        %v2509 = vadd.f32 %v2433, %v2484
        %v2510 = vadd.f32 %v2434, %v2488
        %v2511 = vadd.f32 %v2435, %v2484
        %v2512 = vadd.f32 %v2436, %v2488
        %v2513 = vadd.f32 %v2437, %v2484
        %v2514 = vadd.f32 %v2438, %v2488
        %v2515 = vadd.f32 %v2439, %v2484
        %v2516 = vadd.f32 %v2440, %v2488
        %v2517 = vadd.f32 %v2441, %v2484
        %v2518 = vadd.f32 %v2442, %v2488
        %v2519 = vadd.f32 %v2443, %v2484
        %v2520 = vadd.f32 %v2444, %v2488
        %v2521 = vadd.f32 %v2445, %v2484
        %v2522 = vadd.f32 %v2446, %v2488
        %v2523 = vadd.f32 %v2447, %v2484
        %v2524 = vadd.f32 %v2448, %v2488
        %v2525 = vadd.f32 %v2449, %v2484
        %v2526 = vadd.f32 %v2450, %v2488
        %v2527 = vadd.f32 %v2451, %v2484
        %v2528 = vadd.f32 %v2452, %v2488
        %v2529 = vadd.f32 %v2453, %v2484
        %v2530 = vadd.f32 %v2454, %v2488
        %v2531 = vadd.f32 %v2455, %v2484
        %v2532 = vadd.f32 %v2456, %v2488
        %v2533 = vadd.f32 %v2457, %v2484
        %v2534 = vadd.f32 %v2458, %v2488
        %v2535 = vadd.f32 %v2459, %v2484
        %v2536 = vadd.f32 %v2460, %v2488
        %v2537 = vadd.f32 %v2461, %v2484
        %v2538 = vadd.f32 %v2462, %v2488
        %v2539 = vadd.f32 %v2463, %v2484
        %v2540 = vadd.f32 %v2464, %v2488
        %v2541 = vadd.f32 %v2465, %v2484
        %v2542 = vadd.f32 %v2466, %v2488
        %v2543 = vadd.f32 %v2467, %v2484
        %v2544 = vadd.f32 %v2468, %v2488
        %v2545 = vadd.f32 %v2469, %v2484
        %v2546 = vadd.f32 %v2470, %v2488
        %v2547 = vadd.f32 %v2471, %v2484
        %v2548 = vadd.f32 %v2472, %v2488
        %v2549 = vadd.f32 %v2473, %v2484
        %v2550 = vadd.f32 %v2474, %v2488
        %v2551 = vadd.f32 %v2475, %v2484
        %v2552 = vadd.f32 %v2476, %v2488
        %v2553 = vadd.f32 %v2477, %v2484
        %v2554 = vadd.f32 %v2478, %v2488
        %v2555 = vxor.u32 %v2491, 2147483648
        %v2556 = vxor.u32 %v2493, 2147483648
        %v2557 = vxor.u32 %v2495, 2147483648
        %v2558 = vxor.u32 %v2497, 2147483648
        %v2559 = vxor.u32 %v2499, 2147483648
        %v2560 = vxor.u32 %v2501, 2147483648
        %v2561 = vxor.u32 %v2503, 2147483648
        %v2562 = vxor.u32 %v2505, 2147483648
        %v2563 = vxor.u32 %v2507, 2147483648
        %v2564 = vxor.u32 %v2509, 2147483648
        %v2565 = vxor.u32 %v2511, 2147483648
        %v2566 = vxor.u32 %v2513, 2147483648
        %v2567 = vxor.u32 %v2515, 2147483648
        %v2568 = vxor.u32 %v2517, 2147483648
        %v2569 = vxor.u32 %v2519, 2147483648
        %v2570 = vxor.u32 %v2521, 2147483648
        %v2571 = vxor.u32 %v2523, 2147483648
        %v2572 = vxor.u32 %v2525, 2147483648
        %v2573 = vxor.u32 %v2527, 2147483648
        %v2574 = vxor.u32 %v2529, 2147483648
        %v2575 = vxor.u32 %v2531, 2147483648
        %v2576 = vxor.u32 %v2533, 2147483648
        %v2577 = vxor.u32 %v2535, 2147483648
        %v2578 = vxor.u32 %v2537, 2147483648
        %v2579 = vxor.u32 %v2539, 2147483648
        %v2580 = vxor.u32 %v2541, 2147483648
        %v2581 = vxor.u32 %v2543, 2147483648
        %v2582 = vxor.u32 %v2545, 2147483648
        %v2583 = vxor.u32 %v2547, 2147483648
        %v2584 = vxor.u32 %v2549, 2147483648
        %v2585 = vxor.u32 %v2551, 2147483648
        %v2586 = vxor.u32 %v2553, 2147483648
        %v2587 = vmul.f32 %v2555, 1.442695
        %v2588 = vpow.pop %v2587
        %v2589 = vmul.f32 %v2556, 1.442695
        %v2590 = vpow.pop %v2589
        %v2591 = vmul.f32 %v2557, 1.442695
        %v2592 = vpow.pop %v2591
        %v2593 = vmul.f32 %v2558, 1.442695
        %v2594 = vpow.pop %v2593
        %v2595 = vmul.f32 %v2559, 1.442695
        %v2596 = vpow.pop %v2595
        %v2597 = vmul.f32 %v2560, 1.442695
        %v2598 = vpow.pop %v2597
        %v2599 = vmul.f32 %v2561, 1.442695
        %v2600 = vpow.pop %v2599
        %v2601 = vmul.f32 %v2562, 1.442695
        %v2602 = vpow.pop %v2601
        %v2603 = vmul.f32 %v2563, 1.442695
        %v2604 = vpow.pop %v2603
        %v2605 = vmul.f32 %v2564, 1.442695
        %v2606 = vpow.pop %v2605
        %v2607 = vmul.f32 %v2565, 1.442695
        %v2608 = vpow.pop %v2607
        %v2609 = vmul.f32 %v2566, 1.442695
        %v2610 = vpow.pop %v2609
        %v2611 = vmul.f32 %v2567, 1.442695
        %v2612 = vpow.pop %v2611
        %v2613 = vmul.f32 %v2568, 1.442695
        %v2614 = vpow.pop %v2613
        %v2615 = vmul.f32 %v2569, 1.442695
        %v2616 = vpow.pop %v2615
        %v2617 = vmul.f32 %v2570, 1.442695
        %v2618 = vpow.pop %v2617
        %v2619 = vmul.f32 %v2571, 1.442695
        %v2620 = vpow.pop %v2619
        %v2621 = vmul.f32 %v2572, 1.442695
        %v2622 = vpow.pop %v2621
        %v2623 = vmul.f32 %v2573, 1.442695
        %v2624 = vpow.pop %v2623
        %v2625 = vmul.f32 %v2574, 1.442695
        %v2626 = vpow.pop %v2625
        %v2627 = vmul.f32 %v2575, 1.442695
        %v2628 = vpow.pop %v2627
        %v2629 = vmul.f32 %v2576, 1.442695
        %v2630 = vpow.pop %v2629
        %v2631 = vmul.f32 %v2577, 1.442695
        %v2632 = vpow.pop %v2631
        %v2633 = vmul.f32 %v2578, 1.442695
        %v2634 = vpow.pop %v2633
        %v2635 = vmul.f32 %v2579, 1.442695
        %v2636 = vpow.pop %v2635
        %v2637 = vmul.f32 %v2580, 1.442695
        %v2638 = vpow.pop %v2637
        %v2639 = vmul.f32 %v2581, 1.442695
        %v2640 = vpow.pop %v2639
        %v2641 = vmul.f32 %v2582, 1.442695
        %v2642 = vpow.pop %v2641
        %v2643 = vmul.f32 %v2583, 1.442695
        %v2644 = vpow.pop %v2643
        %v2645 = vmul.f32 %v2584, 1.442695
        %v2646 = vpow.pop %v2645
        %v2647 = vmul.f32 %v2585, 1.442695
        %v2648 = vpow.pop %v2647
        %v2649 = vmul.f32 %v2586, 1.442695
        %v2650 = vpow.pop %v2649
        %v2651 = vadd.f32 %v2588, 1.0
        %v2652 = vadd.f32 %v2590, 1.0
        %v2653 = vadd.f32 %v2592, 1.0
        %v2654 = vadd.f32 %v2594, 1.0
        %v2655 = vadd.f32 %v2596, 1.0
        %v2656 = vadd.f32 %v2598, 1.0
        %v2657 = vadd.f32 %v2600, 1.0
        %v2658 = vadd.f32 %v2602, 1.0
        %v2659 = vadd.f32 %v2604, 1.0
        %v2660 = vadd.f32 %v2606, 1.0
        %v2661 = vadd.f32 %v2608, 1.0
        %v2662 = vadd.f32 %v2610, 1.0
        %v2663 = vadd.f32 %v2612, 1.0
        %v2664 = vadd.f32 %v2614, 1.0
        %v2665 = vadd.f32 %v2616, 1.0
        %v2666 = vadd.f32 %v2618, 1.0
        %v2667 = vadd.f32 %v2620, 1.0
        %v2668 = vadd.f32 %v2622, 1.0
        %v2669 = vadd.f32 %v2624, 1.0
        %v2670 = vadd.f32 %v2626, 1.0
        %v2671 = vadd.f32 %v2628, 1.0
        %v2672 = vadd.f32 %v2630, 1.0
        %v2673 = vadd.f32 %v2632, 1.0
        %v2674 = vadd.f32 %v2634, 1.0
        %v2675 = vadd.f32 %v2636, 1.0
        %v2676 = vadd.f32 %v2638, 1.0
        %v2677 = vadd.f32 %v2640, 1.0
        %v2678 = vadd.f32 %v2642, 1.0
        %v2679 = vadd.f32 %v2644, 1.0
        %v2680 = vadd.f32 %v2646, 1.0
        %v2681 = vadd.f32 %v2648, 1.0
        %v2682 = vadd.f32 %v2650, 1.0
        %v2683 = vrcp.pop %v2651
        %v2684 = vmul.f32 1.0, %v2683
        %v2685 = vrcp.pop %v2652
        %v2686 = vmul.f32 1.0, %v2685
        %v2687 = vrcp.pop %v2653
        %v2688 = vmul.f32 1.0, %v2687
        %v2689 = vrcp.pop %v2654
        %v2690 = vmul.f32 1.0, %v2689
        %v2691 = vrcp.pop %v2655
        %v2692 = vmul.f32 1.0, %v2691
        %v2693 = vrcp.pop %v2656
        %v2694 = vmul.f32 1.0, %v2693
        %v2695 = vrcp.pop %v2657
        %v2696 = vmul.f32 1.0, %v2695
        %v2697 = vrcp.pop %v2658
        %v2698 = vmul.f32 1.0, %v2697
        %v2699 = vrcp.pop %v2659
        %v2700 = vmul.f32 1.0, %v2699
        %v2701 = vrcp.pop %v2660
        %v2702 = vmul.f32 1.0, %v2701
        %v2703 = vrcp.pop %v2661
        %v2704 = vmul.f32 1.0, %v2703
        %v2705 = vrcp.pop %v2662
        %v2706 = vmul.f32 1.0, %v2705
        %v2707 = vrcp.pop %v2663
        %v2708 = vmul.f32 1.0, %v2707
        %v2709 = vrcp.pop %v2664
        %v2710 = vmul.f32 1.0, %v2709
        %v2711 = vrcp.pop %v2665
        %v2712 = vmul.f32 1.0, %v2711
        %v2713 = vrcp.pop %v2666
        %v2714 = vmul.f32 1.0, %v2713
        %v2715 = vrcp.pop %v2667
        %v2716 = vmul.f32 1.0, %v2715
        %v2717 = vrcp.pop %v2668
        %v2718 = vmul.f32 1.0, %v2717
        %v2719 = vrcp.pop %v2669
        %v2720 = vmul.f32 1.0, %v2719
        %v2721 = vrcp.pop %v2670
        %v2722 = vmul.f32 1.0, %v2721
        %v2723 = vrcp.pop %v2671
        %v2724 = vmul.f32 1.0, %v2723
        %v2725 = vrcp.pop %v2672
        %v2726 = vmul.f32 1.0, %v2725
        %v2727 = vrcp.pop %v2673
        %v2728 = vmul.f32 1.0, %v2727
        %v2729 = vrcp.pop %v2674
        %v2730 = vmul.f32 1.0, %v2729
        %v2731 = vrcp.pop %v2675
        %v2732 = vmul.f32 1.0, %v2731
        %v2733 = vrcp.pop %v2676
        %v2734 = vmul.f32 1.0, %v2733
        %v2735 = vrcp.pop %v2677
        %v2736 = vmul.f32 1.0, %v2735
        %v2737 = vrcp.pop %v2678
        %v2738 = vmul.f32 1.0, %v2737
        %v2739 = vrcp.pop %v2679
        %v2740 = vmul.f32 1.0, %v2739
        %v2741 = vrcp.pop %v2680
        %v2742 = vmul.f32 1.0, %v2741
        %v2743 = vrcp.pop %v2681
        %v2744 = vmul.f32 1.0, %v2743
        %v2745 = vrcp.pop %v2682
        %v2746 = vmul.f32 1.0, %v2745
        %vm2747 = vcmp.gt.f32.partialorder %v2492, 20.0
        %vm2748 = vcmp.gt.f32.partialorder %v2494, 20.0
        %vm2749 = vcmp.gt.f32.partialorder %v2496, 20.0
        %vm2750 = vcmp.gt.f32.partialorder %v2498, 20.0
        %vm2751 = vcmp.gt.f32.partialorder %v2500, 20.0
        %vm2752 = vcmp.gt.f32.partialorder %v2502, 20.0
        %vm2753 = vcmp.gt.f32.partialorder %v2504, 20.0
        %vm2754 = vcmp.gt.f32.partialorder %v2506, 20.0
        %vm2755 = vcmp.gt.f32.partialorder %v2508, 20.0
        %vm2756 = vcmp.gt.f32.partialorder %v2510, 20.0
        %vm2757 = vcmp.gt.f32.partialorder %v2512, 20.0
        %vm2758 = vcmp.gt.f32.partialorder %v2514, 20.0
        %vm2759 = vcmp.gt.f32.partialorder %v2516, 20.0
        %vm2760 = vcmp.gt.f32.partialorder %v2518, 20.0
        %vm2761 = vcmp.gt.f32.partialorder %v2520, 20.0
        %vm2762 = vcmp.gt.f32.partialorder %v2522, 20.0
        %vm2763 = vcmp.gt.f32.partialorder %v2524, 20.0
        %vm2764 = vcmp.gt.f32.partialorder %v2526, 20.0
        %vm2765 = vcmp.gt.f32.partialorder %v2528, 20.0
        %vm2766 = vcmp.gt.f32.partialorder %v2530, 20.0
        %vm2767 = vcmp.gt.f32.partialorder %v2532, 20.0
        %vm2768 = vcmp.gt.f32.partialorder %v2534, 20.0
        %vm2769 = vcmp.gt.f32.partialorder %v2536, 20.0
        %vm2770 = vcmp.gt.f32.partialorder %v2538, 20.0
        %vm2771 = vcmp.gt.f32.partialorder %v2540, 20.0
        %vm2772 = vcmp.gt.f32.partialorder %v2542, 20.0
        %vm2773 = vcmp.gt.f32.partialorder %v2544, 20.0
        %vm2774 = vcmp.gt.f32.partialorder %v2546, 20.0
        %vm2775 = vcmp.gt.f32.partialorder %v2548, 20.0
        %vm2776 = vcmp.gt.f32.partialorder %v2550, 20.0
        %vm2777 = vcmp.gt.f32.partialorder %v2552, 20.0
        %vm2778 = vcmp.gt.f32.partialorder %v2554, 20.0
        %v2779 = vmin.f32 %v2492, 20.0
        %v2780 = vmin.f32 %v2494, 20.0
        %v2781 = vmin.f32 %v2496, 20.0
        %v2782 = vmin.f32 %v2498, 20.0
        %v2783 = vmin.f32 %v2500, 20.0
        %v2784 = vmin.f32 %v2502, 20.0
        %v2785 = vmin.f32 %v2504, 20.0
        %v2786 = vmin.f32 %v2506, 20.0
        %v2787 = vmin.f32 %v2508, 20.0
        %v2788 = vmin.f32 %v2510, 20.0
        %v2789 = vmin.f32 %v2512, 20.0
        %v2790 = vmin.f32 %v2514, 20.0
        %v2791 = vmin.f32 %v2516, 20.0
        %v2792 = vmin.f32 %v2518, 20.0
        %v2793 = vmin.f32 %v2520, 20.0
        %v2794 = vmin.f32 %v2522, 20.0
        %v2795 = vmin.f32 %v2524, 20.0
        %v2796 = vmin.f32 %v2526, 20.0
        %v2797 = vmin.f32 %v2528, 20.0
        %v2798 = vmin.f32 %v2530, 20.0
        %v2799 = vmin.f32 %v2532, 20.0
        %v2800 = vmin.f32 %v2534, 20.0
        %v2801 = vmin.f32 %v2536, 20.0
        %v2802 = vmin.f32 %v2538, 20.0
        %v2803 = vmin.f32 %v2540, 20.0
        %v2804 = vmin.f32 %v2542, 20.0
        %v2805 = vmin.f32 %v2544, 20.0
        %v2806 = vmin.f32 %v2546, 20.0
        %v2807 = vmin.f32 %v2548, 20.0
        %v2808 = vmin.f32 %v2550, 20.0
        %v2809 = vmin.f32 %v2552, 20.0
        %v2810 = vmin.f32 %v2554, 20.0
        %v2811 = vmul.f32 %v2779, 1.442695
        %v2812 = vpow.pop %v2811
        %v2813 = vmul.f32 %v2780, 1.442695
        %v2814 = vpow.pop %v2813
        %v2815 = vmul.f32 %v2781, 1.442695
        %v2816 = vpow.pop %v2815
        %v2817 = vmul.f32 %v2782, 1.442695
        %v2818 = vpow.pop %v2817
        %v2819 = vmul.f32 %v2783, 1.442695
        %v2820 = vpow.pop %v2819
        %v2821 = vmul.f32 %v2784, 1.442695
        %v2822 = vpow.pop %v2821
        %v2823 = vmul.f32 %v2785, 1.442695
        %v2824 = vpow.pop %v2823
        %v2825 = vmul.f32 %v2786, 1.442695
        %v2826 = vpow.pop %v2825
        %v2827 = vmul.f32 %v2787, 1.442695
        %v2828 = vpow.pop %v2827
        %v2829 = vmul.f32 %v2788, 1.442695
        %v2830 = vpow.pop %v2829
        %v2831 = vmul.f32 %v2789, 1.442695
        %v2832 = vpow.pop %v2831
        %v2833 = vmul.f32 %v2790, 1.442695
        %v2834 = vpow.pop %v2833
        %v2835 = vmul.f32 %v2791, 1.442695
        %v2836 = vpow.pop %v2835
        %v2837 = vmul.f32 %v2792, 1.442695
        %v2838 = vpow.pop %v2837
        %v2839 = vmul.f32 %v2793, 1.442695
        %v2840 = vpow.pop %v2839
        %v2841 = vmul.f32 %v2794, 1.442695
        %v2842 = vpow.pop %v2841
        %v2843 = vmul.f32 %v2795, 1.442695
        %v2844 = vpow.pop %v2843
        %v2845 = vmul.f32 %v2796, 1.442695
        %v2846 = vpow.pop %v2845
        %v2847 = vmul.f32 %v2797, 1.442695
        %v2848 = vpow.pop %v2847
        %v2849 = vmul.f32 %v2798, 1.442695
        %v2850 = vpow.pop %v2849
        %v2851 = vmul.f32 %v2799, 1.442695
        %v2852 = vpow.pop %v2851
        %v2853 = vmul.f32 %v2800, 1.442695
        %v2854 = vpow.pop %v2853
        %v2855 = vmul.f32 %v2801, 1.442695
        %v2856 = vpow.pop %v2855
        %v2857 = vmul.f32 %v2802, 1.442695
        %v2858 = vpow.pop %v2857
        %v2859 = vmul.f32 %v2803, 1.442695
        %v2860 = vpow.pop %v2859
        %v2861 = vmul.f32 %v2804, 1.442695
        %v2862 = vpow.pop %v2861
        %v2863 = vmul.f32 %v2805, 1.442695
        %v2864 = vpow.pop %v2863
        %v2865 = vmul.f32 %v2806, 1.442695
        %v2866 = vpow.pop %v2865
        %v2867 = vmul.f32 %v2807, 1.442695
        %v2868 = vpow.pop %v2867
        %v2869 = vmul.f32 %v2808, 1.442695
        %v2870 = vpow.pop %v2869
        %v2871 = vmul.f32 %v2809, 1.442695
        %v2872 = vpow.pop %v2871
        %v2873 = vmul.f32 %v2810, 1.442695
        %v2874 = vpow.pop %v2873
        %v2875 = vadd.f32 %v2812, 1.0
        %v2876 = vlog2.pop %v2875
        %v2877 = vmul.f32 %v2876, 0.6931472
        %v2878 = vmul.f32 -0.5, %v2812
        %v2879 = vadd.f32 %v2878, 1.0
        %v2880 = vmul.f32 %v2879, %v2812
        %v2881 = vand.u32 2147483647, %v2812
        %vm2882 = vcmp.lt.f32.partialorder %v2881, 0.0004427343
        %v2883 = vsel %vm2882, %v2880, %v2877
        %v2884 = vadd.f32 %v2814, 1.0
        %v2885 = vlog2.pop %v2884
        %v2886 = vmul.f32 %v2885, 0.6931472
        %v2887 = vmul.f32 -0.5, %v2814
        %v2888 = vadd.f32 %v2887, 1.0
        %v2889 = vmul.f32 %v2888, %v2814
        %v2890 = vand.u32 2147483647, %v2814
        %vm2891 = vcmp.lt.f32.partialorder %v2890, 0.0004427343
        %v2892 = vsel %vm2891, %v2889, %v2886
        %v2893 = vadd.f32 %v2816, 1.0
        %v2894 = vlog2.pop %v2893
        %v2895 = vmul.f32 %v2894, 0.6931472
        %v2896 = vmul.f32 -0.5, %v2816
        %v2897 = vadd.f32 %v2896, 1.0
        %v2898 = vmul.f32 %v2897, %v2816
        %v2899 = vand.u32 2147483647, %v2816
        %vm2900 = vcmp.lt.f32.partialorder %v2899, 0.0004427343
        %v2901 = vsel %vm2900, %v2898, %v2895
        %v2902 = vadd.f32 %v2818, 1.0
        %v2903 = vlog2.pop %v2902
        %v2904 = vmul.f32 %v2903, 0.6931472
        %v2905 = vmul.f32 -0.5, %v2818
        %v2906 = vadd.f32 %v2905, 1.0
        %v2907 = vmul.f32 %v2906, %v2818
        %v2908 = vand.u32 2147483647, %v2818
        %vm2909 = vcmp.lt.f32.partialorder %v2908, 0.0004427343
        %v2910 = vsel %vm2909, %v2907, %v2904
        %v2911 = vadd.f32 %v2820, 1.0
        %v2912 = vlog2.pop %v2911
        %v2913 = vmul.f32 %v2912, 0.6931472
        %v2914 = vmul.f32 -0.5, %v2820
        %v2915 = vadd.f32 %v2914, 1.0
        %v2916 = vmul.f32 %v2915, %v2820
        %v2917 = vand.u32 2147483647, %v2820
        %vm2918 = vcmp.lt.f32.partialorder %v2917, 0.0004427343
        %v2919 = vsel %vm2918, %v2916, %v2913
        %v2920 = vadd.f32 %v2822, 1.0
        %v2921 = vlog2.pop %v2920
        %v2922 = vmul.f32 %v2921, 0.6931472
        %v2923 = vmul.f32 -0.5, %v2822
        %v2924 = vadd.f32 %v2923, 1.0
        %v2925 = vmul.f32 %v2924, %v2822
        %v2926 = vand.u32 2147483647, %v2822
        %vm2927 = vcmp.lt.f32.partialorder %v2926, 0.0004427343
        %v2928 = vsel %vm2927, %v2925, %v2922
        %v2929 = vadd.f32 %v2824, 1.0
        %v2930 = vlog2.pop %v2929
        %v2931 = vmul.f32 %v2930, 0.6931472
        %v2932 = vmul.f32 -0.5, %v2824
        %v2933 = vadd.f32 %v2932, 1.0
        %v2934 = vmul.f32 %v2933, %v2824
        %v2935 = vand.u32 2147483647, %v2824
        %vm2936 = vcmp.lt.f32.partialorder %v2935, 0.0004427343
        %v2937 = vsel %vm2936, %v2934, %v2931
        %v2938 = vadd.f32 %v2826, 1.0
        %v2939 = vlog2.pop %v2938
        %v2940 = vmul.f32 %v2939, 0.6931472
        %v2941 = vmul.f32 -0.5, %v2826
        %v2942 = vadd.f32 %v2941, 1.0
        %v2943 = vmul.f32 %v2942, %v2826
        %v2944 = vand.u32 2147483647, %v2826
        %vm2945 = vcmp.lt.f32.partialorder %v2944, 0.0004427343
        %v2946 = vsel %vm2945, %v2943, %v2940
        %v2947 = vadd.f32 %v2828, 1.0
        %v2948 = vlog2.pop %v2947
        %v2949 = vmul.f32 %v2948, 0.6931472
        %v2950 = vmul.f32 -0.5, %v2828
        %v2951 = vadd.f32 %v2950, 1.0
        %v2952 = vmul.f32 %v2951, %v2828
        %v2953 = vand.u32 2147483647, %v2828
        %vm2954 = vcmp.lt.f32.partialorder %v2953, 0.0004427343
        %v2955 = vsel %vm2954, %v2952, %v2949
        %v2956 = vadd.f32 %v2830, 1.0
        %v2957 = vlog2.pop %v2956
        %v2958 = vmul.f32 %v2957, 0.6931472
        %v2959 = vmul.f32 -0.5, %v2830
        %v2960 = vadd.f32 %v2959, 1.0
        %v2961 = vmul.f32 %v2960, %v2830
        %v2962 = vand.u32 2147483647, %v2830
        %vm2963 = vcmp.lt.f32.partialorder %v2962, 0.0004427343
        %v2964 = vsel %vm2963, %v2961, %v2958
        %v2965 = vadd.f32 %v2832, 1.0
        %v2966 = vlog2.pop %v2965
        %v2967 = vmul.f32 %v2966, 0.6931472
        %v2968 = vmul.f32 -0.5, %v2832
        %v2969 = vadd.f32 %v2968, 1.0
        %v2970 = vmul.f32 %v2969, %v2832
        %v2971 = vand.u32 2147483647, %v2832
        %vm2972 = vcmp.lt.f32.partialorder %v2971, 0.0004427343
        %v2973 = vsel %vm2972, %v2970, %v2967
        %v2974 = vadd.f32 %v2834, 1.0
        %v2975 = vlog2.pop %v2974
        %v2976 = vmul.f32 %v2975, 0.6931472
        %v2977 = vmul.f32 -0.5, %v2834
        %v2978 = vadd.f32 %v2977, 1.0
        %v2979 = vmul.f32 %v2978, %v2834
        %v2980 = vand.u32 2147483647, %v2834
        %vm2981 = vcmp.lt.f32.partialorder %v2980, 0.0004427343
        %v2982 = vsel %vm2981, %v2979, %v2976
        %v2983 = vadd.f32 %v2836, 1.0
        %v2984 = vlog2.pop %v2983
        %v2985 = vmul.f32 %v2984, 0.6931472
        %v2986 = vmul.f32 -0.5, %v2836
        %v2987 = vadd.f32 %v2986, 1.0
        %v2988 = vmul.f32 %v2987, %v2836
        %v2989 = vand.u32 2147483647, %v2836
        %vm2990 = vcmp.lt.f32.partialorder %v2989, 0.0004427343
        %v2991 = vsel %vm2990, %v2988, %v2985
        %v2992 = vadd.f32 %v2838, 1.0
        %v2993 = vlog2.pop %v2992
        %v2994 = vmul.f32 %v2993, 0.6931472
        %v2995 = vmul.f32 -0.5, %v2838
        %v2996 = vadd.f32 %v2995, 1.0
        %v2997 = vmul.f32 %v2996, %v2838
        %v2998 = vand.u32 2147483647, %v2838
        %vm2999 = vcmp.lt.f32.partialorder %v2998, 0.0004427343
        %v3000 = vsel %vm2999, %v2997, %v2994
        %v3001 = vadd.f32 %v2840, 1.0
        %v3002 = vlog2.pop %v3001
        %v3003 = vmul.f32 %v3002, 0.6931472
        %v3004 = vmul.f32 -0.5, %v2840
        %v3005 = vadd.f32 %v3004, 1.0
        %v3006 = vmul.f32 %v3005, %v2840
        %v3007 = vand.u32 2147483647, %v2840
        %vm3008 = vcmp.lt.f32.partialorder %v3007, 0.0004427343
        %v3009 = vsel %vm3008, %v3006, %v3003
        %v3010 = vadd.f32 %v2842, 1.0
        %v3011 = vlog2.pop %v3010
        %v3012 = vmul.f32 %v3011, 0.6931472
        %v3013 = vmul.f32 -0.5, %v2842
        %v3014 = vadd.f32 %v3013, 1.0
        %v3015 = vmul.f32 %v3014, %v2842
        %v3016 = vand.u32 2147483647, %v2842
        %vm3017 = vcmp.lt.f32.partialorder %v3016, 0.0004427343
        %v3018 = vsel %vm3017, %v3015, %v3012
        %v3019 = vadd.f32 %v2844, 1.0
        %v3020 = vlog2.pop %v3019
        %v3021 = vmul.f32 %v3020, 0.6931472
        %v3022 = vmul.f32 -0.5, %v2844
        %v3023 = vadd.f32 %v3022, 1.0
        %v3024 = vmul.f32 %v3023, %v2844
        %v3025 = vand.u32 2147483647, %v2844
        %vm3026 = vcmp.lt.f32.partialorder %v3025, 0.0004427343
        %v3027 = vsel %vm3026, %v3024, %v3021
        %v3028 = vadd.f32 %v2846, 1.0
        %v3029 = vlog2.pop %v3028
        %v3030 = vmul.f32 %v3029, 0.6931472
        %v3031 = vmul.f32 -0.5, %v2846
        %v3032 = vadd.f32 %v3031, 1.0
        %v3033 = vmul.f32 %v3032, %v2846
        %v3034 = vand.u32 2147483647, %v2846
        %vm3035 = vcmp.lt.f32.partialorder %v3034, 0.0004427343
        %v3036 = vsel %vm3035, %v3033, %v3030
        %v3037 = vadd.f32 %v2848, 1.0
        %v3038 = vlog2.pop %v3037
        %v3039 = vmul.f32 %v3038, 0.6931472
        %v3040 = vmul.f32 -0.5, %v2848
        %v3041 = vadd.f32 %v3040, 1.0
        %v3042 = vmul.f32 %v3041, %v2848
        %v3043 = vand.u32 2147483647, %v2848
        %vm3044 = vcmp.lt.f32.partialorder %v3043, 0.0004427343
        %v3045 = vsel %vm3044, %v3042, %v3039
        %v3046 = vadd.f32 %v2850, 1.0
        %v3047 = vlog2.pop %v3046
        %v3048 = vmul.f32 %v3047, 0.6931472
        %v3049 = vmul.f32 -0.5, %v2850
        %v3050 = vadd.f32 %v3049, 1.0
        %v3051 = vmul.f32 %v3050, %v2850
        %v3052 = vand.u32 2147483647, %v2850
        %vm3053 = vcmp.lt.f32.partialorder %v3052, 0.0004427343
        %v3054 = vsel %vm3053, %v3051, %v3048
        %v3055 = vadd.f32 %v2852, 1.0
        %v3056 = vlog2.pop %v3055
        %v3057 = vmul.f32 %v3056, 0.6931472
        %v3058 = vmul.f32 -0.5, %v2852
        %v3059 = vadd.f32 %v3058, 1.0
        %v3060 = vmul.f32 %v3059, %v2852
        %v3061 = vand.u32 2147483647, %v2852
        %vm3062 = vcmp.lt.f32.partialorder %v3061, 0.0004427343
        %v3063 = vsel %vm3062, %v3060, %v3057
        %v3064 = vadd.f32 %v2854, 1.0
        %v3065 = vlog2.pop %v3064
        %v3066 = vmul.f32 %v3065, 0.6931472
        %v3067 = vmul.f32 -0.5, %v2854
        %v3068 = vadd.f32 %v3067, 1.0
        %v3069 = vmul.f32 %v3068, %v2854
        %v3070 = vand.u32 2147483647, %v2854
        %vm3071 = vcmp.lt.f32.partialorder %v3070, 0.0004427343
        %v3072 = vsel %vm3071, %v3069, %v3066
        %v3073 = vadd.f32 %v2856, 1.0
        %v3074 = vlog2.pop %v3073
        %v3075 = vmul.f32 %v3074, 0.6931472
        %v3076 = vmul.f32 -0.5, %v2856
        %v3077 = vadd.f32 %v3076, 1.0
        %v3078 = vmul.f32 %v3077, %v2856
        %v3079 = vand.u32 2147483647, %v2856
        %vm3080 = vcmp.lt.f32.partialorder %v3079, 0.0004427343
        %v3081 = vsel %vm3080, %v3078, %v3075
        %v3082 = vadd.f32 %v2858, 1.0
        %v3083 = vlog2.pop %v3082
        %v3084 = vmul.f32 %v3083, 0.6931472
        %v3085 = vmul.f32 -0.5, %v2858
        %v3086 = vadd.f32 %v3085, 1.0
        %v3087 = vmul.f32 %v3086, %v2858
        %v3088 = vand.u32 2147483647, %v2858
        %vm3089 = vcmp.lt.f32.partialorder %v3088, 0.0004427343
        %v3090 = vsel %vm3089, %v3087, %v3084
        %v3091 = vadd.f32 %v2860, 1.0
        %v3092 = vlog2.pop %v3091
        %v3093 = vmul.f32 %v3092, 0.6931472
        %v3094 = vmul.f32 -0.5, %v2860
        %v3095 = vadd.f32 %v3094, 1.0
        %v3096 = vmul.f32 %v3095, %v2860
        %v3097 = vand.u32 2147483647, %v2860
        %vm3098 = vcmp.lt.f32.partialorder %v3097, 0.0004427343
        %v3099 = vsel %vm3098, %v3096, %v3093
        %v3100 = vadd.f32 %v2862, 1.0
        %v3101 = vlog2.pop %v3100
        %v3102 = vmul.f32 %v3101, 0.6931472
        %v3103 = vmul.f32 -0.5, %v2862
        %v3104 = vadd.f32 %v3103, 1.0
        %v3105 = vmul.f32 %v3104, %v2862
        %v3106 = vand.u32 2147483647, %v2862
        %vm3107 = vcmp.lt.f32.partialorder %v3106, 0.0004427343
        %v3108 = vsel %vm3107, %v3105, %v3102
        %v3109 = vadd.f32 %v2864, 1.0
        %v3110 = vlog2.pop %v3109
        %v3111 = vmul.f32 %v3110, 0.6931472
        %v3112 = vmul.f32 -0.5, %v2864
        %v3113 = vadd.f32 %v3112, 1.0
        %v3114 = vmul.f32 %v3113, %v2864
        %v3115 = vand.u32 2147483647, %v2864
        %vm3116 = vcmp.lt.f32.partialorder %v3115, 0.0004427343
        %v3117 = vsel %vm3116, %v3114, %v3111
        %v3118 = vadd.f32 %v2866, 1.0
        %v3119 = vlog2.pop %v3118
        %v3120 = vmul.f32 %v3119, 0.6931472
        %v3121 = vmul.f32 -0.5, %v2866
        %v3122 = vadd.f32 %v3121, 1.0
        %v3123 = vmul.f32 %v3122, %v2866
        %v3124 = vand.u32 2147483647, %v2866
        %vm3125 = vcmp.lt.f32.partialorder %v3124, 0.0004427343
        %v3126 = vsel %vm3125, %v3123, %v3120
        %v3127 = vadd.f32 %v2868, 1.0
        %v3128 = vlog2.pop %v3127
        %v3129 = vmul.f32 %v3128, 0.6931472
        %v3130 = vmul.f32 -0.5, %v2868
        %v3131 = vadd.f32 %v3130, 1.0
        %v3132 = vmul.f32 %v3131, %v2868
        %v3133 = vand.u32 2147483647, %v2868
        %vm3134 = vcmp.lt.f32.partialorder %v3133, 0.0004427343
        %v3135 = vsel %vm3134, %v3132, %v3129
        %v3136 = vadd.f32 %v2870, 1.0
        %v3137 = vlog2.pop %v3136
        %v3138 = vmul.f32 %v3137, 0.6931472
        %v3139 = vmul.f32 -0.5, %v2870
        %v3140 = vadd.f32 %v3139, 1.0
        %v3141 = vmul.f32 %v3140, %v2870
        %v3142 = vand.u32 2147483647, %v2870
        %vm3143 = vcmp.lt.f32.partialorder %v3142, 0.0004427343
        %v3144 = vsel %vm3143, %v3141, %v3138
        %v3145 = vadd.f32 %v2872, 1.0
        %v3146 = vlog2.pop %v3145
        %v3147 = vmul.f32 %v3146, 0.6931472
        %v3148 = vmul.f32 -0.5, %v2872
        %v3149 = vadd.f32 %v3148, 1.0
        %v3150 = vmul.f32 %v3149, %v2872
        %v3151 = vand.u32 2147483647, %v2872
        %vm3152 = vcmp.lt.f32.partialorder %v3151, 0.0004427343
        %v3153 = vsel %vm3152, %v3150, %v3147
        %v3154 = vadd.f32 %v2874, 1.0
        %v3155 = vlog2.pop %v3154
        %v3156 = vmul.f32 %v3155, 0.6931472
        %v3157 = vmul.f32 -0.5, %v2874
        %v3158 = vadd.f32 %v3157, 1.0
        %v3159 = vmul.f32 %v3158, %v2874
        %v3160 = vand.u32 2147483647, %v2874
        %vm3161 = vcmp.lt.f32.partialorder %v3160, 0.0004427343
        %v3162 = vsel %vm3161, %v3159, %v3156
        %v3163 = vsel %vm2747, %v2492, %v2883
        %v3164 = vsel %vm2748, %v2494, %v2892
        %v3165 = vsel %vm2749, %v2496, %v2901
        %v3166 = vsel %vm2750, %v2498, %v2910
        %v3167 = vsel %vm2751, %v2500, %v2919
        %v3168 = vsel %vm2752, %v2502, %v2928
        %v3169 = vsel %vm2753, %v2504, %v2937
        %v3170 = vsel %vm2754, %v2506, %v2946
        %v3171 = vsel %vm2755, %v2508, %v2955
        %v3172 = vsel %vm2756, %v2510, %v2964
        %v3173 = vsel %vm2757, %v2512, %v2973
        %v3174 = vsel %vm2758, %v2514, %v2982
        %v3175 = vsel %vm2759, %v2516, %v2991
        %v3176 = vsel %vm2760, %v2518, %v3000
        %v3177 = vsel %vm2761, %v2520, %v3009
        %v3178 = vsel %vm2762, %v2522, %v3018
        %v3179 = vsel %vm2763, %v2524, %v3027
        %v3180 = vsel %vm2764, %v2526, %v3036
        %v3181 = vsel %vm2765, %v2528, %v3045
        %v3182 = vsel %vm2766, %v2530, %v3054
        %v3183 = vsel %vm2767, %v2532, %v3063
        %v3184 = vsel %vm2768, %v2534, %v3072
        %v3185 = vsel %vm2769, %v2536, %v3081
        %v3186 = vsel %vm2770, %v2538, %v3090
        %v3187 = vsel %vm2771, %v2540, %v3099
        %v3188 = vsel %vm2772, %v2542, %v3108
        %v3189 = vsel %vm2773, %v2544, %v3117
        %v3190 = vsel %vm2774, %v2546, %v3126
        %v3191 = vsel %vm2775, %v2548, %v3135
        %v3192 = vsel %vm2776, %v2550, %v3144
        %v3193 = vsel %vm2777, %v2552, %v3153
        %v3194 = vsel %vm2778, %v2554, %v3162
        %v3195 = vmul.f32 %v2684, %v3163
        %v3196 = vmul.f32 %v2686, %v3164
        %v3197 = vmul.f32 %v2688, %v3165
        %v3198 = vmul.f32 %v2690, %v3166
        %v3199 = vmul.f32 %v2692, %v3167
        %v3200 = vmul.f32 %v2694, %v3168
        %v3201 = vmul.f32 %v2696, %v3169
        %v3202 = vmul.f32 %v2698, %v3170
        %v3203 = vmul.f32 %v2700, %v3171
        %v3204 = vmul.f32 %v2702, %v3172
        %v3205 = vmul.f32 %v2704, %v3173
        %v3206 = vmul.f32 %v2706, %v3174
        %v3207 = vmul.f32 %v2708, %v3175
        %v3208 = vmul.f32 %v2710, %v3176
        %v3209 = vmul.f32 %v2712, %v3177
        %v3210 = vmul.f32 %v2714, %v3178
        %v3211 = vmul.f32 %v2716, %v3179
        %v3212 = vmul.f32 %v2718, %v3180
        %v3213 = vmul.f32 %v2720, %v3181
        %v3214 = vmul.f32 %v2722, %v3182
        %v3215 = vmul.f32 %v2724, %v3183
        %v3216 = vmul.f32 %v2726, %v3184
        %v3217 = vmul.f32 %v2728, %v3185
        %v3218 = vmul.f32 %v2730, %v3186
        %v3219 = vmul.f32 %v2732, %v3187
        %v3220 = vmul.f32 %v2734, %v3188
        %v3221 = vmul.f32 %v2736, %v3189
        %v3222 = vmul.f32 %v2738, %v3190
        %v3223 = vmul.f32 %v2740, %v3191
        %v3224 = vmul.f32 %v2742, %v3192
        %v3225 = vmul.f32 %v2744, %v3193
        %v3226 = vmul.f32 %v2746, %v3194
        %v3227 = vld [vmem:[#allocation3] sm:$0xff]
        %v3228 = vld [vmem:[#allocation3 + $0x8] sm:$0xf]
        %v3229 = vpack.c.bf16 %v3196, %v3195
        %v3230 = vpack.c.bf16 %v3198, %v3197
        %v3231 = vpack.c.bf16 %v3200, %v3199
        %v3232 = vpack.c.bf16 %v3202, %v3201
        %v3233 = vpack.c.bf16 %v3204, %v3203
        %v3234 = vpack.c.bf16 %v3206, %v3205
        %v3235 = vpack.c.bf16 %v3208, %v3207
        %v3236 = vpack.c.bf16 %v3210, %v3209
        %v3237 = vpack.c.bf16 %v3212, %v3211
        %v3238 = vpack.c.bf16 %v3214, %v3213
        %v3239 = vpack.c.bf16 %v3216, %v3215
        %v3240 = vpack.c.bf16 %v3218, %v3217
        %v3241 = vpack.c.bf16 %v3220, %v3219
        %v3242 = vpack.c.bf16 %v3222, %v3221
        %v3243 = vpack.c.bf16 %v3224, %v3223
        %v3244 = vpack.c.bf16 %v3226, %v3225
        %3245 = vmatprep.subr.bf16.mxu0 0
        %3246 = vmatpush1.bf16.msra.mxu0 %v3236
        %3247 = vmatprep.subr.bf16.mxu0 0
        %3248 = vmatpush1.bf16.msra.mxu0 %v3235
        %3249 = vmatprep.subr.bf16.mxu0 0
        %3250 = vmatpush1.bf16.msra.mxu0 %v3234
        %3251 = vmatprep.subr.bf16.mxu0 0
        %3252 = vmatpush1.bf16.msra.mxu0 %v3233
        %3253 = vmatprep.subr.bf16.mxu0 0
        %3254 = vmatpush1.bf16.msra.mxu0 %v3232
        %3255 = vmatprep.subr.bf16.mxu0 0
        %3256 = vmatpush1.bf16.msra.mxu0 %v3231
        %3257 = vmatprep.subr.bf16.mxu0 0
        %3258 = vmatpush1.bf16.msra.mxu0 %v3230
        %3259 = vmatprep.subr.bf16.mxu0 0
        %3260 = vmatpush1.bf16.msra.mxu0 %v3229
        %3261 = vmatprep.subr.bf16.mxu0 0
        %3262 = vmatpush2.bf16.msra.mxu0 %v3244
        %3263 = vmatprep.subr.bf16.mxu0 0
        %3264 = vmatpush2.bf16.msra.mxu0 %v3243
        %3265 = vmatprep.subr.bf16.mxu0 0
        %3266 = vmatpush2.bf16.msra.mxu0 %v3242
        %3267 = vmatprep.subr.bf16.mxu0 0
        %3268 = vmatpush2.bf16.msra.mxu0 %v3241
        %3269 = vmatprep.subr.bf16.mxu0 0
        %3270 = vmatpush2.bf16.msra.mxu0 %v3240
        %3271 = vmatprep.subr.bf16.mxu0 0
        %3272 = vmatpush2.bf16.msra.mxu0 %v3239
        %3273 = vmatprep.subr.bf16.mxu0 0
        %3274 = vmatpush2.bf16.msra.mxu0 %v3238
        %3275 = vmatprep.subr.bf16.mxu0 0
        %3276 = vmatpush2.bf16.msra.mxu0 %v3237
        %3277 = vmatprep.mubr.bf16.mxu0 %v1481
        %3278 = vmatmul.mubr.bf16.gmra.mxu0 %v1480
        %v3279 = vpop.f32.mrf.mxu0
        %v3280 = vadd.f32 0.0, %v3279
        %v3281 = vpop.f32.mrf.mxu0
        %v3282 = vpop.f32.mrf.mxu0
        %v3283 = vadd.f32 0.0, %v3282
        %v3284 = vpop.f32.mrf.mxu0
        %3285 = vdwg.mxu0
        %v3286 = vadd.f32 %v3227, %v3280
        %v3287 = vadd.f32 %v3228, %v3283
        %3288 = vst [vmem:[#allocation3] sm:$0xff] %v3286
        %3289 = vst [vmem:[#allocation3 + $0x8] sm:$0xf] %v3287
        // Predicated region
        $region109: #{tpu_custom_call.1} parent=79 // pred_check
          %p3290 = pneg %p643
        $region110: #{tpu_custom_call.1} parent=79 // pred_check_branch
          %3292 = sbr.rel (%p3290) target = $region112
        $region111: #{tpu_custom_call.1} parent=79 // pred_region
          %v3293 = vld [vmem:[#allocation3] sm:$0xff]
          %v3294 = vld [vmem:[#allocation3 + $0x8] sm:$0xf]
          %v3295 = vld [vmem:[#allocation2] sm:$0xff]
          %v3296 = vld [vmem:[#allocation2 + $0x8] sm:$0xf]
          %v3297 = vadd.f32 %v3293, %v3295
          %v3298 = vadd.f32 %v3294, %v3296
          %vm3299 = vcmask 1043456
          %v3300 = vsel %vm3299, %v3298, 0.0
          %v3301 = vadd.f32 %v3297, %v3300
          %v3302 = vrot.slane %v3301, 4
          %v3303 = vadd.f32 %v3301, %v3302
          %v3304 = vrot.slane %v3303, 2
          %v3305 = vadd.f32 %v3303, %v3304
          %v3306 = vrot.slane %v3305, 1
          %v3307 = vadd.f32 %v3305, %v3306
          %v3308 = vrcp.pop 12.0
          %v3309 = vmul.f32 %v3307, %v3308
          %v3310 = vsub.f32 %v3297, %v3309
          %v3311 = vsub.f32 %v3298, %v3309
          %v3312 = vmul.f32 %v3310, %v3310
          %v3313 = vmul.f32 %v3311, %v3311
          %v3314 = vsel %vm3299, %v3313, 0.0
          %v3315 = vadd.f32 %v3312, %v3314
          %v3316 = vrot.slane %v3315, 4
          %v3317 = vadd.f32 %v3315, %v3316
          %v3318 = vrot.slane %v3317, 2
          %v3319 = vadd.f32 %v3317, %v3318
          %v3320 = vrot.slane %v3319, 1
          %v3321 = vadd.f32 %v3319, %v3320
          %v3322 = vmul.f32 %v3321, %v3308
          %v3323 = vadd.f32 %v3322, 1e-05
          %v3324 = vrsqrt.pop %v3323
          %v3325 = vmul.f32 %v3310, %v3324
          %v3326 = vmul.f32 %v3311, %v3324
          %v3327 = vld [vmem:[%s637] sm:$0x1]
          %v3329 = vlaneseq
          %v3330 = vshrl.u32 %v3329, 7
          %v3331 = vsub.s32 0, %v3330
          %v3332 = vrot.slane %v3327, %v3331
          %v3334 = vmul.f32 %v3325, %v3332
          %v3335 = vmul.f32 %v3326, %v3332
          %v3336 = vld [vmem:[%s640] sm:$0x1]
          %v3338 = vlaneseq
          %v3339 = vshrl.u32 %v3338, 7
          %v3340 = vsub.s32 0, %v3339
          %v3341 = vrot.slane %v3336, %v3340
          %v3343 = vadd.f32 %v3334, %v3341
          %v3344 = vadd.f32 %v3335, %v3341
          %3345 = vst [vmem:[#allocation2] sm:$0xff] %v3343
          %3346 = vst [vmem:[#allocation2 + $0x8] sm:$0xf] %v3344
          %p3347 = scmp.eq.s32.totalorder %s34, 1
          // Predicated region
          $region113: #{tpu_custom_call.1} parent=111 // pred_check
            %p3348 = pneg %p3347
          $region114: #{tpu_custom_call.1} parent=111 // pred_check_branch
            %3350 = sbr.rel (%p3348) target = $region116
          $region115: #{tpu_custom_call.1} parent=111 // pred_region
            %v3351 = vld [vmem:[#allocation5] sm:$0x1]
            %v3352 = vlaneseq
            %v3353 = vshrl.u32 %v3352, 7
            %v3354 = vsub.s32 0, %v3353
            %v3355 = vrot.slane %v3351, %v3354
            %vm3356 = vcmp.eq.s32.totalorder %v1458, %v3355
            %v3357 = vsel %vm3356, 1, 0
            %v3358 = vcvt.s32.f32 %v3357
            %vm3359 = vcmask 92160
            %v3360 = vsel %vm3359, %v3358, 0.0
            %3361 = vadd.xlane.f32.xlu0 %v3360
            %v3362 = vpop.xlane.xlu0 %3361
            %v3363 = vmax.f32 %v3362, 1.0
            %v3364 = vpack.c.bf16 %v3358, %v3358
            %v3365 = vpack.c.bf16 %v3344, %v3343
            %v3367 = vsel %vm1494, %v3364, 0
            %v3370 = vsel %vm1543, %v3365, 0
            %3372 = vmatprep.subr.bf16.mxu0 0
            %3373 = vmatpush1.bf16.msra.mxu0 0
            %3374 = vmatprep.subr.bf16.mxu0 0
            %3375 = vmatpush1.bf16.msra.mxu0 0
            %3376 = vmatprep.subr.bf16.mxu0 0
            %3377 = vmatpush1.bf16.msra.mxu0 0
            %3378 = vmatprep.subr.bf16.mxu0 0
            %3379 = vmatpush1.bf16.msra.mxu0 0
            %3380 = vmatprep.subr.bf16.mxu0 0
            %3381 = vmatpush1.bf16.msra.mxu0 0
            %3382 = vmatprep.subr.bf16.mxu0 0
            %3383 = vmatpush1.bf16.msra.mxu0 0
            %3384 = vmatprep.subr.bf16.mxu0 0
            %3385 = vmatpush1.bf16.msra.mxu0 0
            %3386 = vmatprep.subr.bf16.mxu0 0
            %3387 = vmatpush1.bf16.msra.mxu0 %v3370
            %3388 = vmatprep.subr.bf16.mxu0 0
            %3389 = vmatpush2.bf16.msra.mxu0 0
            %3390 = vmatprep.subr.bf16.mxu0 0
            %3391 = vmatpush2.bf16.msra.mxu0 0
            %3392 = vmatprep.subr.bf16.mxu0 0
            %3393 = vmatpush2.bf16.msra.mxu0 0
            %3394 = vmatprep.subr.bf16.mxu0 0
            %3395 = vmatpush2.bf16.msra.mxu0 0
            %3396 = vmatprep.subr.bf16.mxu0 0
            %3397 = vmatpush2.bf16.msra.mxu0 0
            %3398 = vmatprep.subr.bf16.mxu0 0
            %3399 = vmatpush2.bf16.msra.mxu0 0
            %3400 = vmatprep.subr.bf16.mxu0 0
            %3401 = vmatpush2.bf16.msra.mxu0 0
            %3402 = vmatprep.subr.bf16.mxu0 0
            %3403 = vmatpush2.bf16.msra.mxu0 0
            %3404 = vmatprep.mubr.bf16.mxu0 0
            %3405 = vmatmul.mubr.bf16.gmra.mxu0 %v3367
            %v3406 = vpop.f32.mrf.mxu0
            %v3407 = vadd.f32 0.0, %v3406
            %v3408 = vpop.f32.mrf.mxu0
            %v3409 = vpop.f32.mrf.mxu0
            %v3410 = vpop.f32.mrf.mxu0
            %3411 = vdwg.mxu0
            %v3412 = vrcp.pop %v3363
            %v3413 = vmul.f32 %v3407, %v3412
            %v3414 = vpack.c.bf16 %v3413, %v3413
            %v3415 = vld [vmem:[#allocation11] sm:$0xf]
            %v3416 = vld [vmem:[#allocation11 + $0x4] sm:$0xf]
            %v3417 = vld [vmem:[#allocation11 + $0x8] sm:$0xf]
            %v3418 = vld [vmem:[#allocation11 + $0xc] sm:$0xf]
            %v3419 = vld [vmem:[#allocation11 + $0x10] sm:$0xf]
            %v3420 = vld [vmem:[#allocation11 + $0x14] sm:$0xf]
            %v3421 = vld [vmem:[#allocation11 + $0x18] sm:$0xf]
            %v3422 = vld [vmem:[#allocation11 + $0x1c] sm:$0xf]
            %v3423 = vld [vmem:[#allocation11 + $0x20] sm:$0xf]
            %v3424 = vld [vmem:[#allocation11 + $0x24] sm:$0xf]
            %v3425 = vld [vmem:[#allocation11 + $0x28] sm:$0xf]
            %v3426 = vld [vmem:[#allocation11 + $0x2c] sm:$0xf]
            %v3427 = vld [vmem:[#allocation11 + $0x30] sm:$0xf]
            %v3428 = vld [vmem:[#allocation11 + $0x34] sm:$0xf]
            %v3429 = vld [vmem:[#allocation11 + $0x38] sm:$0xf]
            %v3430 = vld [vmem:[#allocation11 + $0x3c] sm:$0xf]
            %v3431 = vld [vmem:[%s12] sm:$0x1]
            %v3433 = vlaneseq
            %v3434 = vshrl.u32 %v3433, 7
            %v3435 = vsub.s32 0, %v3434
            %v3436 = vrot.slane %v3431, %v3435
            %v3454 = vunpack.c.l.b16 %v3415
            %v3455 = vunpack.c.l.b16 %v3416
            %v3456 = vunpack.c.l.b16 %v3417
            %v3457 = vunpack.c.l.b16 %v3418
            %v3458 = vunpack.c.l.b16 %v3419
            %v3459 = vunpack.c.l.b16 %v3420
            %v3460 = vunpack.c.l.b16 %v3421
            %v3461 = vunpack.c.l.b16 %v3422
            %v3462 = vunpack.c.l.b16 %v3423
            %v3463 = vunpack.c.l.b16 %v3424
            %v3464 = vunpack.c.l.b16 %v3425
            %v3465 = vunpack.c.l.b16 %v3426
            %v3466 = vunpack.c.l.b16 %v3427
            %v3467 = vunpack.c.l.b16 %v3428
            %v3468 = vunpack.c.l.b16 %v3429
            %v3469 = vunpack.c.l.b16 %v3430
            %v3470 = vpack.c.b16 %v3455, %v3454
            %v3471 = vpack.c.b16 %v3457, %v3456
            %v3472 = vpack.c.b16 %v3459, %v3458
            %v3473 = vpack.c.b16 %v3461, %v3460
            %v3474 = vpack.c.b16 %v3463, %v3462
            %v3475 = vpack.c.b16 %v3465, %v3464
            %v3476 = vpack.c.b16 %v3467, %v3466
            %v3477 = vpack.c.b16 %v3469, %v3468
            %3486 = vmatprep.subr.bf16.mxu0 0
            %3487 = vmatpush1.bf16.msra.mxu0 %v3477
            %3488 = vmatprep.subr.bf16.mxu0 0
            %3489 = vmatpush1.bf16.msra.mxu0 %v3476
            %3490 = vmatprep.subr.bf16.mxu0 0
            %3491 = vmatpush1.bf16.msra.mxu0 %v3475
            %3492 = vmatprep.subr.bf16.mxu0 0
            %3493 = vmatpush1.bf16.msra.mxu0 %v3474
            %3494 = vmatprep.subr.bf16.mxu0 0
            %3495 = vmatpush1.bf16.msra.mxu0 %v3473
            %3496 = vmatprep.subr.bf16.mxu0 0
            %3497 = vmatpush1.bf16.msra.mxu0 %v3472
            %3498 = vmatprep.subr.bf16.mxu0 0
            %3499 = vmatpush1.bf16.msra.mxu0 %v3471
            %3500 = vmatprep.subr.bf16.mxu0 0
            %3501 = vmatpush1.bf16.msra.mxu0 %v3470
            %3502 = vmatprep.subr.bf16.mxu0 0
            %3503 = vmatpush2.bf16.msra.mxu0 0
            %3504 = vmatprep.subr.bf16.mxu0 0
            %3505 = vmatpush2.bf16.msra.mxu0 0
            %3506 = vmatprep.subr.bf16.mxu0 0
            %3507 = vmatpush2.bf16.msra.mxu0 0
            %3508 = vmatprep.subr.bf16.mxu0 0
            %3509 = vmatpush2.bf16.msra.mxu0 0
            %3510 = vmatprep.subr.bf16.mxu0 0
            %3511 = vmatpush2.bf16.msra.mxu0 0
            %3512 = vmatprep.subr.bf16.mxu0 0
            %3513 = vmatpush2.bf16.msra.mxu0 0
            %3514 = vmatprep.subr.bf16.mxu0 0
            %3515 = vmatpush2.bf16.msra.mxu0 0
            %3516 = vmatprep.subr.bf16.mxu0 0
            %3517 = vmatpush2.bf16.msra.mxu0 0
            %3518 = vmatprep.mubr.bf16.mxu0 0
            %3519 = vmatmul.mubr.bf16.gmra.mxu0 %v3414
            %v3520 = vpop.f32.mrf.mxu0
            %v3521 = vadd.f32 %v3436, %v3520
            %v3522 = vpop.f32.mrf.mxu0
            %v3523 = vpop.f32.mrf.mxu0
            %v3524 = vpop.f32.mrf.mxu0
            %3525 = vdwg.mxu0
            %vm3526 = vcmp.gt.f32.partialorder %v3521, 0.0
            %v3527 = vmul.f32 %v3521, 0.01
            %v3528 = vsel %vm3526, %v3521, %v3527
            %v3529 = vpack.c.bf16 %v3528, %v3528
            %v3530 = vld [vmem:[#allocation12] sm:$0xf]
            %v3531 = vld [vmem:[#allocation12 + $0x4] sm:$0xf]
            %v3532 = vld [vmem:[#allocation12 + $0x8] sm:$0xf]
            %v3533 = vld [vmem:[#allocation12 + $0xc] sm:$0xf]
            %v3534 = vld [vmem:[#allocation12 + $0x10] sm:$0xf]
            %v3535 = vld [vmem:[#allocation12 + $0x14] sm:$0xf]
            %v3536 = vld [vmem:[#allocation12 + $0x18] sm:$0xf]
            %v3537 = vld [vmem:[#allocation12 + $0x1c] sm:$0xf]
            %v3538 = vld [vmem:[#allocation12 + $0x20] sm:$0xf]
            %v3539 = vld [vmem:[#allocation12 + $0x24] sm:$0xf]
            %v3540 = vld [vmem:[#allocation12 + $0x28] sm:$0xf]
            %v3541 = vld [vmem:[#allocation12 + $0x2c] sm:$0xf]
            %v3542 = vld [vmem:[#allocation12 + $0x30] sm:$0xf]
            %v3543 = vld [vmem:[#allocation12 + $0x34] sm:$0xf]
            %v3544 = vld [vmem:[#allocation12 + $0x38] sm:$0xf]
            %v3545 = vld [vmem:[#allocation12 + $0x3c] sm:$0xf]
            %v3546 = vld [vmem:[%s14] sm:$0x1]
            %v3548 = vlaneseq
            %v3549 = vshrl.u32 %v3548, 7
            %v3550 = vsub.s32 0, %v3549
            %v3551 = vrot.slane %v3546, %v3550
            %v3569 = vunpack.c.l.b16 %v3530
            %v3570 = vunpack.c.l.b16 %v3531
            %v3571 = vunpack.c.l.b16 %v3532
            %v3572 = vunpack.c.l.b16 %v3533
            %v3573 = vunpack.c.l.b16 %v3534
            %v3574 = vunpack.c.l.b16 %v3535
            %v3575 = vunpack.c.l.b16 %v3536
            %v3576 = vunpack.c.l.b16 %v3537
            %v3577 = vunpack.c.l.b16 %v3538
            %v3578 = vunpack.c.l.b16 %v3539
            %v3579 = vunpack.c.l.b16 %v3540
            %v3580 = vunpack.c.l.b16 %v3541
            %v3581 = vunpack.c.l.b16 %v3542
            %v3582 = vunpack.c.l.b16 %v3543
            %v3583 = vunpack.c.l.b16 %v3544
            %v3584 = vunpack.c.l.b16 %v3545
            %v3585 = vpack.c.b16 %v3570, %v3569
            %v3586 = vpack.c.b16 %v3572, %v3571
            %v3587 = vpack.c.b16 %v3574, %v3573
            %v3588 = vpack.c.b16 %v3576, %v3575
            %v3589 = vpack.c.b16 %v3578, %v3577
            %v3590 = vpack.c.b16 %v3580, %v3579
            %v3591 = vpack.c.b16 %v3582, %v3581
            %v3592 = vpack.c.b16 %v3584, %v3583
            %3601 = vmatprep.subr.bf16.mxu0 0
            %3602 = vmatpush1.bf16.msra.mxu0 %v3592
            %3603 = vmatprep.subr.bf16.mxu0 0
            %3604 = vmatpush1.bf16.msra.mxu0 %v3591
            %3605 = vmatprep.subr.bf16.mxu0 0
            %3606 = vmatpush1.bf16.msra.mxu0 %v3590
            %3607 = vmatprep.subr.bf16.mxu0 0
            %3608 = vmatpush1.bf16.msra.mxu0 %v3589
            %3609 = vmatprep.subr.bf16.mxu0 0
            %3610 = vmatpush1.bf16.msra.mxu0 %v3588
            %3611 = vmatprep.subr.bf16.mxu0 0
            %3612 = vmatpush1.bf16.msra.mxu0 %v3587
            %3613 = vmatprep.subr.bf16.mxu0 0
            %3614 = vmatpush1.bf16.msra.mxu0 %v3586
            %3615 = vmatprep.subr.bf16.mxu0 0
            %3616 = vmatpush1.bf16.msra.mxu0 %v3585
            %3617 = vmatprep.subr.bf16.mxu0 0
            %3618 = vmatpush2.bf16.msra.mxu0 0
            %3619 = vmatprep.subr.bf16.mxu0 0
            %3620 = vmatpush2.bf16.msra.mxu0 0
            %3621 = vmatprep.subr.bf16.mxu0 0
            %3622 = vmatpush2.bf16.msra.mxu0 0
            %3623 = vmatprep.subr.bf16.mxu0 0
            %3624 = vmatpush2.bf16.msra.mxu0 0
            %3625 = vmatprep.subr.bf16.mxu0 0
            %3626 = vmatpush2.bf16.msra.mxu0 0
            %3627 = vmatprep.subr.bf16.mxu0 0
            %3628 = vmatpush2.bf16.msra.mxu0 0
            %3629 = vmatprep.subr.bf16.mxu0 0
            %3630 = vmatpush2.bf16.msra.mxu0 0
            %3631 = vmatprep.subr.bf16.mxu0 0
            %3632 = vmatpush2.bf16.msra.mxu0 0
            %3633 = vmatprep.mubr.bf16.mxu0 0
            %3634 = vmatmul.mubr.bf16.gmra.mxu0 %v3529
            %v3635 = vpop.f32.mrf.mxu0
            %v3636 = vadd.f32 %v3551, %v3635
            %v3637 = vpop.f32.mrf.mxu0
            %v3638 = vpop.f32.mrf.mxu0
            %v3639 = vpop.f32.mrf.mxu0
            %3640 = vdwg.mxu0
            %3641 = vst [vmem:[#allocation14] sm:$0x7] %v3636
          $region116: #{tpu_custom_call.1} parent=111 // pred_fallthru
            _
        $region112: #{tpu_custom_call.1} parent=79 // pred_fallthru
          _
        // Predicated region
        $region117: #{tpu_custom_call.1} parent=79 // pred_check
          %p3642 = pneg %p400
        $region118: #{tpu_custom_call.1} parent=79 // pred_check_branch
          %3644 = sbr.rel (%p3642) target = $region120
        $region119: #{tpu_custom_call.1} parent=79 // pred_region
          %s3646 = ssub.s32 64, 64
          %3647 = vsyncadd [#allocation7], %s3646
          %s3649 = sshll.u32 [#allocation14], 4
          %s3650 = int_to_ptr.vmem [resolvable:$true] %s3649
          %3652 = dma.vmem_to_hbm [thread:$0]  %s3650, 64, %s15, [#allocation7]
        $region120: #{tpu_custom_call.1} parent=79 // pred_fallthru
          _
        // Predicated region
        $region121: #{tpu_custom_call.1} parent=79 // pred_check
          %p3653 = pneg %p400
        $region122: #{tpu_custom_call.1} parent=79 // pred_check_branch
          %3655 = sbr.rel (%p3653) target = $region124
        $region123: #{tpu_custom_call.1} parent=79 // pred_region
          %3656 = dma.done [#allocation7], 64
        $region124: #{tpu_custom_call.1} parent=79 // pred_fallthru
          _
      $region80: #{tpu_custom_call.1} parent=5 // pred_fallthru
        _
      %p3657 = scmp.le.s32.totalorder 2, %s25
      // Predicated region
      $region125: #{tpu_custom_call.1} parent=5 // pred_check
        %p3658 = pneg %p3657
      $region126: #{tpu_custom_call.1} parent=5 // pred_check_branch
        %3660 = sbr.rel (%p3658) target = $region128
      $region127: #{tpu_custom_call.1} parent=5 // pred_region
        %s3661 = ssub.s32 %s25, 2
      $region128: #{tpu_custom_call.1} parent=5 // pred_fallthru
        _
    $region6: #{tpu_custom_call.1} parent=1 // loop_footer
      %s29 = sadd.s32 1, %s25
    $region7: #{tpu_custom_call.1} parent=1 // loop_footer_branch
      %24 = sbr.rel target = $region3
    $region8: #{tpu_custom_call.1} parent=1 // loop_exit
      _
    %3662 = vsyncpa [#allocation6], 1
    %s3663 = scalar_lea.sflag [#allocation6], 1
    %3664 = vsyncpa %s3663, 1
    %3665 = vsyncpa [#allocation9], 1
    %3666 = vsyncpa [#allocation13], 1
    %3667 = vsyncpa [#allocation7], 1
    %s3668 = scalar_lea.sflag [#allocation7], 1
    %3669 = vsyncpa %s3668, 1

</llo_original>
